<compile_context>
chip_gen: v6e
topology: v6e:2x2x1
jax: 0.10.0
libtpu: 0.0.40
codegen_flags: <defaults>
</compile_context>

<pallas_src>
import jax
import jax.numpy as jnp
from jax import lax
from jax.experimental import pallas as pl
from jax.experimental.pallas import tpu as pltpu

IN_DIM = 128      # stand-in for the module's data-dependent input width
H1 = 1000
H2 = 60
OUT_DIM = 1

# Lane/MXU-friendly padded sizes (zero-filled pads; ReLU(0)=0 and padded
# weight rows/cols are 0, so results are unchanged).
H1_PAD = 1024
H2_PAD = 128
H1_CHUNK = 256    # layer-1 N-chunk for the fused bias+ReLU+bf16 epilogue


def dqn_kernel(x_ref, w1_ref, b1_ref, w2_ref, b2_ref, w3_ref, b3_ref,
               o_ref, h1_ref):
    # In-kernel cast of the activation tile (x stays f32 in HBM).
    xb = x_ref[...].astype(jnp.bfloat16)                      # (TB, 128) bf16

    # Layer 1, chunked along N: keep each (TB, 256) f32 chunk in vregs, fuse
    # bias + ReLU + bf16 cast, store only bf16 into the VMEM scratch.
    for c in range(H1_PAD // H1_CHUNK):                       # static unroll (4)
        lo = c * H1_CHUNK
        h = jnp.dot(xb, w1_ref[:, lo:lo + H1_CHUNK],
                    preferred_element_type=jnp.float32)       # (TB, 256) f32
        h = jnp.maximum(h + b1_ref[:, lo:lo + H1_CHUNK], 0.0)
        h1_ref[:, lo:lo + H1_CHUNK] = h.astype(jnp.bfloat16)

    # Layer 2: (TB, 1024) bf16 @ (1024, 128) bf16 -> f32, bias + ReLU in f32.
    h2 = jnp.dot(h1_ref[...], w2_ref[...],
                 preferred_element_type=jnp.float32)          # (TB, 128) f32
    h2 = jnp.maximum(h2 + b2_ref[...], 0.0)

    # Layer 3: (1, 128) . (TB, 128)^T -> (1, TB).  Contracting the 128 hidden
    # lanes with w3 as the LHS yields the result already lane-dense, so the
    # output store is an unmasked vst + one contiguous writeback DMA.
    y = lax.dot_general(
        w3_ref[...].astype(jnp.float32), h2,
        dimension_numbers=(((1,), (1,)), ((), ())),
        preferred_element_type=jnp.float32)                   # (1, TB) f32
    o_ref[...] = (y + b3_ref[0]).astype(o_ref.dtype)


def prepare_params(params):
    """One-time: zero-pad to lane-aligned shapes and cast weights to bf16."""
    w1, b1, w2, b2, w3, b3 = params
    w1p = jnp.zeros((IN_DIM, H1_PAD), jnp.bfloat16).at[:, :H1].set(
        w1.astype(jnp.bfloat16))
    b1p = jnp.zeros((1, H1_PAD), jnp.float32).at[:, :H1].set(b1)
    w2p = jnp.zeros((H1_PAD, H2_PAD), jnp.bfloat16).at[:H1, :H2].set(
        w2.astype(jnp.bfloat16))
    b2p = jnp.zeros((1, H2_PAD), jnp.float32).at[:, :H2].set(b2)
    w3p = jnp.zeros((1, H2_PAD), jnp.bfloat16).at[:, :H2].set(
        w3.reshape(1, H2).astype(jnp.bfloat16))
    b3p = b3.reshape(-1).astype(jnp.float32)                   # (1,) SMEM scalar
    return (w1p, b1p, w2p, b2p, w3p, b3p)


def _pick_tb(B):
    """Largest batch tile that still leaves >= 2 grid steps (v7x: 2 TCs)."""
    for tb in (512, 256, 128):
        if pl.cdiv(B, tb) >= 2:
            return tb
    # Tiny batch: one grid step, smallest sublane-aligned tile covering B.
    return max(8, ((B + 7) // 8) * 8)


def dqn_forward(x, prepared):
    """x: (B, IN_DIM) f32. prepared: output of prepare_params. Returns (B, 1) f32."""
    w1p, b1p, w2p, b2p, w3p, b3p = prepared
    B = x.shape[0]
    tb = _pick_tb(B)
    nt = pl.cdiv(B, tb)           # ragged last tile is padded by Pallas; padded
                                  # rows are row-independent and sliced off below.

    out = pl.pallas_call(
        dqn_kernel,
        out_shape=jax.ShapeDtypeStruct((1, nt * tb), jnp.float32),
        grid=(nt,),
        in_specs=[
            # Activations: tiled along the batch grid axis (pipelined), f32.
            pl.BlockSpec((tb, IN_DIM), lambda i: (i, 0)),
            # Weights/biases: constant block index -> VMEM-resident, DMA'd once.
            pl.BlockSpec((IN_DIM, H1_PAD), lambda i: (0, 0)),
            pl.BlockSpec((1, H1_PAD), lambda i: (0, 0)),
            pl.BlockSpec((H1_PAD, H2_PAD), lambda i: (0, 0)),
            pl.BlockSpec((1, H2_PAD), lambda i: (0, 0)),
            pl.BlockSpec((1, H2_PAD), lambda i: (0, 0)),
            # b3: scalar in SMEM (no padded vreg tile / tiny VMEM DMA).
            pl.BlockSpec(memory_space=pltpu.MemorySpace.SMEM),
        ],
        # Lane-dense output: each step writes one contiguous (1, TB) column block.
        out_specs=pl.BlockSpec((1, tb), lambda i: (0, i)),
        scratch_shapes=[pltpu.VMEM((tb, H1_PAD), jnp.bfloat16)],
        compiler_params=pltpu.CompilerParams(
            dimension_semantics=("parallel",),   # v7x: shard batch tiles over 2 TCs
        ),
    )(x, w1p, b1p, w2p, b2p, w3p, b3p)
    return out[0, :B].reshape(B, OUT_DIM)


def init_params(key):
    """Deterministic init mimicking PyTorch nn.Linear (uniform +-1/sqrt(fan_in))."""
    keys = jax.random.split(key, 6)

    def linear(kw, kb, fan_in, fan_out):
        bound = 1.0 / jnp.sqrt(fan_in)
        w = jax.random.uniform(kw, (fan_in, fan_out), jnp.float32, -bound, bound)
        b = jax.random.uniform(kb, (1, fan_out), jnp.float32, -bound, bound)
        return w, b

    w1, b1 = linear(keys[0], keys[1], IN_DIM, H1)
    w2, b2 = linear(keys[2], keys[3], H1, H2)
    w3, b3 = linear(keys[4], keys[5], H2, OUT_DIM)
    return (w1, b1, w2, b2, w3, b3)


def dqn_reference(x, params):
    """Pure-JAX reference emulating the kernel's bf16-weight / f32-accum math."""
    w1, b1, w2, b2, w3, b3 = params
    bf16, f32 = jnp.bfloat16, jnp.float32
    h1 = jnp.maximum(
        jnp.dot(x.astype(bf16), w1.astype(bf16), preferred_element_type=f32) + b1, 0.0)
    h2 = jnp.maximum(
        jnp.dot(h1.astype(bf16), w2.astype(bf16), preferred_element_type=f32) + b2, 0.0)
    return jnp.dot(h2, w3.astype(bf16).astype(f32),
                   preferred_element_type=f32) + b3


if __name__ == "__main__":
    key = jax.random.PRNGKey(0)
    k_x, k_p = jax.random.split(key)

    params = init_params(k_p)
    prepared = prepare_params(params)

    # batch=300: TB=256, grid=(2,), ragged last tile (cdiv grid, no wrapper pad).
    # batch=40:  tiny single-tile path (TB=48, grid=(1,)).
    for batch in (300, 40):
        x = jax.random.normal(jax.random.fold_in(k_x, batch),
                              (batch, IN_DIM), jnp.float32)
        out = jax.block_until_ready(dqn_forward(x, prepared))
        ref = dqn_reference(x, params)
        assert out.shape == (batch, OUT_DIM)
        assert jnp.allclose(out, ref, atol=1e-2, rtol=1e-2), \
            f"mismatch vs reference at batch={batch}"

    print("KERNEL_OK")
</pallas_src>

<mosaic_0001>
module attributes {stable_mosaic.version = 11 : i64} {
  func.func @dqn_kernel(%arg0: i32, %arg1: memref<256x128xf32, #tpu.memory_space<vmem>>, %arg2: memref<128x1024xbf16, #tpu.memory_space<vmem>>, %arg3: memref<1x1024xf32, #tpu.memory_space<vmem>>, %arg4: memref<1024x128xbf16, #tpu.memory_space<vmem>>, %arg5: memref<1x128xf32, #tpu.memory_space<vmem>>, %arg6: memref<1x128xbf16, #tpu.memory_space<vmem>>, %arg7: memref<1xf32, #tpu.memory_space<smem>>, %arg8: memref<1x256xf32, #tpu.memory_space<vmem>>, %arg9: memref<256x1024xbf16, #tpu.memory_space<vmem>>) attributes {dimension_semantics = [#tpu.dimension_semantics<parallel>], iteration_bounds = array<i64: 2>, scalar_prefetch = 0 : i64, scratch_operands = 1 : i64, tpu.core_type = #tpu.core_type<tc>, window_params = [{transform_indices = @transform_0, window_bounds = array<i64: 256, 128>}, {pipeline_mode = #tpu.pipeline_mode<synchronous>, transform_indices = @transform_1, window_bounds = array<i64: 128, 1024>}, {pipeline_mode = #tpu.pipeline_mode<synchronous>, transform_indices = @transform_2, window_bounds = array<i64: 1, 1024>}, {pipeline_mode = #tpu.pipeline_mode<synchronous>, transform_indices = @transform_3, window_bounds = array<i64: 1024, 128>}, {pipeline_mode = #tpu.pipeline_mode<synchronous>, transform_indices = @transform_4, window_bounds = array<i64: 1, 128>}, {pipeline_mode = #tpu.pipeline_mode<synchronous>, transform_indices = @transform_5, window_bounds = array<i64: 1, 128>}, {transform_indices = @transform_6, window_bounds = array<i64: 1>}, {transform_indices = @transform_7, window_bounds = array<i64: 1, 256>}]} {
    %c0 = arith.constant 0 : index
    %c0_0 = arith.constant 0 : index
    %0 = vector.load %arg1[%c0, %c0_0] : memref<256x128xf32, #tpu.memory_space<vmem>>, vector<256x128xf32>
    %1 = arith.truncf %0 : vector<256x128xf32> to vector<256x128xbf16>
    %c0_1 = arith.constant 0 : index
    %c0_2 = arith.constant 0 : index
    %2 = vector.load %arg2[%c0_1, %c0_2] : memref<128x1024xbf16, #tpu.memory_space<vmem>>, vector<128x256xbf16>
    %cst = arith.constant dense<0.000000e+00> : vector<256x256xf32>
    %3 = tpu.matmul %1, %2, %cst {dimension_numbers = #tpu.dot_dimension_numbers<[1], [0], [0], [1], [0, 0, 1, 1], [], []>} : vector<256x128xbf16>, vector<128x256xbf16>, vector<256x256xf32> -> vector<256x256xf32>
    %c0_3 = arith.constant 0 : index
    %c0_4 = arith.constant 0 : index
    %4 = vector.load %arg3[%c0_3, %c0_4] : memref<1x1024xf32, #tpu.memory_space<vmem>>, vector<1x256xf32>
    %5 = vector.broadcast %4 : vector<1x256xf32> to vector<256x256xf32>
    %6 = arith.addf %3, %5 : vector<256x256xf32>
    %cst_5 = arith.constant 0.000000e+00 : f32
    %7 = vector.broadcast %cst_5 : f32 to vector<256x256xf32>
    %8 = arith.maximumf %6, %7 : vector<256x256xf32>
    %9 = arith.truncf %8 : vector<256x256xf32> to vector<256x256xbf16>
    %c0_6 = arith.constant 0 : index
    %c0_7 = arith.constant 0 : index
    %10 = vector.load %arg9[%c0_6, %c0_7] : memref<256x1024xbf16, #tpu.memory_space<vmem>>, vector<256x256xbf16>
    tpu.vector_store %arg9[%c0_6, %c0_7], %9 {strides = array<i32>} : memref<256x1024xbf16, #tpu.memory_space<vmem>>, vector<256x256xbf16>,
    %c0_8 = arith.constant 0 : index
    %c256 = arith.constant 256 : index
    %11 = vector.load %arg2[%c0_8, %c256] : memref<128x1024xbf16, #tpu.memory_space<vmem>>, vector<128x256xbf16>
    %cst_9 = arith.constant dense<0.000000e+00> : vector<256x256xf32>
    %12 = tpu.matmul %1, %11, %cst_9 {dimension_numbers = #tpu.dot_dimension_numbers<[1], [0], [0], [1], [0, 0, 1, 1], [], []>} : vector<256x128xbf16>, vector<128x256xbf16>, vector<256x256xf32> -> vector<256x256xf32>
    %c0_10 = arith.constant 0 : index
    %c256_11 = arith.constant 256 : index
    %13 = vector.load %arg3[%c0_10, %c256_11] : memref<1x1024xf32, #tpu.memory_space<vmem>>, vector<1x256xf32>
    %14 = vector.broadcast %13 : vector<1x256xf32> to vector<256x256xf32>
    %15 = arith.addf %12, %14 : vector<256x256xf32>
    %cst_12 = arith.constant 0.000000e+00 : f32
    %16 = vector.broadcast %cst_12 : f32 to vector<256x256xf32>
    %17 = arith.maximumf %15, %16 : vector<256x256xf32>
    %18 = arith.truncf %17 : vector<256x256xf32> to vector<256x256xbf16>
    %c0_13 = arith.constant 0 : index
    %c256_14 = arith.constant 256 : index
    %19 = vector.load %arg9[%c0_13, %c256_14] : memref<256x1024xbf16, #tpu.memory_space<vmem>>, vector<256x256xbf16>
    tpu.vector_store %arg9[%c0_13, %c256_14], %18 {strides = array<i32>} : memref<256x1024xbf16, #tpu.memory_space<vmem>>, vector<256x256xbf16>,
    %c0_15 = arith.constant 0 : index
    %c512 = arith.constant 512 : index
    %20 = vector.load %arg2[%c0_15, %c512] : memref<128x1024xbf16, #tpu.memory_space<vmem>>, vector<128x256xbf16>
    %cst_16 = arith.constant dense<0.000000e+00> : vector<256x256xf32>
    %21 = tpu.matmul %1, %20, %cst_16 {dimension_numbers = #tpu.dot_dimension_numbers<[1], [0], [0], [1], [0, 0, 1, 1], [], []>} : vector<256x128xbf16>, vector<128x256xbf16>, vector<256x256xf32> -> vector<256x256xf32>
    %c0_17 = arith.constant 0 : index
    %c512_18 = arith.constant 512 : index
    %22 = vector.load %arg3[%c0_17, %c512_18] : memref<1x1024xf32, #tpu.memory_space<vmem>>, vector<1x256xf32>
    %23 = vector.broadcast %22 : vector<1x256xf32> to vector<256x256xf32>
    %24 = arith.addf %21, %23 : vector<256x256xf32>
    %cst_19 = arith.constant 0.000000e+00 : f32
    %25 = vector.broadcast %cst_19 : f32 to vector<256x256xf32>
    %26 = arith.maximumf %24, %25 : vector<256x256xf32>
    %27 = arith.truncf %26 : vector<256x256xf32> to vector<256x256xbf16>
    %c0_20 = arith.constant 0 : index
    %c512_21 = arith.constant 512 : index
    %28 = vector.load %arg9[%c0_20, %c512_21] : memref<256x1024xbf16, #tpu.memory_space<vmem>>, vector<256x256xbf16>
    tpu.vector_store %arg9[%c0_20, %c512_21], %27 {strides = array<i32>} : memref<256x1024xbf16, #tpu.memory_space<vmem>>, vector<256x256xbf16>,
    %c0_22 = arith.constant 0 : index
    %c768 = arith.constant 768 : index
    %29 = vector.load %arg2[%c0_22, %c768] : memref<128x1024xbf16, #tpu.memory_space<vmem>>, vector<128x256xbf16>
    %cst_23 = arith.constant dense<0.000000e+00> : vector<256x256xf32>
    %30 = tpu.matmul %1, %29, %cst_23 {dimension_numbers = #tpu.dot_dimension_numbers<[1], [0], [0], [1], [0, 0, 1, 1], [], []>} : vector<256x128xbf16>, vector<128x256xbf16>, vector<256x256xf32> -> vector<256x256xf32>
    %c0_24 = arith.constant 0 : index
    %c768_25 = arith.constant 768 : index
    %31 = vector.load %arg3[%c0_24, %c768_25] : memref<1x1024xf32, #tpu.memory_space<vmem>>, vector<1x256xf32>
    %32 = vector.broadcast %31 : vector<1x256xf32> to vector<256x256xf32>
    %33 = arith.addf %30, %32 : vector<256x256xf32>
    %cst_26 = arith.constant 0.000000e+00 : f32
    %34 = vector.broadcast %cst_26 : f32 to vector<256x256xf32>
    %35 = arith.maximumf %33, %34 : vector<256x256xf32>
    %36 = arith.truncf %35 : vector<256x256xf32> to vector<256x256xbf16>
    %c0_27 = arith.constant 0 : index
    %c768_28 = arith.constant 768 : index
    %37 = vector.load %arg9[%c0_27, %c768_28] : memref<256x1024xbf16, #tpu.memory_space<vmem>>, vector<256x256xbf16>
    tpu.vector_store %arg9[%c0_27, %c768_28], %36 {strides = array<i32>} : memref<256x1024xbf16, #tpu.memory_space<vmem>>, vector<256x256xbf16>,
    %c0_29 = arith.constant 0 : index
    %c0_30 = arith.constant 0 : index
    %38 = vector.load %arg9[%c0_29, %c0_30] : memref<256x1024xbf16, #tpu.memory_space<vmem>>, vector<256x1024xbf16>
    %c0_31 = arith.constant 0 : index
    %c0_32 = arith.constant 0 : index
    %39 = vector.load %arg4[%c0_31, %c0_32] : memref<1024x128xbf16, #tpu.memory_space<vmem>>, vector<1024x128xbf16>
    %cst_33 = arith.constant dense<0.000000e+00> : vector<256x128xf32>
    %40 = tpu.matmul %38, %39, %cst_33 {dimension_numbers = #tpu.dot_dimension_numbers<[1], [0], [0], [1], [0, 0, 1, 1], [], []>} : vector<256x1024xbf16>, vector<1024x128xbf16>, vector<256x128xf32> -> vector<256x128xf32>
    %c0_34 = arith.constant 0 : index
    %c0_35 = arith.constant 0 : index
    %41 = vector.load %arg5[%c0_34, %c0_35] : memref<1x128xf32, #tpu.memory_space<vmem>>, vector<1x128xf32>
    %42 = vector.broadcast %41 : vector<1x128xf32> to vector<256x128xf32>
    %43 = arith.addf %40, %42 : vector<256x128xf32>
    %cst_36 = arith.constant 0.000000e+00 : f32
    %44 = vector.broadcast %cst_36 : f32 to vector<256x128xf32>
    %45 = arith.maximumf %43, %44 : vector<256x128xf32>
    %c0_37 = arith.constant 0 : index
    %c0_38 = arith.constant 0 : index
    %46 = vector.load %arg6[%c0_37, %c0_38] : memref<1x128xbf16, #tpu.memory_space<vmem>>, vector<1x128xbf16>
    %47 = arith.extf %46 : vector<1x128xbf16> to vector<1x128xf32>
    %cst_39 = arith.constant dense<0.000000e+00> : vector<1x256xf32>
    %48 = tpu.matmul %47, %45, %cst_39 {dimension_numbers = #tpu.dot_dimension_numbers<[1], [1], [0], [0], [0, 0, 1, 0], [], []>} : vector<1x128xf32>, vector<256x128xf32>, vector<1x256xf32> -> vector<1x256xf32>
    %c0_40 = arith.constant 0 : index
    %49 = memref.load %arg7[%c0_40] : memref<1xf32, #tpu.memory_space<smem>>
    %50 = vector.broadcast %49 : f32 to vector<1x256xf32>
    %51 = arith.addf %48, %50 : vector<1x256xf32>
    %c0_41 = arith.constant 0 : index
    %c0_42 = arith.constant 0 : index
    %52 = vector.load %arg8[%c0_41, %c0_42] : memref<1x256xf32, #tpu.memory_space<vmem>>, vector<1x256xf32>
    tpu.vector_store %arg8[%c0_41, %c0_42], %51 {strides = array<i32>} : memref<1x256xf32, #tpu.memory_space<vmem>>, vector<1x256xf32>,
    return
  }
  func.func @transform_0(%arg0: i32) -> (i32, i32) {
    %c0_i32 = arith.constant 0 : i32
    %c0_i32_0 = arith.constant 0 : i32
    return %arg0, %c0_i32 : i32, i32
  }
  func.func @transform_1(%arg0: i32) -> (i32, i32) {
    %c0_i32 = arith.constant 0 : i32
    %c0_i32_0 = arith.constant 0 : i32
    %c0_i32_1 = arith.constant 0 : i32
    return %c0_i32, %c0_i32_0 : i32, i32
  }
  func.func @transform_2(%arg0: i32) -> (i32, i32) {
    %c0_i32 = arith.constant 0 : i32
    %c0_i32_0 = arith.constant 0 : i32
    %c0_i32_1 = arith.constant 0 : i32
    return %c0_i32, %c0_i32_0 : i32, i32
  }
  func.func @transform_3(%arg0: i32) -> (i32, i32) {
    %c0_i32 = arith.constant 0 : i32
    %c0_i32_0 = arith.constant 0 : i32
    %c0_i32_1 = arith.constant 0 : i32
    return %c0_i32, %c0_i32_0 : i32, i32
  }
  func.func @transform_4(%arg0: i32) -> (i32, i32) {
    %c0_i32 = arith.constant 0 : i32
    %c0_i32_0 = arith.constant 0 : i32
    %c0_i32_1 = arith.constant 0 : i32
    return %c0_i32, %c0_i32_0 : i32, i32
  }
  func.func @transform_5(%arg0: i32) -> (i32, i32) {
    %c0_i32 = arith.constant 0 : i32
    %c0_i32_0 = arith.constant 0 : i32
    %c0_i32_1 = arith.constant 0 : i32
    return %c0_i32, %c0_i32_0 : i32, i32
  }
  func.func @transform_6(%arg0: i32) -> i32 {
    %c0_i32 = arith.constant 0 : i32
    %c0_i32_0 = arith.constant 0 : i32
    return %c0_i32 : i32
  }
  func.func @transform_7(%arg0: i32) -> (i32, i32) {
    %c0_i32 = arith.constant 0 : i32
    %c0_i32_0 = arith.constant 0 : i32
    return %c0_i32, %arg0 : i32, i32
  }
}

</mosaic_0001>

<llo_original>
// kernel: tpu_custom_call.1
$region0: #{tpu_custom_call.1}
  #allocation0 [shape = 'u32[]', space=smem, size = 0x4, offset = 0x4, fixed_abs, tag = 'smem constant byte address 0x4 - core index']
  #allocation1 [shape = 'u32[144,128]{1,0:T(1,128)}', space=vmem, size = 0x12000, scoped, tag = 'internal scratch']
  #allocation2 [shape = 'bf16[256,1024]{1,0:T(8,128)(2,1)}', space=vmem, size = 0x80000, scoped, tag = 'scratch operand']
  #allocation3 [shape = 'f32[1]{0:T(128)S(6)}', space=smem, size = 0x200, scoped, tag = 'scoped memory for tpu_custom_call.1']
  %s0 = inlined_call_operand.hbm [shape: f32[300,128], index: 0, kind: input, shape index: {}]
  %s1 = inlined_call_operand.hbm [shape: bf16[128,1024], index: 1, kind: input, shape index: {}]
  %s2 = inlined_call_operand.hbm [shape: f32[1,1024], index: 2, kind: input, shape index: {}]
  %s3 = inlined_call_operand.hbm [shape: bf16[1024,128], index: 3, kind: input, shape index: {}]
  %s4 = inlined_call_operand.vmem [shape: f32[1,128], index: 4, kind: input, shape index: {}]
  %s5 = inlined_call_operand.vmem [shape: bf16[1,128], index: 5, kind: input, shape index: {}]
  %s6 = inlined_call_operand.<no memory space> [shape: f32[1], index: 6, kind: input, shape index: {}]
  %s7 = inlined_call_operand.hbm [shape: f32[1,512], index: 7, kind: output, shape index: {}]
  %s8 = sld [smem:[#allocation0]]
  $region77: #{tpu_custom_call.1} parent=0
    _
  %s10 = ssub.s32 1, %s8
  %s11 = scalar_select 0, %s10, %s8
  %12 = sst [smem:[#allocation3]] %s6
  $region1: #{tpu_custom_call.1} parent=0
    #allocation4 [shape = 'u8[262144]{0}', space=vmem, size = 0x40000, scoped, tag = 'input window, operand 0']
    #allocation5 [shape = 's32[2]{0}', space=sflag, size = 0x8, scoped, tag = 'scoped memory for tpu_custom_call.1']
    #allocation6 [shape = 's32[2]{0}', space=sflag, size = 0x8, scoped, tag = 'scoped memory for tpu_custom_call.1']
    #allocation7 [shape = 'u8[262144]{0}', space=vmem, size = 0x40000, scoped, tag = 'input window, operand 1, single buffered']
    #allocation8 [shape = 's32[1]{0}', space=sflag, size = 0x4, scoped, tag = 'scoped memory for tpu_custom_call.1']
    #allocation9 [shape = 'u8[4096]{0}', space=vmem, size = 0x1000, scoped, tag = 'input window, operand 2, single buffered']
    #allocation10 [shape = 'u8[262144]{0}', space=vmem, size = 0x40000, scoped, tag = 'input window, operand 3, single buffered']
    #allocation11 [shape = 's32[1]{0}', space=sflag, size = 0x4, scoped, tag = 'scoped memory for tpu_custom_call.1']
    #allocation12 [shape = 'u8[2048]{0}', space=vmem, size = 0x800, scoped, tag = 'output window, operand 0']
    %13 = vsyncpa [#allocation5], 0
    %s14 = scalar_lea.sflag [#allocation5], 1
    %15 = vsyncpa %s14, 0
    %16 = vsyncpa [#allocation8], 0
    %17 = vsyncpa [#allocation11], 0
    %18 = vsyncpa [#allocation6], 0
    %s19 = scalar_lea.sflag [#allocation6], 1
    %20 = vsyncpa %s19, 0
    loop: start=0, step=1, limit=4
    $region2: #{tpu_custom_call.1} parent=1 // loop_pre_header
      _
    $region3: #{tpu_custom_call.1} parent=1 // loop_header
      %s22 = sphi 0, %s26
      %p23 = scmp.ge.s32.totalorder %s22, 4
      %s32 = sphi 0, %s34
      %s35 = sphi 0, %s32
      %s36 = sphi 0, %s35
      %s52 = sphi 0, %s36
      %s56 = sphi 0, %s56
      %s58 = sphi 0, %s56
      %s59 = sphi 0, %s58
      %s73 = sphi 0, %s59
      %s77 = sphi 0, %s77
      %s79 = sphi 0, %s77
      %s80 = sphi 0, %s79
      %s94 = sphi 0, %s80
      %s98 = sphi 0, %s98
      %s100 = sphi 0, %s98
      %s101 = sphi 0, %s100
      %s115 = sphi 0, %s101
      %s119 = sphi 0, %s119
      %s121 = sphi 0, %s119
      %s122 = sphi 0, %s121
      %s136 = sphi 0, %s122
      %s140 = sphi 0, %s140
      %s142 = sphi 0, %s140
      %s143 = sphi 0, %s142
      %s157 = sphi 0, %s143
      %s161 = sphi 0, %s161
      %s163 = sphi 0, %s161
      %s164 = sphi 0, %s163
      %s178 = sphi 0, %s164
      %s184 = sphi 0, %s186
      %s187 = sphi 0, %s184
      %s188 = sphi 0, %s187
      %s204 = sphi 0, %s188
    $region4: #{tpu_custom_call.1} parent=1 // loop_header_branch
      %25 = sbr.rel (%p23) target = $region8
    $region5: #{tpu_custom_call.1} parent=1 // loop_body
      %s27 = ssub.s32 %s22, 1
      %s28 = ssub.s32 %s22, 2
      %s29 = sadd.s32 %s22, 1
      %s30 = ssub.s32 %s22, %s29
      %p31 = scmp.eq.s32.totalorder %s30, 0
      %s33 = sadd.s32 %s32, 1
      %s34 = scalar_select %p31, %s32, %s33
      %p37 = pneg %p31
      %p38 = scmp.eq.s32.totalorder %s22, 1
      %p39 = por %p37, %p38
      %p40 = scmp.ne.s32.totalorder %s32, %s35
      %p41 = scmp.eq.s32.totalorder %s22, 0
      %p42 = por %p40, %p41
      %p43 = scmp.ne.s32.totalorder %s32, %s35
      %p44 = scmp.eq.s32.totalorder %s27, 1
      %p45 = por %p43, %p44
      %p46 = scmp.ne.s32.totalorder %s35, %s36
      %p47 = scmp.eq.s32.totalorder %s27, 0
      %p48 = por %p46, %p47
      %p49 = scmp.ne.s32.totalorder %s35, %s36
      %p50 = scmp.eq.s32.totalorder %s28, 1
      %p51 = por %p49, %p50
      %p53 = scmp.ne.s32.totalorder %s36, %s52
      %p54 = scmp.eq.s32.totalorder %s28, 0
      %p55 = por %p53, %p54
      %s57 = sadd.s32 %s56, 1
      %p60 = scmp.eq.s32.totalorder %s22, 1
      %p61 = scmp.ne.s32.totalorder %s56, %s58
      %p62 = scmp.eq.s32.totalorder %s22, 0
      %p63 = por %p61, %p62
      %p64 = scmp.ne.s32.totalorder %s56, %s58
      %p65 = scmp.eq.s32.totalorder %s27, 1
      %p66 = por %p64, %p65
      %p67 = scmp.ne.s32.totalorder %s58, %s59
      %p68 = scmp.eq.s32.totalorder %s27, 0
      %p69 = por %p67, %p68
      %p70 = scmp.ne.s32.totalorder %s58, %s59
      %p71 = scmp.eq.s32.totalorder %s28, 1
      %p72 = por %p70, %p71
      %p74 = scmp.ne.s32.totalorder %s59, %s73
      %p75 = scmp.eq.s32.totalorder %s28, 0
      %p76 = por %p74, %p75
      %s78 = sadd.s32 %s77, 1
      %p81 = scmp.eq.s32.totalorder %s22, 1
      %p82 = scmp.ne.s32.totalorder %s77, %s79
      %p83 = scmp.eq.s32.totalorder %s22, 0
      %p84 = por %p82, %p83
      %p85 = scmp.ne.s32.totalorder %s77, %s79
      %p86 = scmp.eq.s32.totalorder %s27, 1
      %p87 = por %p85, %p86
      %p88 = scmp.ne.s32.totalorder %s79, %s80
      %p89 = scmp.eq.s32.totalorder %s27, 0
      %p90 = por %p88, %p89
      %p91 = scmp.ne.s32.totalorder %s79, %s80
      %p92 = scmp.eq.s32.totalorder %s28, 1
      %p93 = por %p91, %p92
      %p95 = scmp.ne.s32.totalorder %s80, %s94
      %p96 = scmp.eq.s32.totalorder %s28, 0
      %p97 = por %p95, %p96
      %s99 = sadd.s32 %s98, 1
      %p102 = scmp.eq.s32.totalorder %s22, 1
      %p103 = scmp.ne.s32.totalorder %s98, %s100
      %p104 = scmp.eq.s32.totalorder %s22, 0
      %p105 = por %p103, %p104
      %p106 = scmp.ne.s32.totalorder %s98, %s100
      %p107 = scmp.eq.s32.totalorder %s27, 1
      %p108 = por %p106, %p107
      %p109 = scmp.ne.s32.totalorder %s100, %s101
      %p110 = scmp.eq.s32.totalorder %s27, 0
      %p111 = por %p109, %p110
      %p112 = scmp.ne.s32.totalorder %s100, %s101
      %p113 = scmp.eq.s32.totalorder %s28, 1
      %p114 = por %p112, %p113
      %p116 = scmp.ne.s32.totalorder %s101, %s115
      %p117 = scmp.eq.s32.totalorder %s28, 0
      %p118 = por %p116, %p117
      %s120 = sadd.s32 %s119, 1
      %p123 = scmp.eq.s32.totalorder %s22, 1
      %p124 = scmp.ne.s32.totalorder %s119, %s121
      %p125 = scmp.eq.s32.totalorder %s22, 0
      %p126 = por %p124, %p125
      %p127 = scmp.ne.s32.totalorder %s119, %s121
      %p128 = scmp.eq.s32.totalorder %s27, 1
      %p129 = por %p127, %p128
      %p130 = scmp.ne.s32.totalorder %s121, %s122
      %p131 = scmp.eq.s32.totalorder %s27, 0
      %p132 = por %p130, %p131
      %p133 = scmp.ne.s32.totalorder %s121, %s122
      %p134 = scmp.eq.s32.totalorder %s28, 1
      %p135 = por %p133, %p134
      %p137 = scmp.ne.s32.totalorder %s122, %s136
      %p138 = scmp.eq.s32.totalorder %s28, 0
      %p139 = por %p137, %p138
      %s141 = sadd.s32 %s140, 1
      %p144 = scmp.eq.s32.totalorder %s22, 1
      %p145 = scmp.ne.s32.totalorder %s140, %s142
      %p146 = scmp.eq.s32.totalorder %s22, 0
      %p147 = por %p145, %p146
      %p148 = scmp.ne.s32.totalorder %s140, %s142
      %p149 = scmp.eq.s32.totalorder %s27, 1
      %p150 = por %p148, %p149
      %p151 = scmp.ne.s32.totalorder %s142, %s143
      %p152 = scmp.eq.s32.totalorder %s27, 0
      %p153 = por %p151, %p152
      %p154 = scmp.ne.s32.totalorder %s142, %s143
      %p155 = scmp.eq.s32.totalorder %s28, 1
      %p156 = por %p154, %p155
      %p158 = scmp.ne.s32.totalorder %s143, %s157
      %p159 = scmp.eq.s32.totalorder %s28, 0
      %p160 = por %p158, %p159
      %s162 = sadd.s32 %s161, 1
      %p165 = scmp.eq.s32.totalorder %s22, 1
      %p166 = scmp.ne.s32.totalorder %s161, %s163
      %p167 = scmp.eq.s32.totalorder %s22, 0
      %p168 = por %p166, %p167
      %p169 = scmp.ne.s32.totalorder %s161, %s163
      %p170 = scmp.eq.s32.totalorder %s27, 1
      %p171 = por %p169, %p170
      %p172 = scmp.ne.s32.totalorder %s163, %s164
      %p173 = scmp.eq.s32.totalorder %s27, 0
      %p174 = por %p172, %p173
      %p175 = scmp.ne.s32.totalorder %s163, %s164
      %p176 = scmp.eq.s32.totalorder %s28, 1
      %p177 = por %p175, %p176
      %p179 = scmp.ne.s32.totalorder %s164, %s178
      %p180 = scmp.eq.s32.totalorder %s28, 0
      %p181 = por %p179, %p180
      %s182 = ssub.s32 %s22, %s29
      %p183 = scmp.eq.s32.totalorder %s182, 0
      %s185 = sadd.s32 %s184, 1
      %s186 = scalar_select %p183, %s184, %s185
      %p189 = pneg %p183
      %p190 = scmp.eq.s32.totalorder %s22, 1
      %p191 = por %p189, %p190
      %p192 = scmp.ne.s32.totalorder %s184, %s187
      %p193 = scmp.eq.s32.totalorder %s22, 0
      %p194 = por %p192, %p193
      %p195 = scmp.ne.s32.totalorder %s184, %s187
      %p196 = scmp.eq.s32.totalorder %s27, 1
      %p197 = por %p195, %p196
      %p198 = scmp.ne.s32.totalorder %s187, %s188
      %p199 = scmp.eq.s32.totalorder %s27, 0
      %p200 = por %p198, %p199
      %p201 = scmp.ne.s32.totalorder %s187, %s188
      %p202 = scmp.eq.s32.totalorder %s28, 1
      %p203 = por %p201, %p202
      %p205 = scmp.ne.s32.totalorder %s188, %s204
      %p206 = scmp.eq.s32.totalorder %s28, 0
      %p207 = por %p205, %p206
      %p208 = scmp.le.s32.totalorder 1, %s22
      %p209 = scmp.lt.s32.totalorder %s22, 3
      %p210 = pnand %p208, %p209
      %p211 = pneg %p210
      // Predicated region
      $region9: #{tpu_custom_call.1} parent=5 // pred_check
        _
      $region10: #{tpu_custom_call.1} parent=5 // pred_check_branch
        %213 = sbr.rel (%p210) target = $region12
      $region11: #{tpu_custom_call.1} parent=5 // pred_region
        %s214 = ssub.s32 %s22, 1
        // Predicated region
        $region13: #{tpu_custom_call.1} parent=11 // pred_check
          %p215 = pneg %p69
        $region14: #{tpu_custom_call.1} parent=11 // pred_check_branch
          %217 = sbr.rel (%p215) target = $region16
        $region15: #{tpu_custom_call.1} parent=11 // pred_region
          %s219 = ssub.s32 8192, 8192
          %220 = vsyncadd [#allocation8], %s219
          %s221 = sshll.u32 [#allocation7], 4
          %s222 = int_to_ptr.vmem [resolvable:$true] %s221
          %227 = dma.hbm_to_vmem [thread:$0]  %s1, 8192, %s222, [#allocation8], 512, 512, 32
        $region16: #{tpu_custom_call.1} parent=11 // pred_fallthru
          _
        // Predicated region
        $region17: #{tpu_custom_call.1} parent=11 // pred_check
          %p228 = pneg %p90
        $region18: #{tpu_custom_call.1} parent=11 // pred_check_branch
          %230 = sbr.rel (%p228) target = $region20
        $region19: #{tpu_custom_call.1} parent=11 // pred_region
          %s232 = ssub.s32 128, 128
          %233 = vsyncadd [#allocation8], %s232
          %s235 = sshll.u32 [#allocation9], 4
          %s236 = int_to_ptr.vmem [resolvable:$true] %s235
          %238 = dma.hbm_to_vmem [thread:$0]  %s2, 128, %s236, [#allocation8]
        $region20: #{tpu_custom_call.1} parent=11 // pred_fallthru
          _
        // Predicated region
        $region21: #{tpu_custom_call.1} parent=11 // pred_check
          %p239 = pneg %p111
        $region22: #{tpu_custom_call.1} parent=11 // pred_check_branch
          %241 = sbr.rel (%p239) target = $region24
        $region23: #{tpu_custom_call.1} parent=11 // pred_region
          %s243 = ssub.s32 8192, 8192
          %244 = vsyncadd [#allocation11], %s243
          %s245 = sshll.u32 [#allocation10], 4
          %s246 = int_to_ptr.vmem [resolvable:$true] %s245
          %251 = dma.hbm_to_vmem [thread:$0]  %s3, 8192, %s246, [#allocation11], 64, 64, 4
        $region24: #{tpu_custom_call.1} parent=11 // pred_fallthru
          _
        // Predicated region
        $region25: #{tpu_custom_call.1} parent=11 // pred_check
          %p252 = pneg %p132
        $region26: #{tpu_custom_call.1} parent=11 // pred_check_branch
          %254 = sbr.rel (%p252) target = $region28
        $region27: #{tpu_custom_call.1} parent=11 // pred_region
          _
        $region28: #{tpu_custom_call.1} parent=11 // pred_fallthru
          _
        // Predicated region
        $region29: #{tpu_custom_call.1} parent=11 // pred_check
          %p255 = pneg %p153
        $region30: #{tpu_custom_call.1} parent=11 // pred_check_branch
          %257 = sbr.rel (%p255) target = $region32
        $region31: #{tpu_custom_call.1} parent=11 // pred_region
          _
        $region32: #{tpu_custom_call.1} parent=11 // pred_fallthru
          _
        // Predicated region
        $region33: #{tpu_custom_call.1} parent=11 // pred_check
          %p258 = pneg %p174
        $region34: #{tpu_custom_call.1} parent=11 // pred_check_branch
          %260 = sbr.rel (%p258) target = $region36
        $region35: #{tpu_custom_call.1} parent=11 // pred_region
          _
        $region36: #{tpu_custom_call.1} parent=11 // pred_fallthru
          _
      $region12: #{tpu_custom_call.1} parent=5 // pred_fallthru
        _
      %p261 = scmp.lt.s32.totalorder %s22, 2
      // Predicated region
      $region37: #{tpu_custom_call.1} parent=5 // pred_check
        %p262 = pneg %p261
      $region38: #{tpu_custom_call.1} parent=5 // pred_check_branch
        %264 = sbr.rel (%p262) target = $region40
      $region39: #{tpu_custom_call.1} parent=5 // pred_region
        // Predicated region
        $region41: #{tpu_custom_call.1} parent=39 // pred_check
          %p265 = pneg %p42
        $region42: #{tpu_custom_call.1} parent=39 // pred_check_branch
          %267 = sbr.rel (%p265) target = $region44
        $region43: #{tpu_custom_call.1} parent=39 // pred_region
          %s268 = sand.u32 %s32, 1
          %s269 = scalar_lea.sflag [#allocation5], %s268
          %s270 = sand.u32 %s32, 1
          %s271 = smul.addr %s270, 256
          %s272 = scalar_lea.vmem [#allocation4], %s271
          %s273 = smul.u32 32, %s22
          %s274 = ssub.s32 38, %s273
          %p275 = scmp.lt.s32.totalorder %s274, 32
          %s276 = scalar_select %p275, %s274, 32
          %s277 = smul.u32 128, %s276
          %s279 = ssub.s32 4096, %s277
          %280 = vsyncadd %s269, %s279
          %p281 = scmp.ne.s32.totalorder 0, %s277
          %s282 = smul.addr %s273, 128
          %s283 = scalar_lea.hbm %s0, %s282
          %s284 = smul.u32 8, %s276
          %s285 = sshll.u32 %s272, 4
          %s286 = int_to_ptr.vmem [resolvable:$true] %s285
          %s287 = sshll.u32 %s284, 4
          %291 = dma.hbm_to_vmem [thread:$0]  (%p281), %s283, %s287, %s286, %s269, 128, 128, 8
        $region44: #{tpu_custom_call.1} parent=39 // pred_fallthru
          _
      $region40: #{tpu_custom_call.1} parent=5 // pred_fallthru
        _
      %p292 = scmp.le.s32.totalorder 1, %s22
      %p293 = scmp.lt.s32.totalorder %s22, 3
      %p294 = pnand %p292, %p293
      %p295 = pneg %p294
      // Predicated region
      $region45: #{tpu_custom_call.1} parent=5 // pred_check
        _
      $region46: #{tpu_custom_call.1} parent=5 // pred_check_branch
        %297 = sbr.rel (%p294) target = $region48
      $region47: #{tpu_custom_call.1} parent=5 // pred_region
        %s298 = ssub.s32 %s22, 1
        %s299 = sand.u32 %s35, 1
        %s300 = scalar_lea.sflag [#allocation5], %s299
        %s301 = sand.u32 %s35, 1
        %s302 = smul.addr %s301, 256
        %s303 = scalar_lea.vmem [#allocation4], %s302
        // Predicated region
        $region49: #{tpu_custom_call.1} parent=47 // pred_check
          %p304 = pneg %p48
        $region50: #{tpu_custom_call.1} parent=47 // pred_check_branch
          %306 = sbr.rel (%p304) target = $region52
        $region51: #{tpu_custom_call.1} parent=47 // pred_region
          %307 = dma.done %s300, 4096
        $region52: #{tpu_custom_call.1} parent=47 // pred_fallthru
          _
        // Predicated region
        $region53: #{tpu_custom_call.1} parent=47 // pred_check
          %p308 = pneg %p69
        $region54: #{tpu_custom_call.1} parent=47 // pred_check_branch
          %310 = sbr.rel (%p308) target = $region56
        $region55: #{tpu_custom_call.1} parent=47 // pred_region
          %311 = dma.done [#allocation8], 8192
        $region56: #{tpu_custom_call.1} parent=47 // pred_fallthru
          _
        // Predicated region
        $region57: #{tpu_custom_call.1} parent=47 // pred_check
          %p312 = pneg %p90
        $region58: #{tpu_custom_call.1} parent=47 // pred_check_branch
          %314 = sbr.rel (%p312) target = $region60
        $region59: #{tpu_custom_call.1} parent=47 // pred_region
          %315 = dma.done [#allocation8], 128
        $region60: #{tpu_custom_call.1} parent=47 // pred_fallthru
          _
        // Predicated region
        $region61: #{tpu_custom_call.1} parent=47 // pred_check
          %p316 = pneg %p111
        $region62: #{tpu_custom_call.1} parent=47 // pred_check_branch
          %318 = sbr.rel (%p316) target = $region64
        $region63: #{tpu_custom_call.1} parent=47 // pred_region
          %319 = dma.done [#allocation11], 8192
        $region64: #{tpu_custom_call.1} parent=47 // pred_fallthru
          _
        %s320 = sand.u32 %s35, 1
        %s321 = scalar_lea.sflag [#allocation5], %s320
        %s322 = sand.u32 %s35, 1
        %s323 = smul.addr %s322, 256
        %s324 = scalar_lea.vmem [#allocation4], %s323
        %p325 = pneg %p48
        %p326 = pneg %p45
        %p327 = pneg %p69
        %p328 = pneg %p66
        %p329 = pneg %p90
        %p330 = pneg %p87
        %p331 = pneg %p111
        %p332 = pneg %p108
        %p333 = pneg %p132
        %p334 = pneg %p129
        %p335 = pneg %p153
        %p336 = pneg %p150
        %p337 = pneg %p174
        %p338 = pneg %p171
        %p339 = pneg %p200
        %p340 = pneg %p197
        %s341 = sand.u32 %s187, 1
        %s342 = scalar_lea.sflag [#allocation6], %s341
        %s343 = sand.u32 %s187, 1
        %s344 = smul.addr %s343, 2
        %s345 = scalar_lea.vmem [#allocation12], %s344
        %s346 = smul.u32 32, %s27
        %s347 = ssub.s32 38, %s346
        %p348 = scmp.lt.s32.totalorder %s347, 32
        %s349 = scalar_select %p348, %s347, 32
        %s350 = smul.u32 128, %s349
        %s351 = smul.u32 2, %s27
        %v353 = vld [vmem:[%s303] sm:$0xff]
        %v354 = vld [vmem:[%s303 + $0x8] sm:$0xff]
        %v355 = vld [vmem:[%s303 + $0x10] sm:$0xff]
        %v356 = vld [vmem:[%s303 + $0x18] sm:$0xff]
        %v357 = vld [vmem:[%s303 + $0x20] sm:$0xff]
        %v358 = vld [vmem:[%s303 + $0x28] sm:$0xff]
        %v359 = vld [vmem:[%s303 + $0x30] sm:$0xff]
        %v360 = vld [vmem:[%s303 + $0x38] sm:$0xff]
        %v361 = vld [vmem:[%s303 + $0x40] sm:$0xff]
        %v362 = vld [vmem:[%s303 + $0x48] sm:$0xff]
        %v363 = vld [vmem:[%s303 + $0x50] sm:$0xff]
        %v364 = vld [vmem:[%s303 + $0x58] sm:$0xff]
        %v365 = vld [vmem:[%s303 + $0x60] sm:$0xff]
        %v366 = vld [vmem:[%s303 + $0x68] sm:$0xff]
        %v367 = vld [vmem:[%s303 + $0x70] sm:$0xff]
        %v368 = vld [vmem:[%s303 + $0x78] sm:$0xff]
        %v369 = vld [vmem:[%s303 + $0x80] sm:$0xff]
        %v370 = vld [vmem:[%s303 + $0x88] sm:$0xff]
        %v371 = vld [vmem:[%s303 + $0x90] sm:$0xff]
        %v372 = vld [vmem:[%s303 + $0x98] sm:$0xff]
        %v373 = vld [vmem:[%s303 + $0xa0] sm:$0xff]
        %v374 = vld [vmem:[%s303 + $0xa8] sm:$0xff]
        %v375 = vld [vmem:[%s303 + $0xb0] sm:$0xff]
        %v376 = vld [vmem:[%s303 + $0xb8] sm:$0xff]
        %v377 = vld [vmem:[%s303 + $0xc0] sm:$0xff]
        %v378 = vld [vmem:[%s303 + $0xc8] sm:$0xff]
        %v379 = vld [vmem:[%s303 + $0xd0] sm:$0xff]
        %v380 = vld [vmem:[%s303 + $0xd8] sm:$0xff]
        %v381 = vld [vmem:[%s303 + $0xe0] sm:$0xff]
        %v382 = vld [vmem:[%s303 + $0xe8] sm:$0xff]
        %v383 = vld [vmem:[%s303 + $0xf0] sm:$0xff]
        %v384 = vld [vmem:[%s303 + $0xf8] sm:$0xff]
        %v385 = vpack.c.bf16 %v354, %v353
        %v386 = vpack.c.bf16 %v356, %v355
        %v387 = vpack.c.bf16 %v358, %v357
        %v388 = vpack.c.bf16 %v360, %v359
        %v389 = vpack.c.bf16 %v362, %v361
        %v390 = vpack.c.bf16 %v364, %v363
        %v391 = vpack.c.bf16 %v366, %v365
        %v392 = vpack.c.bf16 %v368, %v367
        %v393 = vpack.c.bf16 %v370, %v369
        %v394 = vpack.c.bf16 %v372, %v371
        %v395 = vpack.c.bf16 %v374, %v373
        %v396 = vpack.c.bf16 %v376, %v375
        %v397 = vpack.c.bf16 %v378, %v377
        %v398 = vpack.c.bf16 %v380, %v379
        %v399 = vpack.c.bf16 %v382, %v381
        %v400 = vpack.c.bf16 %v384, %v383
        %v401 = vld [vmem:[#allocation7] sm:$0xff]
        %v402 = vld [vmem:[#allocation7 + $0x20] sm:$0xff]
        %v403 = vld [vmem:[#allocation7 + $0x40] sm:$0xff]
        %v404 = vld [vmem:[#allocation7 + $0x60] sm:$0xff]
        %v405 = vld [vmem:[#allocation7 + $0x80] sm:$0xff]
        %v406 = vld [vmem:[#allocation7 + $0xa0] sm:$0xff]
        %v407 = vld [vmem:[#allocation7 + $0xc0] sm:$0xff]
        %v408 = vld [vmem:[#allocation7 + $0xe0] sm:$0xff]
        %v409 = vld [vmem:[#allocation7 + $0x100] sm:$0xff]
        %v410 = vld [vmem:[#allocation7 + $0x120] sm:$0xff]
        %v411 = vld [vmem:[#allocation7 + $0x140] sm:$0xff]
        %v412 = vld [vmem:[#allocation7 + $0x160] sm:$0xff]
        %v413 = vld [vmem:[#allocation7 + $0x180] sm:$0xff]
        %v414 = vld [vmem:[#allocation7 + $0x1a0] sm:$0xff]
        %v415 = vld [vmem:[#allocation7 + $0x1c0] sm:$0xff]
        %v416 = vld [vmem:[#allocation7 + $0x1e0] sm:$0xff]
        %v417 = vld [vmem:[#allocation9] sm:$0x3]
        %v419 = vlaneseq
        %v420 = vshrl.u32 %v419, 7
        %v421 = vsub.s32 0, %v420
        %v422 = vrot.slane %v417, %v421
        %v423 = vlaneseq
        %v424 = vshrl.u32 %v423, 7
        %v425 = vsub.s32 1, %v424
        %v426 = vrot.slane %v417, %v425
        %v445 = vunpack.c.l.b16 %v401
        %v446 = vunpack.c.h.b16 %v401
        %v447 = vunpack.c.l.b16 %v402
        %v448 = vunpack.c.h.b16 %v402
        %v449 = vunpack.c.l.b16 %v403
        %v450 = vunpack.c.h.b16 %v403
        %v451 = vunpack.c.l.b16 %v404
        %v452 = vunpack.c.h.b16 %v404
        %v453 = vunpack.c.l.b16 %v405
        %v454 = vunpack.c.h.b16 %v405
        %v455 = vunpack.c.l.b16 %v406
        %v456 = vunpack.c.h.b16 %v406
        %v457 = vunpack.c.l.b16 %v407
        %v458 = vunpack.c.h.b16 %v407
        %v459 = vunpack.c.l.b16 %v408
        %v460 = vunpack.c.h.b16 %v408
        %v461 = vunpack.c.l.b16 %v409
        %v462 = vunpack.c.h.b16 %v409
        %v463 = vunpack.c.l.b16 %v410
        %v464 = vunpack.c.h.b16 %v410
        %v465 = vunpack.c.l.b16 %v411
        %v466 = vunpack.c.h.b16 %v411
        %v467 = vunpack.c.l.b16 %v412
        %v468 = vunpack.c.h.b16 %v412
        %v469 = vunpack.c.l.b16 %v413
        %v470 = vunpack.c.h.b16 %v413
        %v471 = vunpack.c.l.b16 %v414
        %v472 = vunpack.c.h.b16 %v414
        %v473 = vunpack.c.l.b16 %v415
        %v474 = vunpack.c.h.b16 %v415
        %v475 = vunpack.c.l.b16 %v416
        %v476 = vunpack.c.h.b16 %v416
        %v477 = vpack.c.b16 %v447, %v445
        %v478 = vpack.c.b16 %v448, %v446
        %v479 = vpack.c.b16 %v451, %v449
        %v480 = vpack.c.b16 %v452, %v450
        %v481 = vpack.c.b16 %v455, %v453
        %v482 = vpack.c.b16 %v456, %v454
        %v483 = vpack.c.b16 %v459, %v457
        %v484 = vpack.c.b16 %v460, %v458
        %v485 = vpack.c.b16 %v463, %v461
        %v486 = vpack.c.b16 %v464, %v462
        %v487 = vpack.c.b16 %v467, %v465
        %v488 = vpack.c.b16 %v468, %v466
        %v489 = vpack.c.b16 %v471, %v469
        %v490 = vpack.c.b16 %v472, %v470
        %v491 = vpack.c.b16 %v475, %v473
        %v492 = vpack.c.b16 %v476, %v474
        %509 = vmatprep.subr.bf16.mxu0 %v492
        %510 = vmatpush1.bf16.msra.mxu0 %v491
        %511 = vmatprep.subr.bf16.mxu0 %v490
        %512 = vmatpush1.bf16.msra.mxu0 %v489
        %513 = vmatprep.subr.bf16.mxu0 %v488
        %514 = vmatpush1.bf16.msra.mxu0 %v487
        %515 = vmatprep.subr.bf16.mxu0 %v486
        %516 = vmatpush1.bf16.msra.mxu0 %v485
        %517 = vmatprep.subr.bf16.mxu0 %v484
        %518 = vmatpush1.bf16.msra.mxu0 %v483
        %519 = vmatprep.subr.bf16.mxu0 %v482
        %520 = vmatpush1.bf16.msra.mxu0 %v481
        %521 = vmatprep.subr.bf16.mxu0 %v480
        %522 = vmatpush1.bf16.msra.mxu0 %v479
        %523 = vmatprep.subr.bf16.mxu0 %v478
        %524 = vmatpush1.bf16.msra.mxu0 %v477
        %525 = vmatprep.subr.bf16.mxu0 0
        %526 = vmatpush2.bf16.msra.mxu0 0
        %527 = vmatprep.subr.bf16.mxu0 0
        %528 = vmatpush2.bf16.msra.mxu0 0
        %529 = vmatprep.subr.bf16.mxu0 0
        %530 = vmatpush2.bf16.msra.mxu0 0
        %531 = vmatprep.subr.bf16.mxu0 0
        %532 = vmatpush2.bf16.msra.mxu0 0
        %533 = vmatprep.subr.bf16.mxu0 0
        %534 = vmatpush2.bf16.msra.mxu0 0
        %535 = vmatprep.subr.bf16.mxu0 0
        %536 = vmatpush2.bf16.msra.mxu0 0
        %537 = vmatprep.subr.bf16.mxu0 0
        %538 = vmatpush2.bf16.msra.mxu0 0
        %539 = vmatprep.subr.bf16.mxu0 0
        %540 = vmatpush2.bf16.msra.mxu0 0
        %541 = vmatprep.mubr.bf16.mxu0 0
        %542 = vmatmul.mubr.bf16.gmra.mxu0 %v385
        %v543 = vpop.f32.mrf.mxu0
        %v544 = vadd.f32 %v422, %v543
        %v545 = vpop.f32.mrf.mxu0
        %v546 = vadd.f32 %v426, %v545
        %v547 = vpop.f32.mrf.mxu0
        %v548 = vadd.f32 %v422, %v547
        %v549 = vpop.f32.mrf.mxu0
        %v550 = vadd.f32 %v426, %v549
        %551 = vmatprep.mubr.bf16.mxu0 0
        %552 = vmatmul.mubr.bf16.gmra.mxu0 %v386
        %v553 = vpop.f32.mrf.mxu0
        %v554 = vadd.f32 %v422, %v553
        %v555 = vpop.f32.mrf.mxu0
        %v556 = vadd.f32 %v426, %v555
        %v557 = vpop.f32.mrf.mxu0
        %v558 = vadd.f32 %v422, %v557
        %v559 = vpop.f32.mrf.mxu0
        %v560 = vadd.f32 %v426, %v559
        %561 = vmatprep.mubr.bf16.mxu0 0
        %562 = vmatmul.mubr.bf16.gmra.mxu0 %v387
        %v563 = vpop.f32.mrf.mxu0
        %v564 = vadd.f32 %v422, %v563
        %v565 = vpop.f32.mrf.mxu0
        %v566 = vadd.f32 %v426, %v565
        %v567 = vpop.f32.mrf.mxu0
        %v568 = vadd.f32 %v422, %v567
        %v569 = vpop.f32.mrf.mxu0
        %v570 = vadd.f32 %v426, %v569
        %571 = vmatprep.mubr.bf16.mxu0 0
        %572 = vmatmul.mubr.bf16.gmra.mxu0 %v388
        %v573 = vpop.f32.mrf.mxu0
        %v574 = vadd.f32 %v422, %v573
        %v575 = vpop.f32.mrf.mxu0
        %v576 = vadd.f32 %v426, %v575
        %v577 = vpop.f32.mrf.mxu0
        %v578 = vadd.f32 %v422, %v577
        %v579 = vpop.f32.mrf.mxu0
        %v580 = vadd.f32 %v426, %v579
        %581 = vmatprep.mubr.bf16.mxu0 0
        %582 = vmatmul.mubr.bf16.gmra.mxu0 %v389
        %v583 = vpop.f32.mrf.mxu0
        %v584 = vadd.f32 %v422, %v583
        %v585 = vpop.f32.mrf.mxu0
        %v586 = vadd.f32 %v426, %v585
        %v587 = vpop.f32.mrf.mxu0
        %v588 = vadd.f32 %v422, %v587
        %v589 = vpop.f32.mrf.mxu0
        %v590 = vadd.f32 %v426, %v589
        %591 = vmatprep.mubr.bf16.mxu0 0
        %592 = vmatmul.mubr.bf16.gmra.mxu0 %v390
        %v593 = vpop.f32.mrf.mxu0
        %v594 = vadd.f32 %v422, %v593
        %v595 = vpop.f32.mrf.mxu0
        %v596 = vadd.f32 %v426, %v595
        %v597 = vpop.f32.mrf.mxu0
        %v598 = vadd.f32 %v422, %v597
        %v599 = vpop.f32.mrf.mxu0
        %v600 = vadd.f32 %v426, %v599
        %601 = vmatprep.mubr.bf16.mxu0 0
        %602 = vmatmul.mubr.bf16.gmra.mxu0 %v391
        %v603 = vpop.f32.mrf.mxu0
        %v604 = vadd.f32 %v422, %v603
        %v605 = vpop.f32.mrf.mxu0
        %v606 = vadd.f32 %v426, %v605
        %v607 = vpop.f32.mrf.mxu0
        %v608 = vadd.f32 %v422, %v607
        %v609 = vpop.f32.mrf.mxu0
        %v610 = vadd.f32 %v426, %v609
        %611 = vmatprep.mubr.bf16.mxu0 0
        %612 = vmatmul.mubr.bf16.gmra.mxu0 %v392
        %v613 = vpop.f32.mrf.mxu0
        %v614 = vadd.f32 %v422, %v613
        %v615 = vpop.f32.mrf.mxu0
        %v616 = vadd.f32 %v426, %v615
        %v617 = vpop.f32.mrf.mxu0
        %v618 = vadd.f32 %v422, %v617
        %v619 = vpop.f32.mrf.mxu0
        %v620 = vadd.f32 %v426, %v619
        %621 = vmatprep.mubr.bf16.mxu0 0
        %622 = vmatmul.mubr.bf16.gmra.mxu0 %v393
        %v623 = vpop.f32.mrf.mxu0
        %v624 = vadd.f32 %v422, %v623
        %v625 = vpop.f32.mrf.mxu0
        %v626 = vadd.f32 %v426, %v625
        %v627 = vpop.f32.mrf.mxu0
        %v628 = vadd.f32 %v422, %v627
        %v629 = vpop.f32.mrf.mxu0
        %v630 = vadd.f32 %v426, %v629
        %631 = vmatprep.mubr.bf16.mxu0 0
        %632 = vmatmul.mubr.bf16.gmra.mxu0 %v394
        %v633 = vpop.f32.mrf.mxu0
        %v634 = vadd.f32 %v422, %v633
        %v635 = vpop.f32.mrf.mxu0
        %v636 = vadd.f32 %v426, %v635
        %v637 = vpop.f32.mrf.mxu0
        %v638 = vadd.f32 %v422, %v637
        %v639 = vpop.f32.mrf.mxu0
        %v640 = vadd.f32 %v426, %v639
        %641 = vmatprep.mubr.bf16.mxu0 0
        %642 = vmatmul.mubr.bf16.gmra.mxu0 %v395
        %v643 = vpop.f32.mrf.mxu0
        %v644 = vadd.f32 %v422, %v643
        %v645 = vpop.f32.mrf.mxu0
        %v646 = vadd.f32 %v426, %v645
        %v647 = vpop.f32.mrf.mxu0
        %v648 = vadd.f32 %v422, %v647
        %v649 = vpop.f32.mrf.mxu0
        %v650 = vadd.f32 %v426, %v649
        %651 = vmatprep.mubr.bf16.mxu0 0
        %652 = vmatmul.mubr.bf16.gmra.mxu0 %v396
        %v653 = vpop.f32.mrf.mxu0
        %v654 = vadd.f32 %v422, %v653
        %v655 = vpop.f32.mrf.mxu0
        %v656 = vadd.f32 %v426, %v655
        %v657 = vpop.f32.mrf.mxu0
        %v658 = vadd.f32 %v422, %v657
        %v659 = vpop.f32.mrf.mxu0
        %v660 = vadd.f32 %v426, %v659
        %661 = vmatprep.mubr.bf16.mxu0 0
        %662 = vmatmul.mubr.bf16.gmra.mxu0 %v397
        %v663 = vpop.f32.mrf.mxu0
        %v664 = vadd.f32 %v422, %v663
        %v665 = vpop.f32.mrf.mxu0
        %v666 = vadd.f32 %v426, %v665
        %v667 = vpop.f32.mrf.mxu0
        %v668 = vadd.f32 %v422, %v667
        %v669 = vpop.f32.mrf.mxu0
        %v670 = vadd.f32 %v426, %v669
        %671 = vmatprep.mubr.bf16.mxu0 0
        %672 = vmatmul.mubr.bf16.gmra.mxu0 %v398
        %v673 = vpop.f32.mrf.mxu0
        %v674 = vadd.f32 %v422, %v673
        %v675 = vpop.f32.mrf.mxu0
        %v676 = vadd.f32 %v426, %v675
        %v677 = vpop.f32.mrf.mxu0
        %v678 = vadd.f32 %v422, %v677
        %v679 = vpop.f32.mrf.mxu0
        %v680 = vadd.f32 %v426, %v679
        %681 = vmatprep.mubr.bf16.mxu0 0
        %682 = vmatmul.mubr.bf16.gmra.mxu0 %v399
        %v683 = vpop.f32.mrf.mxu0
        %v684 = vadd.f32 %v422, %v683
        %v685 = vpop.f32.mrf.mxu0
        %v686 = vadd.f32 %v426, %v685
        %v687 = vpop.f32.mrf.mxu0
        %v688 = vadd.f32 %v422, %v687
        %v689 = vpop.f32.mrf.mxu0
        %v690 = vadd.f32 %v426, %v689
        %691 = vmatprep.mubr.bf16.mxu0 0
        %692 = vmatmul.mubr.bf16.gmra.mxu0 %v400
        %v693 = vpop.f32.mrf.mxu0
        %v694 = vadd.f32 %v422, %v693
        %v695 = vpop.f32.mrf.mxu0
        %v696 = vadd.f32 %v426, %v695
        %v697 = vpop.f32.mrf.mxu0
        %v698 = vadd.f32 %v422, %v697
        %v699 = vpop.f32.mrf.mxu0
        %v700 = vadd.f32 %v426, %v699
        %701 = vdwg.mxu0
        %v702 = vmax.f32 %v544, 0.0
        %v703 = vmax.f32 %v546, 0.0
        %v704 = vmax.f32 %v548, 0.0
        %v705 = vmax.f32 %v550, 0.0
        %v706 = vmax.f32 %v554, 0.0
        %v707 = vmax.f32 %v556, 0.0
        %v708 = vmax.f32 %v558, 0.0
        %v709 = vmax.f32 %v560, 0.0
        %v710 = vmax.f32 %v564, 0.0
        %v711 = vmax.f32 %v566, 0.0
        %v712 = vmax.f32 %v568, 0.0
        %v713 = vmax.f32 %v570, 0.0
        %v714 = vmax.f32 %v574, 0.0
        %v715 = vmax.f32 %v576, 0.0
        %v716 = vmax.f32 %v578, 0.0
        %v717 = vmax.f32 %v580, 0.0
        %v718 = vmax.f32 %v584, 0.0
        %v719 = vmax.f32 %v586, 0.0
        %v720 = vmax.f32 %v588, 0.0
        %v721 = vmax.f32 %v590, 0.0
        %v722 = vmax.f32 %v594, 0.0
        %v723 = vmax.f32 %v596, 0.0
        %v724 = vmax.f32 %v598, 0.0
        %v725 = vmax.f32 %v600, 0.0
        %v726 = vmax.f32 %v604, 0.0
        %v727 = vmax.f32 %v606, 0.0
        %v728 = vmax.f32 %v608, 0.0
        %v729 = vmax.f32 %v610, 0.0
        %v730 = vmax.f32 %v614, 0.0
        %v731 = vmax.f32 %v616, 0.0
        %v732 = vmax.f32 %v618, 0.0
        %v733 = vmax.f32 %v620, 0.0
        %v734 = vmax.f32 %v624, 0.0
        %v735 = vmax.f32 %v626, 0.0
        %v736 = vmax.f32 %v628, 0.0
        %v737 = vmax.f32 %v630, 0.0
        %v738 = vmax.f32 %v634, 0.0
        %v739 = vmax.f32 %v636, 0.0
        %v740 = vmax.f32 %v638, 0.0
        %v741 = vmax.f32 %v640, 0.0
        %v742 = vmax.f32 %v644, 0.0
        %v743 = vmax.f32 %v646, 0.0
        %v744 = vmax.f32 %v648, 0.0
        %v745 = vmax.f32 %v650, 0.0
        %v746 = vmax.f32 %v654, 0.0
        %v747 = vmax.f32 %v656, 0.0
        %v748 = vmax.f32 %v658, 0.0
        %v749 = vmax.f32 %v660, 0.0
        %v750 = vmax.f32 %v664, 0.0
        %v751 = vmax.f32 %v666, 0.0
        %v752 = vmax.f32 %v668, 0.0
        %v753 = vmax.f32 %v670, 0.0
        %v754 = vmax.f32 %v674, 0.0
        %v755 = vmax.f32 %v676, 0.0
        %v756 = vmax.f32 %v678, 0.0
        %v757 = vmax.f32 %v680, 0.0
        %v758 = vmax.f32 %v684, 0.0
        %v759 = vmax.f32 %v686, 0.0
        %v760 = vmax.f32 %v688, 0.0
        %v761 = vmax.f32 %v690, 0.0
        %v762 = vmax.f32 %v694, 0.0
        %v763 = vmax.f32 %v696, 0.0
        %v764 = vmax.f32 %v698, 0.0
        %v765 = vmax.f32 %v700, 0.0
        %v766 = vpack.c.bf16 %v704, %v702
        %v767 = vpack.c.bf16 %v705, %v703
        %v768 = vpack.c.bf16 %v708, %v706
        %v769 = vpack.c.bf16 %v709, %v707
        %v770 = vpack.c.bf16 %v712, %v710
        %v771 = vpack.c.bf16 %v713, %v711
        %v772 = vpack.c.bf16 %v716, %v714
        %v773 = vpack.c.bf16 %v717, %v715
        %v774 = vpack.c.bf16 %v720, %v718
        %v775 = vpack.c.bf16 %v721, %v719
        %v776 = vpack.c.bf16 %v724, %v722
        %v777 = vpack.c.bf16 %v725, %v723
        %v778 = vpack.c.bf16 %v728, %v726
        %v779 = vpack.c.bf16 %v729, %v727
        %v780 = vpack.c.bf16 %v732, %v730
        %v781 = vpack.c.bf16 %v733, %v731
        %v782 = vpack.c.bf16 %v736, %v734
        %v783 = vpack.c.bf16 %v737, %v735
        %v784 = vpack.c.bf16 %v740, %v738
        %v785 = vpack.c.bf16 %v741, %v739
        %v786 = vpack.c.bf16 %v744, %v742
        %v787 = vpack.c.bf16 %v745, %v743
        %v788 = vpack.c.bf16 %v748, %v746
        %v789 = vpack.c.bf16 %v749, %v747
        %v790 = vpack.c.bf16 %v752, %v750
        %v791 = vpack.c.bf16 %v753, %v751
        %v792 = vpack.c.bf16 %v756, %v754
        %v793 = vpack.c.bf16 %v757, %v755
        %v794 = vpack.c.bf16 %v760, %v758
        %v795 = vpack.c.bf16 %v761, %v759
        %v796 = vpack.c.bf16 %v764, %v762
        %v797 = vpack.c.bf16 %v765, %v763
        %v830 = vunpack.c.l.b16 %v766
        %v831 = vunpack.c.l.b16 %v767
        %v832 = vunpack.c.h.b16 %v766
        %v833 = vunpack.c.h.b16 %v767
        %v834 = vunpack.c.l.b16 %v768
        %v835 = vunpack.c.l.b16 %v769
        %v836 = vunpack.c.h.b16 %v768
        %v837 = vunpack.c.h.b16 %v769
        %v838 = vunpack.c.l.b16 %v770
        %v839 = vunpack.c.l.b16 %v771
        %v840 = vunpack.c.h.b16 %v770
        %v841 = vunpack.c.h.b16 %v771
        %v842 = vunpack.c.l.b16 %v772
        %v843 = vunpack.c.l.b16 %v773
        %v844 = vunpack.c.h.b16 %v772
        %v845 = vunpack.c.h.b16 %v773
        %v846 = vunpack.c.l.b16 %v774
        %v847 = vunpack.c.l.b16 %v775
        %v848 = vunpack.c.h.b16 %v774
        %v849 = vunpack.c.h.b16 %v775
        %v850 = vunpack.c.l.b16 %v776
        %v851 = vunpack.c.l.b16 %v777
        %v852 = vunpack.c.h.b16 %v776
        %v853 = vunpack.c.h.b16 %v777
        %v854 = vunpack.c.l.b16 %v778
        %v855 = vunpack.c.l.b16 %v779
        %v856 = vunpack.c.h.b16 %v778
        %v857 = vunpack.c.h.b16 %v779
        %v858 = vunpack.c.l.b16 %v780
        %v859 = vunpack.c.l.b16 %v781
        %v860 = vunpack.c.h.b16 %v780
        %v861 = vunpack.c.h.b16 %v781
        %v862 = vunpack.c.l.b16 %v782
        %v863 = vunpack.c.l.b16 %v783
        %v864 = vunpack.c.h.b16 %v782
        %v865 = vunpack.c.h.b16 %v783
        %v866 = vunpack.c.l.b16 %v784
        %v867 = vunpack.c.l.b16 %v785
        %v868 = vunpack.c.h.b16 %v784
        %v869 = vunpack.c.h.b16 %v785
        %v870 = vunpack.c.l.b16 %v786
        %v871 = vunpack.c.l.b16 %v787
        %v872 = vunpack.c.h.b16 %v786
        %v873 = vunpack.c.h.b16 %v787
        %v874 = vunpack.c.l.b16 %v788
        %v875 = vunpack.c.l.b16 %v789
        %v876 = vunpack.c.h.b16 %v788
        %v877 = vunpack.c.h.b16 %v789
        %v878 = vunpack.c.l.b16 %v790
        %v879 = vunpack.c.l.b16 %v791
        %v880 = vunpack.c.h.b16 %v790
        %v881 = vunpack.c.h.b16 %v791
        %v882 = vunpack.c.l.b16 %v792
        %v883 = vunpack.c.l.b16 %v793
        %v884 = vunpack.c.h.b16 %v792
        %v885 = vunpack.c.h.b16 %v793
        %v886 = vunpack.c.l.b16 %v794
        %v887 = vunpack.c.l.b16 %v795
        %v888 = vunpack.c.h.b16 %v794
        %v889 = vunpack.c.h.b16 %v795
        %v890 = vunpack.c.l.b16 %v796
        %v891 = vunpack.c.l.b16 %v797
        %v892 = vunpack.c.h.b16 %v796
        %v893 = vunpack.c.h.b16 %v797
        %v894 = vpack.c.b16 %v831, %v830
        %v895 = vpack.c.b16 %v833, %v832
        %v896 = vpack.c.b16 %v835, %v834
        %v897 = vpack.c.b16 %v837, %v836
        %v898 = vpack.c.b16 %v839, %v838
        %v899 = vpack.c.b16 %v841, %v840
        %v900 = vpack.c.b16 %v843, %v842
        %v901 = vpack.c.b16 %v845, %v844
        %v902 = vpack.c.b16 %v847, %v846
        %v903 = vpack.c.b16 %v849, %v848
        %v904 = vpack.c.b16 %v851, %v850
        %v905 = vpack.c.b16 %v853, %v852
        %v906 = vpack.c.b16 %v855, %v854
        %v907 = vpack.c.b16 %v857, %v856
        %v908 = vpack.c.b16 %v859, %v858
        %v909 = vpack.c.b16 %v861, %v860
        %v910 = vpack.c.b16 %v863, %v862
        %v911 = vpack.c.b16 %v865, %v864
        %v912 = vpack.c.b16 %v867, %v866
        %v913 = vpack.c.b16 %v869, %v868
        %v914 = vpack.c.b16 %v871, %v870
        %v915 = vpack.c.b16 %v873, %v872
        %v916 = vpack.c.b16 %v875, %v874
        %v917 = vpack.c.b16 %v877, %v876
        %v918 = vpack.c.b16 %v879, %v878
        %v919 = vpack.c.b16 %v881, %v880
        %v920 = vpack.c.b16 %v883, %v882
        %v921 = vpack.c.b16 %v885, %v884
        %v922 = vpack.c.b16 %v887, %v886
        %v923 = vpack.c.b16 %v889, %v888
        %v924 = vpack.c.b16 %v891, %v890
        %v925 = vpack.c.b16 %v893, %v892
        %958 = vst [vmem:[#allocation2] sm:$0xff] %v894
        %959 = vst [vmem:[#allocation2 + $0x20] sm:$0xff] %v895
        %960 = vst [vmem:[#allocation2 + $0x40] sm:$0xff] %v896
        %961 = vst [vmem:[#allocation2 + $0x60] sm:$0xff] %v897
        %962 = vst [vmem:[#allocation2 + $0x80] sm:$0xff] %v898
        %963 = vst [vmem:[#allocation2 + $0xa0] sm:$0xff] %v899
        %964 = vst [vmem:[#allocation2 + $0xc0] sm:$0xff] %v900
        %965 = vst [vmem:[#allocation2 + $0xe0] sm:$0xff] %v901
        %966 = vst [vmem:[#allocation2 + $0x100] sm:$0xff] %v902
        %967 = vst [vmem:[#allocation2 + $0x120] sm:$0xff] %v903
        %968 = vst [vmem:[#allocation2 + $0x140] sm:$0xff] %v904
        %969 = vst [vmem:[#allocation2 + $0x160] sm:$0xff] %v905
        %970 = vst [vmem:[#allocation2 + $0x180] sm:$0xff] %v906
        %971 = vst [vmem:[#allocation2 + $0x1a0] sm:$0xff] %v907
        %972 = vst [vmem:[#allocation2 + $0x1c0] sm:$0xff] %v908
        %973 = vst [vmem:[#allocation2 + $0x1e0] sm:$0xff] %v909
        %974 = vst [vmem:[#allocation2 + $0x200] sm:$0xff] %v910
        %975 = vst [vmem:[#allocation2 + $0x220] sm:$0xff] %v911
        %976 = vst [vmem:[#allocation2 + $0x240] sm:$0xff] %v912
        %977 = vst [vmem:[#allocation2 + $0x260] sm:$0xff] %v913
        %978 = vst [vmem:[#allocation2 + $0x280] sm:$0xff] %v914
        %979 = vst [vmem:[#allocation2 + $0x2a0] sm:$0xff] %v915
        %980 = vst [vmem:[#allocation2 + $0x2c0] sm:$0xff] %v916
        %981 = vst [vmem:[#allocation2 + $0x2e0] sm:$0xff] %v917
        %982 = vst [vmem:[#allocation2 + $0x300] sm:$0xff] %v918
        %983 = vst [vmem:[#allocation2 + $0x320] sm:$0xff] %v919
        %984 = vst [vmem:[#allocation2 + $0x340] sm:$0xff] %v920
        %985 = vst [vmem:[#allocation2 + $0x360] sm:$0xff] %v921
        %986 = vst [vmem:[#allocation2 + $0x380] sm:$0xff] %v922
        %987 = vst [vmem:[#allocation2 + $0x3a0] sm:$0xff] %v923
        %988 = vst [vmem:[#allocation2 + $0x3c0] sm:$0xff] %v924
        %989 = vst [vmem:[#allocation2 + $0x3e0] sm:$0xff] %v925
        %v990 = vld [vmem:[#allocation7 + $0x8] sm:$0xff]
        %v991 = vld [vmem:[#allocation7 + $0x28] sm:$0xff]
        %v992 = vld [vmem:[#allocation7 + $0x48] sm:$0xff]
        %v993 = vld [vmem:[#allocation7 + $0x68] sm:$0xff]
        %v994 = vld [vmem:[#allocation7 + $0x88] sm:$0xff]
        %v995 = vld [vmem:[#allocation7 + $0xa8] sm:$0xff]
        %v996 = vld [vmem:[#allocation7 + $0xc8] sm:$0xff]
        %v997 = vld [vmem:[#allocation7 + $0xe8] sm:$0xff]
        %v998 = vld [vmem:[#allocation7 + $0x108] sm:$0xff]
        %v999 = vld [vmem:[#allocation7 + $0x128] sm:$0xff]
        %v1000 = vld [vmem:[#allocation7 + $0x148] sm:$0xff]
        %v1001 = vld [vmem:[#allocation7 + $0x168] sm:$0xff]
        %v1002 = vld [vmem:[#allocation7 + $0x188] sm:$0xff]
        %v1003 = vld [vmem:[#allocation7 + $0x1a8] sm:$0xff]
        %v1004 = vld [vmem:[#allocation7 + $0x1c8] sm:$0xff]
        %v1005 = vld [vmem:[#allocation7 + $0x1e8] sm:$0xff]
        %v1006 = vld [vmem:[#allocation9 + $0x2] sm:$0x3]
        %v1008 = vlaneseq
        %v1009 = vshrl.u32 %v1008, 7
        %v1010 = vsub.s32 0, %v1009
        %v1011 = vrot.slane %v1006, %v1010
        %v1012 = vlaneseq
        %v1013 = vshrl.u32 %v1012, 7
        %v1014 = vsub.s32 1, %v1013
        %v1015 = vrot.slane %v1006, %v1014
        %v1034 = vunpack.c.l.b16 %v990
        %v1035 = vunpack.c.h.b16 %v990
        %v1036 = vunpack.c.l.b16 %v991
        %v1037 = vunpack.c.h.b16 %v991
        %v1038 = vunpack.c.l.b16 %v992
        %v1039 = vunpack.c.h.b16 %v992
        %v1040 = vunpack.c.l.b16 %v993
        %v1041 = vunpack.c.h.b16 %v993
        %v1042 = vunpack.c.l.b16 %v994
        %v1043 = vunpack.c.h.b16 %v994
        %v1044 = vunpack.c.l.b16 %v995
        %v1045 = vunpack.c.h.b16 %v995
        %v1046 = vunpack.c.l.b16 %v996
        %v1047 = vunpack.c.h.b16 %v996
        %v1048 = vunpack.c.l.b16 %v997
        %v1049 = vunpack.c.h.b16 %v997
        %v1050 = vunpack.c.l.b16 %v998
        %v1051 = vunpack.c.h.b16 %v998
        %v1052 = vunpack.c.l.b16 %v999
        %v1053 = vunpack.c.h.b16 %v999
        %v1054 = vunpack.c.l.b16 %v1000
        %v1055 = vunpack.c.h.b16 %v1000
        %v1056 = vunpack.c.l.b16 %v1001
        %v1057 = vunpack.c.h.b16 %v1001
        %v1058 = vunpack.c.l.b16 %v1002
        %v1059 = vunpack.c.h.b16 %v1002
        %v1060 = vunpack.c.l.b16 %v1003
        %v1061 = vunpack.c.h.b16 %v1003
        %v1062 = vunpack.c.l.b16 %v1004
        %v1063 = vunpack.c.h.b16 %v1004
        %v1064 = vunpack.c.l.b16 %v1005
        %v1065 = vunpack.c.h.b16 %v1005
        %v1066 = vpack.c.b16 %v1036, %v1034
        %v1067 = vpack.c.b16 %v1037, %v1035
        %v1068 = vpack.c.b16 %v1040, %v1038
        %v1069 = vpack.c.b16 %v1041, %v1039
        %v1070 = vpack.c.b16 %v1044, %v1042
        %v1071 = vpack.c.b16 %v1045, %v1043
        %v1072 = vpack.c.b16 %v1048, %v1046
        %v1073 = vpack.c.b16 %v1049, %v1047
        %v1074 = vpack.c.b16 %v1052, %v1050
        %v1075 = vpack.c.b16 %v1053, %v1051
        %v1076 = vpack.c.b16 %v1056, %v1054
        %v1077 = vpack.c.b16 %v1057, %v1055
        %v1078 = vpack.c.b16 %v1060, %v1058
        %v1079 = vpack.c.b16 %v1061, %v1059
        %v1080 = vpack.c.b16 %v1064, %v1062
        %v1081 = vpack.c.b16 %v1065, %v1063
        %1098 = vmatprep.subr.bf16.mxu0 %v1081
        %1099 = vmatpush1.bf16.msra.mxu0 %v1080
        %1100 = vmatprep.subr.bf16.mxu0 %v1079
        %1101 = vmatpush1.bf16.msra.mxu0 %v1078
        %1102 = vmatprep.subr.bf16.mxu0 %v1077
        %1103 = vmatpush1.bf16.msra.mxu0 %v1076
        %1104 = vmatprep.subr.bf16.mxu0 %v1075
        %1105 = vmatpush1.bf16.msra.mxu0 %v1074
        %1106 = vmatprep.subr.bf16.mxu0 %v1073
        %1107 = vmatpush1.bf16.msra.mxu0 %v1072
        %1108 = vmatprep.subr.bf16.mxu0 %v1071
        %1109 = vmatpush1.bf16.msra.mxu0 %v1070
        %1110 = vmatprep.subr.bf16.mxu0 %v1069
        %1111 = vmatpush1.bf16.msra.mxu0 %v1068
        %1112 = vmatprep.subr.bf16.mxu0 %v1067
        %1113 = vmatpush1.bf16.msra.mxu0 %v1066
        %1114 = vmatprep.subr.bf16.mxu0 0
        %1115 = vmatpush2.bf16.msra.mxu0 0
        %1116 = vmatprep.subr.bf16.mxu0 0
        %1117 = vmatpush2.bf16.msra.mxu0 0
        %1118 = vmatprep.subr.bf16.mxu0 0
        %1119 = vmatpush2.bf16.msra.mxu0 0
        %1120 = vmatprep.subr.bf16.mxu0 0
        %1121 = vmatpush2.bf16.msra.mxu0 0
        %1122 = vmatprep.subr.bf16.mxu0 0
        %1123 = vmatpush2.bf16.msra.mxu0 0
        %1124 = vmatprep.subr.bf16.mxu0 0
        %1125 = vmatpush2.bf16.msra.mxu0 0
        %1126 = vmatprep.subr.bf16.mxu0 0
        %1127 = vmatpush2.bf16.msra.mxu0 0
        %1128 = vmatprep.subr.bf16.mxu0 0
        %1129 = vmatpush2.bf16.msra.mxu0 0
        %1130 = vmatprep.mubr.bf16.mxu0 0
        %1131 = vmatmul.mubr.bf16.gmra.mxu0 %v385
        %v1132 = vpop.f32.mrf.mxu0
        %v1133 = vadd.f32 %v1011, %v1132
        %v1134 = vpop.f32.mrf.mxu0
        %v1135 = vadd.f32 %v1015, %v1134
        %v1136 = vpop.f32.mrf.mxu0
        %v1137 = vadd.f32 %v1011, %v1136
        %v1138 = vpop.f32.mrf.mxu0
        %v1139 = vadd.f32 %v1015, %v1138
        %1140 = vmatprep.mubr.bf16.mxu0 0
        %1141 = vmatmul.mubr.bf16.gmra.mxu0 %v386
        %v1142 = vpop.f32.mrf.mxu0
        %v1143 = vadd.f32 %v1011, %v1142
        %v1144 = vpop.f32.mrf.mxu0
        %v1145 = vadd.f32 %v1015, %v1144
        %v1146 = vpop.f32.mrf.mxu0
        %v1147 = vadd.f32 %v1011, %v1146
        %v1148 = vpop.f32.mrf.mxu0
        %v1149 = vadd.f32 %v1015, %v1148
        %1150 = vmatprep.mubr.bf16.mxu0 0
        %1151 = vmatmul.mubr.bf16.gmra.mxu0 %v387
        %v1152 = vpop.f32.mrf.mxu0
        %v1153 = vadd.f32 %v1011, %v1152
        %v1154 = vpop.f32.mrf.mxu0
        %v1155 = vadd.f32 %v1015, %v1154
        %v1156 = vpop.f32.mrf.mxu0
        %v1157 = vadd.f32 %v1011, %v1156
        %v1158 = vpop.f32.mrf.mxu0
        %v1159 = vadd.f32 %v1015, %v1158
        %1160 = vmatprep.mubr.bf16.mxu0 0
        %1161 = vmatmul.mubr.bf16.gmra.mxu0 %v388
        %v1162 = vpop.f32.mrf.mxu0
        %v1163 = vadd.f32 %v1011, %v1162
        %v1164 = vpop.f32.mrf.mxu0
        %v1165 = vadd.f32 %v1015, %v1164
        %v1166 = vpop.f32.mrf.mxu0
        %v1167 = vadd.f32 %v1011, %v1166
        %v1168 = vpop.f32.mrf.mxu0
        %v1169 = vadd.f32 %v1015, %v1168
        %1170 = vmatprep.mubr.bf16.mxu0 0
        %1171 = vmatmul.mubr.bf16.gmra.mxu0 %v389
        %v1172 = vpop.f32.mrf.mxu0
        %v1173 = vadd.f32 %v1011, %v1172
        %v1174 = vpop.f32.mrf.mxu0
        %v1175 = vadd.f32 %v1015, %v1174
        %v1176 = vpop.f32.mrf.mxu0
        %v1177 = vadd.f32 %v1011, %v1176
        %v1178 = vpop.f32.mrf.mxu0
        %v1179 = vadd.f32 %v1015, %v1178
        %1180 = vmatprep.mubr.bf16.mxu0 0
        %1181 = vmatmul.mubr.bf16.gmra.mxu0 %v390
        %v1182 = vpop.f32.mrf.mxu0
        %v1183 = vadd.f32 %v1011, %v1182
        %v1184 = vpop.f32.mrf.mxu0
        %v1185 = vadd.f32 %v1015, %v1184
        %v1186 = vpop.f32.mrf.mxu0
        %v1187 = vadd.f32 %v1011, %v1186
        %v1188 = vpop.f32.mrf.mxu0
        %v1189 = vadd.f32 %v1015, %v1188
        %1190 = vmatprep.mubr.bf16.mxu0 0
        %1191 = vmatmul.mubr.bf16.gmra.mxu0 %v391
        %v1192 = vpop.f32.mrf.mxu0
        %v1193 = vadd.f32 %v1011, %v1192
        %v1194 = vpop.f32.mrf.mxu0
        %v1195 = vadd.f32 %v1015, %v1194
        %v1196 = vpop.f32.mrf.mxu0
        %v1197 = vadd.f32 %v1011, %v1196
        %v1198 = vpop.f32.mrf.mxu0
        %v1199 = vadd.f32 %v1015, %v1198
        %1200 = vmatprep.mubr.bf16.mxu0 0
        %1201 = vmatmul.mubr.bf16.gmra.mxu0 %v392
        %v1202 = vpop.f32.mrf.mxu0
        %v1203 = vadd.f32 %v1011, %v1202
        %v1204 = vpop.f32.mrf.mxu0
        %v1205 = vadd.f32 %v1015, %v1204
        %v1206 = vpop.f32.mrf.mxu0
        %v1207 = vadd.f32 %v1011, %v1206
        %v1208 = vpop.f32.mrf.mxu0
        %v1209 = vadd.f32 %v1015, %v1208
        %1210 = vmatprep.mubr.bf16.mxu0 0
        %1211 = vmatmul.mubr.bf16.gmra.mxu0 %v393
        %v1212 = vpop.f32.mrf.mxu0
        %v1213 = vadd.f32 %v1011, %v1212
        %v1214 = vpop.f32.mrf.mxu0
        %v1215 = vadd.f32 %v1015, %v1214
        %v1216 = vpop.f32.mrf.mxu0
        %v1217 = vadd.f32 %v1011, %v1216
        %v1218 = vpop.f32.mrf.mxu0
        %v1219 = vadd.f32 %v1015, %v1218
        %1220 = vmatprep.mubr.bf16.mxu0 0
        %1221 = vmatmul.mubr.bf16.gmra.mxu0 %v394
        %v1222 = vpop.f32.mrf.mxu0
        %v1223 = vadd.f32 %v1011, %v1222
        %v1224 = vpop.f32.mrf.mxu0
        %v1225 = vadd.f32 %v1015, %v1224
        %v1226 = vpop.f32.mrf.mxu0
        %v1227 = vadd.f32 %v1011, %v1226
        %v1228 = vpop.f32.mrf.mxu0
        %v1229 = vadd.f32 %v1015, %v1228
        %1230 = vmatprep.mubr.bf16.mxu0 0
        %1231 = vmatmul.mubr.bf16.gmra.mxu0 %v395
        %v1232 = vpop.f32.mrf.mxu0
        %v1233 = vadd.f32 %v1011, %v1232
        %v1234 = vpop.f32.mrf.mxu0
        %v1235 = vadd.f32 %v1015, %v1234
        %v1236 = vpop.f32.mrf.mxu0
        %v1237 = vadd.f32 %v1011, %v1236
        %v1238 = vpop.f32.mrf.mxu0
        %v1239 = vadd.f32 %v1015, %v1238
        %1240 = vmatprep.mubr.bf16.mxu0 0
        %1241 = vmatmul.mubr.bf16.gmra.mxu0 %v396
        %v1242 = vpop.f32.mrf.mxu0
        %v1243 = vadd.f32 %v1011, %v1242
        %v1244 = vpop.f32.mrf.mxu0
        %v1245 = vadd.f32 %v1015, %v1244
        %v1246 = vpop.f32.mrf.mxu0
        %v1247 = vadd.f32 %v1011, %v1246
        %v1248 = vpop.f32.mrf.mxu0
        %v1249 = vadd.f32 %v1015, %v1248
        %1250 = vmatprep.mubr.bf16.mxu0 0
        %1251 = vmatmul.mubr.bf16.gmra.mxu0 %v397
        %v1252 = vpop.f32.mrf.mxu0
        %v1253 = vadd.f32 %v1011, %v1252
        %v1254 = vpop.f32.mrf.mxu0
        %v1255 = vadd.f32 %v1015, %v1254
        %v1256 = vpop.f32.mrf.mxu0
        %v1257 = vadd.f32 %v1011, %v1256
        %v1258 = vpop.f32.mrf.mxu0
        %v1259 = vadd.f32 %v1015, %v1258
        %1260 = vmatprep.mubr.bf16.mxu0 0
        %1261 = vmatmul.mubr.bf16.gmra.mxu0 %v398
        %v1262 = vpop.f32.mrf.mxu0
        %v1263 = vadd.f32 %v1011, %v1262
        %v1264 = vpop.f32.mrf.mxu0
        %v1265 = vadd.f32 %v1015, %v1264
        %v1266 = vpop.f32.mrf.mxu0
        %v1267 = vadd.f32 %v1011, %v1266
        %v1268 = vpop.f32.mrf.mxu0
        %v1269 = vadd.f32 %v1015, %v1268
        %1270 = vmatprep.mubr.bf16.mxu0 0
        %1271 = vmatmul.mubr.bf16.gmra.mxu0 %v399
        %v1272 = vpop.f32.mrf.mxu0
        %v1273 = vadd.f32 %v1011, %v1272
        %v1274 = vpop.f32.mrf.mxu0
        %v1275 = vadd.f32 %v1015, %v1274
        %v1276 = vpop.f32.mrf.mxu0
        %v1277 = vadd.f32 %v1011, %v1276
        %v1278 = vpop.f32.mrf.mxu0
        %v1279 = vadd.f32 %v1015, %v1278
        %1280 = vmatprep.mubr.bf16.mxu0 0
        %1281 = vmatmul.mubr.bf16.gmra.mxu0 %v400
        %v1282 = vpop.f32.mrf.mxu0
        %v1283 = vadd.f32 %v1011, %v1282
        %v1284 = vpop.f32.mrf.mxu0
        %v1285 = vadd.f32 %v1015, %v1284
        %v1286 = vpop.f32.mrf.mxu0
        %v1287 = vadd.f32 %v1011, %v1286
        %v1288 = vpop.f32.mrf.mxu0
        %v1289 = vadd.f32 %v1015, %v1288
        %1290 = vdwg.mxu0
        %v1291 = vmax.f32 %v1133, 0.0
        %v1292 = vmax.f32 %v1135, 0.0
        %v1293 = vmax.f32 %v1137, 0.0
        %v1294 = vmax.f32 %v1139, 0.0
        %v1295 = vmax.f32 %v1143, 0.0
        %v1296 = vmax.f32 %v1145, 0.0
        %v1297 = vmax.f32 %v1147, 0.0
        %v1298 = vmax.f32 %v1149, 0.0
        %v1299 = vmax.f32 %v1153, 0.0
        %v1300 = vmax.f32 %v1155, 0.0
        %v1301 = vmax.f32 %v1157, 0.0
        %v1302 = vmax.f32 %v1159, 0.0
        %v1303 = vmax.f32 %v1163, 0.0
        %v1304 = vmax.f32 %v1165, 0.0
        %v1305 = vmax.f32 %v1167, 0.0
        %v1306 = vmax.f32 %v1169, 0.0
        %v1307 = vmax.f32 %v1173, 0.0
        %v1308 = vmax.f32 %v1175, 0.0
        %v1309 = vmax.f32 %v1177, 0.0
        %v1310 = vmax.f32 %v1179, 0.0
        %v1311 = vmax.f32 %v1183, 0.0
        %v1312 = vmax.f32 %v1185, 0.0
        %v1313 = vmax.f32 %v1187, 0.0
        %v1314 = vmax.f32 %v1189, 0.0
        %v1315 = vmax.f32 %v1193, 0.0
        %v1316 = vmax.f32 %v1195, 0.0
        %v1317 = vmax.f32 %v1197, 0.0
        %v1318 = vmax.f32 %v1199, 0.0
        %v1319 = vmax.f32 %v1203, 0.0
        %v1320 = vmax.f32 %v1205, 0.0
        %v1321 = vmax.f32 %v1207, 0.0
        %v1322 = vmax.f32 %v1209, 0.0
        %v1323 = vmax.f32 %v1213, 0.0
        %v1324 = vmax.f32 %v1215, 0.0
        %v1325 = vmax.f32 %v1217, 0.0
        %v1326 = vmax.f32 %v1219, 0.0
        %v1327 = vmax.f32 %v1223, 0.0
        %v1328 = vmax.f32 %v1225, 0.0
        %v1329 = vmax.f32 %v1227, 0.0
        %v1330 = vmax.f32 %v1229, 0.0
        %v1331 = vmax.f32 %v1233, 0.0
        %v1332 = vmax.f32 %v1235, 0.0
        %v1333 = vmax.f32 %v1237, 0.0
        %v1334 = vmax.f32 %v1239, 0.0
        %v1335 = vmax.f32 %v1243, 0.0
        %v1336 = vmax.f32 %v1245, 0.0
        %v1337 = vmax.f32 %v1247, 0.0
        %v1338 = vmax.f32 %v1249, 0.0
        %v1339 = vmax.f32 %v1253, 0.0
        %v1340 = vmax.f32 %v1255, 0.0
        %v1341 = vmax.f32 %v1257, 0.0
        %v1342 = vmax.f32 %v1259, 0.0
        %v1343 = vmax.f32 %v1263, 0.0
        %v1344 = vmax.f32 %v1265, 0.0
        %v1345 = vmax.f32 %v1267, 0.0
        %v1346 = vmax.f32 %v1269, 0.0
        %v1347 = vmax.f32 %v1273, 0.0
        %v1348 = vmax.f32 %v1275, 0.0
        %v1349 = vmax.f32 %v1277, 0.0
        %v1350 = vmax.f32 %v1279, 0.0
        %v1351 = vmax.f32 %v1283, 0.0
        %v1352 = vmax.f32 %v1285, 0.0
        %v1353 = vmax.f32 %v1287, 0.0
        %v1354 = vmax.f32 %v1289, 0.0
        %v1355 = vpack.c.bf16 %v1293, %v1291
        %v1356 = vpack.c.bf16 %v1294, %v1292
        %v1357 = vpack.c.bf16 %v1297, %v1295
        %v1358 = vpack.c.bf16 %v1298, %v1296
        %v1359 = vpack.c.bf16 %v1301, %v1299
        %v1360 = vpack.c.bf16 %v1302, %v1300
        %v1361 = vpack.c.bf16 %v1305, %v1303
        %v1362 = vpack.c.bf16 %v1306, %v1304
        %v1363 = vpack.c.bf16 %v1309, %v1307
        %v1364 = vpack.c.bf16 %v1310, %v1308
        %v1365 = vpack.c.bf16 %v1313, %v1311
        %v1366 = vpack.c.bf16 %v1314, %v1312
        %v1367 = vpack.c.bf16 %v1317, %v1315
        %v1368 = vpack.c.bf16 %v1318, %v1316
        %v1369 = vpack.c.bf16 %v1321, %v1319
        %v1370 = vpack.c.bf16 %v1322, %v1320
        %v1371 = vpack.c.bf16 %v1325, %v1323
        %v1372 = vpack.c.bf16 %v1326, %v1324
        %v1373 = vpack.c.bf16 %v1329, %v1327
        %v1374 = vpack.c.bf16 %v1330, %v1328
        %v1375 = vpack.c.bf16 %v1333, %v1331
        %v1376 = vpack.c.bf16 %v1334, %v1332
        %v1377 = vpack.c.bf16 %v1337, %v1335
        %v1378 = vpack.c.bf16 %v1338, %v1336
        %v1379 = vpack.c.bf16 %v1341, %v1339
        %v1380 = vpack.c.bf16 %v1342, %v1340
        %v1381 = vpack.c.bf16 %v1345, %v1343
        %v1382 = vpack.c.bf16 %v1346, %v1344
        %v1383 = vpack.c.bf16 %v1349, %v1347
        %v1384 = vpack.c.bf16 %v1350, %v1348
        %v1385 = vpack.c.bf16 %v1353, %v1351
        %v1386 = vpack.c.bf16 %v1354, %v1352
        %v1419 = vunpack.c.l.b16 %v1355
        %v1420 = vunpack.c.l.b16 %v1356
        %v1421 = vunpack.c.h.b16 %v1355
        %v1422 = vunpack.c.h.b16 %v1356
        %v1423 = vunpack.c.l.b16 %v1357
        %v1424 = vunpack.c.l.b16 %v1358
        %v1425 = vunpack.c.h.b16 %v1357
        %v1426 = vunpack.c.h.b16 %v1358
        %v1427 = vunpack.c.l.b16 %v1359
        %v1428 = vunpack.c.l.b16 %v1360
        %v1429 = vunpack.c.h.b16 %v1359
        %v1430 = vunpack.c.h.b16 %v1360
        %v1431 = vunpack.c.l.b16 %v1361
        %v1432 = vunpack.c.l.b16 %v1362
        %v1433 = vunpack.c.h.b16 %v1361
        %v1434 = vunpack.c.h.b16 %v1362
        %v1435 = vunpack.c.l.b16 %v1363
        %v1436 = vunpack.c.l.b16 %v1364
        %v1437 = vunpack.c.h.b16 %v1363
        %v1438 = vunpack.c.h.b16 %v1364
        %v1439 = vunpack.c.l.b16 %v1365
        %v1440 = vunpack.c.l.b16 %v1366
        %v1441 = vunpack.c.h.b16 %v1365
        %v1442 = vunpack.c.h.b16 %v1366
        %v1443 = vunpack.c.l.b16 %v1367
        %v1444 = vunpack.c.l.b16 %v1368
        %v1445 = vunpack.c.h.b16 %v1367
        %v1446 = vunpack.c.h.b16 %v1368
        %v1447 = vunpack.c.l.b16 %v1369
        %v1448 = vunpack.c.l.b16 %v1370
        %v1449 = vunpack.c.h.b16 %v1369
        %v1450 = vunpack.c.h.b16 %v1370
        %v1451 = vunpack.c.l.b16 %v1371
        %v1452 = vunpack.c.l.b16 %v1372
        %v1453 = vunpack.c.h.b16 %v1371
        %v1454 = vunpack.c.h.b16 %v1372
        %v1455 = vunpack.c.l.b16 %v1373
        %v1456 = vunpack.c.l.b16 %v1374
        %v1457 = vunpack.c.h.b16 %v1373
        %v1458 = vunpack.c.h.b16 %v1374
        %v1459 = vunpack.c.l.b16 %v1375
        %v1460 = vunpack.c.l.b16 %v1376
        %v1461 = vunpack.c.h.b16 %v1375
        %v1462 = vunpack.c.h.b16 %v1376
        %v1463 = vunpack.c.l.b16 %v1377
        %v1464 = vunpack.c.l.b16 %v1378
        %v1465 = vunpack.c.h.b16 %v1377
        %v1466 = vunpack.c.h.b16 %v1378
        %v1467 = vunpack.c.l.b16 %v1379
        %v1468 = vunpack.c.l.b16 %v1380
        %v1469 = vunpack.c.h.b16 %v1379
        %v1470 = vunpack.c.h.b16 %v1380
        %v1471 = vunpack.c.l.b16 %v1381
        %v1472 = vunpack.c.l.b16 %v1382
        %v1473 = vunpack.c.h.b16 %v1381
        %v1474 = vunpack.c.h.b16 %v1382
        %v1475 = vunpack.c.l.b16 %v1383
        %v1476 = vunpack.c.l.b16 %v1384
        %v1477 = vunpack.c.h.b16 %v1383
        %v1478 = vunpack.c.h.b16 %v1384
        %v1479 = vunpack.c.l.b16 %v1385
        %v1480 = vunpack.c.l.b16 %v1386
        %v1481 = vunpack.c.h.b16 %v1385
        %v1482 = vunpack.c.h.b16 %v1386
        %v1483 = vpack.c.b16 %v1420, %v1419
        %v1484 = vpack.c.b16 %v1422, %v1421
        %v1485 = vpack.c.b16 %v1424, %v1423
        %v1486 = vpack.c.b16 %v1426, %v1425
        %v1487 = vpack.c.b16 %v1428, %v1427
        %v1488 = vpack.c.b16 %v1430, %v1429
        %v1489 = vpack.c.b16 %v1432, %v1431
        %v1490 = vpack.c.b16 %v1434, %v1433
        %v1491 = vpack.c.b16 %v1436, %v1435
        %v1492 = vpack.c.b16 %v1438, %v1437
        %v1493 = vpack.c.b16 %v1440, %v1439
        %v1494 = vpack.c.b16 %v1442, %v1441
        %v1495 = vpack.c.b16 %v1444, %v1443
        %v1496 = vpack.c.b16 %v1446, %v1445
        %v1497 = vpack.c.b16 %v1448, %v1447
        %v1498 = vpack.c.b16 %v1450, %v1449
        %v1499 = vpack.c.b16 %v1452, %v1451
        %v1500 = vpack.c.b16 %v1454, %v1453
        %v1501 = vpack.c.b16 %v1456, %v1455
        %v1502 = vpack.c.b16 %v1458, %v1457
        %v1503 = vpack.c.b16 %v1460, %v1459
        %v1504 = vpack.c.b16 %v1462, %v1461
        %v1505 = vpack.c.b16 %v1464, %v1463
        %v1506 = vpack.c.b16 %v1466, %v1465
        %v1507 = vpack.c.b16 %v1468, %v1467
        %v1508 = vpack.c.b16 %v1470, %v1469
        %v1509 = vpack.c.b16 %v1472, %v1471
        %v1510 = vpack.c.b16 %v1474, %v1473
        %v1511 = vpack.c.b16 %v1476, %v1475
        %v1512 = vpack.c.b16 %v1478, %v1477
        %v1513 = vpack.c.b16 %v1480, %v1479
        %v1514 = vpack.c.b16 %v1482, %v1481
        %1547 = vst [vmem:[#allocation2 + $0x8] sm:$0xff] %v1483
        %1548 = vst [vmem:[#allocation2 + $0x28] sm:$0xff] %v1484
        %1549 = vst [vmem:[#allocation2 + $0x48] sm:$0xff] %v1485
        %1550 = vst [vmem:[#allocation2 + $0x68] sm:$0xff] %v1486
        %1551 = vst [vmem:[#allocation2 + $0x88] sm:$0xff] %v1487
        %1552 = vst [vmem:[#allocation2 + $0xa8] sm:$0xff] %v1488
        %1553 = vst [vmem:[#allocation2 + $0xc8] sm:$0xff] %v1489
        %1554 = vst [vmem:[#allocation2 + $0xe8] sm:$0xff] %v1490
        %1555 = vst [vmem:[#allocation2 + $0x108] sm:$0xff] %v1491
        %1556 = vst [vmem:[#allocation2 + $0x128] sm:$0xff] %v1492
        %1557 = vst [vmem:[#allocation2 + $0x148] sm:$0xff] %v1493
        %1558 = vst [vmem:[#allocation2 + $0x168] sm:$0xff] %v1494
        %1559 = vst [vmem:[#allocation2 + $0x188] sm:$0xff] %v1495
        %1560 = vst [vmem:[#allocation2 + $0x1a8] sm:$0xff] %v1496
        %1561 = vst [vmem:[#allocation2 + $0x1c8] sm:$0xff] %v1497
        %1562 = vst [vmem:[#allocation2 + $0x1e8] sm:$0xff] %v1498
        %1563 = vst [vmem:[#allocation2 + $0x208] sm:$0xff] %v1499
        %1564 = vst [vmem:[#allocation2 + $0x228] sm:$0xff] %v1500
        %1565 = vst [vmem:[#allocation2 + $0x248] sm:$0xff] %v1501
        %1566 = vst [vmem:[#allocation2 + $0x268] sm:$0xff] %v1502
        %1567 = vst [vmem:[#allocation2 + $0x288] sm:$0xff] %v1503
        %1568 = vst [vmem:[#allocation2 + $0x2a8] sm:$0xff] %v1504
        %1569 = vst [vmem:[#allocation2 + $0x2c8] sm:$0xff] %v1505
        %1570 = vst [vmem:[#allocation2 + $0x2e8] sm:$0xff] %v1506
        %1571 = vst [vmem:[#allocation2 + $0x308] sm:$0xff] %v1507
        %1572 = vst [vmem:[#allocation2 + $0x328] sm:$0xff] %v1508
        %1573 = vst [vmem:[#allocation2 + $0x348] sm:$0xff] %v1509
        %1574 = vst [vmem:[#allocation2 + $0x368] sm:$0xff] %v1510
        %1575 = vst [vmem:[#allocation2 + $0x388] sm:$0xff] %v1511
        %1576 = vst [vmem:[#allocation2 + $0x3a8] sm:$0xff] %v1512
        %1577 = vst [vmem:[#allocation2 + $0x3c8] sm:$0xff] %v1513
        %1578 = vst [vmem:[#allocation2 + $0x3e8] sm:$0xff] %v1514
        %v1579 = vld [vmem:[#allocation7 + $0x10] sm:$0xff]
        %v1580 = vld [vmem:[#allocation7 + $0x30] sm:$0xff]
        %v1581 = vld [vmem:[#allocation7 + $0x50] sm:$0xff]
        %v1582 = vld [vmem:[#allocation7 + $0x70] sm:$0xff]
        %v1583 = vld [vmem:[#allocation7 + $0x90] sm:$0xff]
        %v1584 = vld [vmem:[#allocation7 + $0xb0] sm:$0xff]
        %v1585 = vld [vmem:[#allocation7 + $0xd0] sm:$0xff]
        %v1586 = vld [vmem:[#allocation7 + $0xf0] sm:$0xff]
        %v1587 = vld [vmem:[#allocation7 + $0x110] sm:$0xff]
        %v1588 = vld [vmem:[#allocation7 + $0x130] sm:$0xff]
        %v1589 = vld [vmem:[#allocation7 + $0x150] sm:$0xff]
        %v1590 = vld [vmem:[#allocation7 + $0x170] sm:$0xff]
        %v1591 = vld [vmem:[#allocation7 + $0x190] sm:$0xff]
        %v1592 = vld [vmem:[#allocation7 + $0x1b0] sm:$0xff]
        %v1593 = vld [vmem:[#allocation7 + $0x1d0] sm:$0xff]
        %v1594 = vld [vmem:[#allocation7 + $0x1f0] sm:$0xff]
        %v1595 = vld [vmem:[#allocation9 + $0x4] sm:$0x3]
        %v1597 = vlaneseq
        %v1598 = vshrl.u32 %v1597, 7
        %v1599 = vsub.s32 0, %v1598
        %v1600 = vrot.slane %v1595, %v1599
        %v1601 = vlaneseq
        %v1602 = vshrl.u32 %v1601, 7
        %v1603 = vsub.s32 1, %v1602
        %v1604 = vrot.slane %v1595, %v1603
        %v1623 = vunpack.c.l.b16 %v1579
        %v1624 = vunpack.c.h.b16 %v1579
        %v1625 = vunpack.c.l.b16 %v1580
        %v1626 = vunpack.c.h.b16 %v1580
        %v1627 = vunpack.c.l.b16 %v1581
        %v1628 = vunpack.c.h.b16 %v1581
        %v1629 = vunpack.c.l.b16 %v1582
        %v1630 = vunpack.c.h.b16 %v1582
        %v1631 = vunpack.c.l.b16 %v1583
        %v1632 = vunpack.c.h.b16 %v1583
        %v1633 = vunpack.c.l.b16 %v1584
        %v1634 = vunpack.c.h.b16 %v1584
        %v1635 = vunpack.c.l.b16 %v1585
        %v1636 = vunpack.c.h.b16 %v1585
        %v1637 = vunpack.c.l.b16 %v1586
        %v1638 = vunpack.c.h.b16 %v1586
        %v1639 = vunpack.c.l.b16 %v1587
        %v1640 = vunpack.c.h.b16 %v1587
        %v1641 = vunpack.c.l.b16 %v1588
        %v1642 = vunpack.c.h.b16 %v1588
        %v1643 = vunpack.c.l.b16 %v1589
        %v1644 = vunpack.c.h.b16 %v1589
        %v1645 = vunpack.c.l.b16 %v1590
        %v1646 = vunpack.c.h.b16 %v1590
        %v1647 = vunpack.c.l.b16 %v1591
        %v1648 = vunpack.c.h.b16 %v1591
        %v1649 = vunpack.c.l.b16 %v1592
        %v1650 = vunpack.c.h.b16 %v1592
        %v1651 = vunpack.c.l.b16 %v1593
        %v1652 = vunpack.c.h.b16 %v1593
        %v1653 = vunpack.c.l.b16 %v1594
        %v1654 = vunpack.c.h.b16 %v1594
        %v1655 = vpack.c.b16 %v1625, %v1623
        %v1656 = vpack.c.b16 %v1626, %v1624
        %v1657 = vpack.c.b16 %v1629, %v1627
        %v1658 = vpack.c.b16 %v1630, %v1628
        %v1659 = vpack.c.b16 %v1633, %v1631
        %v1660 = vpack.c.b16 %v1634, %v1632
        %v1661 = vpack.c.b16 %v1637, %v1635
        %v1662 = vpack.c.b16 %v1638, %v1636
        %v1663 = vpack.c.b16 %v1641, %v1639
        %v1664 = vpack.c.b16 %v1642, %v1640
        %v1665 = vpack.c.b16 %v1645, %v1643
        %v1666 = vpack.c.b16 %v1646, %v1644
        %v1667 = vpack.c.b16 %v1649, %v1647
        %v1668 = vpack.c.b16 %v1650, %v1648
        %v1669 = vpack.c.b16 %v1653, %v1651
        %v1670 = vpack.c.b16 %v1654, %v1652
        %1687 = vmatprep.subr.bf16.mxu0 %v1670
        %1688 = vmatpush1.bf16.msra.mxu0 %v1669
        %1689 = vmatprep.subr.bf16.mxu0 %v1668
        %1690 = vmatpush1.bf16.msra.mxu0 %v1667
        %1691 = vmatprep.subr.bf16.mxu0 %v1666
        %1692 = vmatpush1.bf16.msra.mxu0 %v1665
        %1693 = vmatprep.subr.bf16.mxu0 %v1664
        %1694 = vmatpush1.bf16.msra.mxu0 %v1663
        %1695 = vmatprep.subr.bf16.mxu0 %v1662
        %1696 = vmatpush1.bf16.msra.mxu0 %v1661
        %1697 = vmatprep.subr.bf16.mxu0 %v1660
        %1698 = vmatpush1.bf16.msra.mxu0 %v1659
        %1699 = vmatprep.subr.bf16.mxu0 %v1658
        %1700 = vmatpush1.bf16.msra.mxu0 %v1657
        %1701 = vmatprep.subr.bf16.mxu0 %v1656
        %1702 = vmatpush1.bf16.msra.mxu0 %v1655
        %1703 = vmatprep.subr.bf16.mxu0 0
        %1704 = vmatpush2.bf16.msra.mxu0 0
        %1705 = vmatprep.subr.bf16.mxu0 0
        %1706 = vmatpush2.bf16.msra.mxu0 0
        %1707 = vmatprep.subr.bf16.mxu0 0
        %1708 = vmatpush2.bf16.msra.mxu0 0
        %1709 = vmatprep.subr.bf16.mxu0 0
        %1710 = vmatpush2.bf16.msra.mxu0 0
        %1711 = vmatprep.subr.bf16.mxu0 0
        %1712 = vmatpush2.bf16.msra.mxu0 0
        %1713 = vmatprep.subr.bf16.mxu0 0
        %1714 = vmatpush2.bf16.msra.mxu0 0
        %1715 = vmatprep.subr.bf16.mxu0 0
        %1716 = vmatpush2.bf16.msra.mxu0 0
        %1717 = vmatprep.subr.bf16.mxu0 0
        %1718 = vmatpush2.bf16.msra.mxu0 0
        %1719 = vmatprep.mubr.bf16.mxu0 0
        %1720 = vmatmul.mubr.bf16.gmra.mxu0 %v385
        %v1721 = vpop.f32.mrf.mxu0
        %v1722 = vadd.f32 %v1600, %v1721
        %v1723 = vpop.f32.mrf.mxu0
        %v1724 = vadd.f32 %v1604, %v1723
        %v1725 = vpop.f32.mrf.mxu0
        %v1726 = vadd.f32 %v1600, %v1725
        %v1727 = vpop.f32.mrf.mxu0
        %v1728 = vadd.f32 %v1604, %v1727
        %1729 = vmatprep.mubr.bf16.mxu0 0
        %1730 = vmatmul.mubr.bf16.gmra.mxu0 %v386
        %v1731 = vpop.f32.mrf.mxu0
        %v1732 = vadd.f32 %v1600, %v1731
        %v1733 = vpop.f32.mrf.mxu0
        %v1734 = vadd.f32 %v1604, %v1733
        %v1735 = vpop.f32.mrf.mxu0
        %v1736 = vadd.f32 %v1600, %v1735
        %v1737 = vpop.f32.mrf.mxu0
        %v1738 = vadd.f32 %v1604, %v1737
        %1739 = vmatprep.mubr.bf16.mxu0 0
        %1740 = vmatmul.mubr.bf16.gmra.mxu0 %v387
        %v1741 = vpop.f32.mrf.mxu0
        %v1742 = vadd.f32 %v1600, %v1741
        %v1743 = vpop.f32.mrf.mxu0
        %v1744 = vadd.f32 %v1604, %v1743
        %v1745 = vpop.f32.mrf.mxu0
        %v1746 = vadd.f32 %v1600, %v1745
        %v1747 = vpop.f32.mrf.mxu0
        %v1748 = vadd.f32 %v1604, %v1747
        %1749 = vmatprep.mubr.bf16.mxu0 0
        %1750 = vmatmul.mubr.bf16.gmra.mxu0 %v388
        %v1751 = vpop.f32.mrf.mxu0
        %v1752 = vadd.f32 %v1600, %v1751
        %v1753 = vpop.f32.mrf.mxu0
        %v1754 = vadd.f32 %v1604, %v1753
        %v1755 = vpop.f32.mrf.mxu0
        %v1756 = vadd.f32 %v1600, %v1755
        %v1757 = vpop.f32.mrf.mxu0
        %v1758 = vadd.f32 %v1604, %v1757
        %1759 = vmatprep.mubr.bf16.mxu0 0
        %1760 = vmatmul.mubr.bf16.gmra.mxu0 %v389
        %v1761 = vpop.f32.mrf.mxu0
        %v1762 = vadd.f32 %v1600, %v1761
        %v1763 = vpop.f32.mrf.mxu0
        %v1764 = vadd.f32 %v1604, %v1763
        %v1765 = vpop.f32.mrf.mxu0
        %v1766 = vadd.f32 %v1600, %v1765
        %v1767 = vpop.f32.mrf.mxu0
        %v1768 = vadd.f32 %v1604, %v1767
        %1769 = vmatprep.mubr.bf16.mxu0 0
        %1770 = vmatmul.mubr.bf16.gmra.mxu0 %v390
        %v1771 = vpop.f32.mrf.mxu0
        %v1772 = vadd.f32 %v1600, %v1771
        %v1773 = vpop.f32.mrf.mxu0
        %v1774 = vadd.f32 %v1604, %v1773
        %v1775 = vpop.f32.mrf.mxu0
        %v1776 = vadd.f32 %v1600, %v1775
        %v1777 = vpop.f32.mrf.mxu0
        %v1778 = vadd.f32 %v1604, %v1777
        %1779 = vmatprep.mubr.bf16.mxu0 0
        %1780 = vmatmul.mubr.bf16.gmra.mxu0 %v391
        %v1781 = vpop.f32.mrf.mxu0
        %v1782 = vadd.f32 %v1600, %v1781
        %v1783 = vpop.f32.mrf.mxu0
        %v1784 = vadd.f32 %v1604, %v1783
        %v1785 = vpop.f32.mrf.mxu0
        %v1786 = vadd.f32 %v1600, %v1785
        %v1787 = vpop.f32.mrf.mxu0
        %v1788 = vadd.f32 %v1604, %v1787
        %1789 = vmatprep.mubr.bf16.mxu0 0
        %1790 = vmatmul.mubr.bf16.gmra.mxu0 %v392
        %v1791 = vpop.f32.mrf.mxu0
        %v1792 = vadd.f32 %v1600, %v1791
        %v1793 = vpop.f32.mrf.mxu0
        %v1794 = vadd.f32 %v1604, %v1793
        %v1795 = vpop.f32.mrf.mxu0
        %v1796 = vadd.f32 %v1600, %v1795
        %v1797 = vpop.f32.mrf.mxu0
        %v1798 = vadd.f32 %v1604, %v1797
        %1799 = vmatprep.mubr.bf16.mxu0 0
        %1800 = vmatmul.mubr.bf16.gmra.mxu0 %v393
        %v1801 = vpop.f32.mrf.mxu0
        %v1802 = vadd.f32 %v1600, %v1801
        %v1803 = vpop.f32.mrf.mxu0
        %v1804 = vadd.f32 %v1604, %v1803
        %v1805 = vpop.f32.mrf.mxu0
        %v1806 = vadd.f32 %v1600, %v1805
        %v1807 = vpop.f32.mrf.mxu0
        %v1808 = vadd.f32 %v1604, %v1807
        %1809 = vmatprep.mubr.bf16.mxu0 0
        %1810 = vmatmul.mubr.bf16.gmra.mxu0 %v394
        %v1811 = vpop.f32.mrf.mxu0
        %v1812 = vadd.f32 %v1600, %v1811
        %v1813 = vpop.f32.mrf.mxu0
        %v1814 = vadd.f32 %v1604, %v1813
        %v1815 = vpop.f32.mrf.mxu0
        %v1816 = vadd.f32 %v1600, %v1815
        %v1817 = vpop.f32.mrf.mxu0
        %v1818 = vadd.f32 %v1604, %v1817
        %1819 = vmatprep.mubr.bf16.mxu0 0
        %1820 = vmatmul.mubr.bf16.gmra.mxu0 %v395
        %v1821 = vpop.f32.mrf.mxu0
        %v1822 = vadd.f32 %v1600, %v1821
        %v1823 = vpop.f32.mrf.mxu0
        %v1824 = vadd.f32 %v1604, %v1823
        %v1825 = vpop.f32.mrf.mxu0
        %v1826 = vadd.f32 %v1600, %v1825
        %v1827 = vpop.f32.mrf.mxu0
        %v1828 = vadd.f32 %v1604, %v1827
        %1829 = vmatprep.mubr.bf16.mxu0 0
        %1830 = vmatmul.mubr.bf16.gmra.mxu0 %v396
        %v1831 = vpop.f32.mrf.mxu0
        %v1832 = vadd.f32 %v1600, %v1831
        %v1833 = vpop.f32.mrf.mxu0
        %v1834 = vadd.f32 %v1604, %v1833
        %v1835 = vpop.f32.mrf.mxu0
        %v1836 = vadd.f32 %v1600, %v1835
        %v1837 = vpop.f32.mrf.mxu0
        %v1838 = vadd.f32 %v1604, %v1837
        %1839 = vmatprep.mubr.bf16.mxu0 0
        %1840 = vmatmul.mubr.bf16.gmra.mxu0 %v397
        %v1841 = vpop.f32.mrf.mxu0
        %v1842 = vadd.f32 %v1600, %v1841
        %v1843 = vpop.f32.mrf.mxu0
        %v1844 = vadd.f32 %v1604, %v1843
        %v1845 = vpop.f32.mrf.mxu0
        %v1846 = vadd.f32 %v1600, %v1845
        %v1847 = vpop.f32.mrf.mxu0
        %v1848 = vadd.f32 %v1604, %v1847
        %1849 = vmatprep.mubr.bf16.mxu0 0
        %1850 = vmatmul.mubr.bf16.gmra.mxu0 %v398
        %v1851 = vpop.f32.mrf.mxu0
        %v1852 = vadd.f32 %v1600, %v1851
        %v1853 = vpop.f32.mrf.mxu0
        %v1854 = vadd.f32 %v1604, %v1853
        %v1855 = vpop.f32.mrf.mxu0
        %v1856 = vadd.f32 %v1600, %v1855
        %v1857 = vpop.f32.mrf.mxu0
        %v1858 = vadd.f32 %v1604, %v1857
        %1859 = vmatprep.mubr.bf16.mxu0 0
        %1860 = vmatmul.mubr.bf16.gmra.mxu0 %v399
        %v1861 = vpop.f32.mrf.mxu0
        %v1862 = vadd.f32 %v1600, %v1861
        %v1863 = vpop.f32.mrf.mxu0
        %v1864 = vadd.f32 %v1604, %v1863
        %v1865 = vpop.f32.mrf.mxu0
        %v1866 = vadd.f32 %v1600, %v1865
        %v1867 = vpop.f32.mrf.mxu0
        %v1868 = vadd.f32 %v1604, %v1867
        %1869 = vmatprep.mubr.bf16.mxu0 0
        %1870 = vmatmul.mubr.bf16.gmra.mxu0 %v400
        %v1871 = vpop.f32.mrf.mxu0
        %v1872 = vadd.f32 %v1600, %v1871
        %v1873 = vpop.f32.mrf.mxu0
        %v1874 = vadd.f32 %v1604, %v1873
        %v1875 = vpop.f32.mrf.mxu0
        %v1876 = vadd.f32 %v1600, %v1875
        %v1877 = vpop.f32.mrf.mxu0
        %v1878 = vadd.f32 %v1604, %v1877
        %1879 = vdwg.mxu0
        %v1880 = vmax.f32 %v1722, 0.0
        %v1881 = vmax.f32 %v1724, 0.0
        %v1882 = vmax.f32 %v1726, 0.0
        %v1883 = vmax.f32 %v1728, 0.0
        %v1884 = vmax.f32 %v1732, 0.0
        %v1885 = vmax.f32 %v1734, 0.0
        %v1886 = vmax.f32 %v1736, 0.0
        %v1887 = vmax.f32 %v1738, 0.0
        %v1888 = vmax.f32 %v1742, 0.0
        %v1889 = vmax.f32 %v1744, 0.0
        %v1890 = vmax.f32 %v1746, 0.0
        %v1891 = vmax.f32 %v1748, 0.0
        %v1892 = vmax.f32 %v1752, 0.0
        %v1893 = vmax.f32 %v1754, 0.0
        %v1894 = vmax.f32 %v1756, 0.0
        %v1895 = vmax.f32 %v1758, 0.0
        %v1896 = vmax.f32 %v1762, 0.0
        %v1897 = vmax.f32 %v1764, 0.0
        %v1898 = vmax.f32 %v1766, 0.0
        %v1899 = vmax.f32 %v1768, 0.0
        %v1900 = vmax.f32 %v1772, 0.0
        %v1901 = vmax.f32 %v1774, 0.0
        %v1902 = vmax.f32 %v1776, 0.0
        %v1903 = vmax.f32 %v1778, 0.0
        %v1904 = vmax.f32 %v1782, 0.0
        %v1905 = vmax.f32 %v1784, 0.0
        %v1906 = vmax.f32 %v1786, 0.0
        %v1907 = vmax.f32 %v1788, 0.0
        %v1908 = vmax.f32 %v1792, 0.0
        %v1909 = vmax.f32 %v1794, 0.0
        %v1910 = vmax.f32 %v1796, 0.0
        %v1911 = vmax.f32 %v1798, 0.0
        %v1912 = vmax.f32 %v1802, 0.0
        %v1913 = vmax.f32 %v1804, 0.0
        %v1914 = vmax.f32 %v1806, 0.0
        %v1915 = vmax.f32 %v1808, 0.0
        %v1916 = vmax.f32 %v1812, 0.0
        %v1917 = vmax.f32 %v1814, 0.0
        %v1918 = vmax.f32 %v1816, 0.0
        %v1919 = vmax.f32 %v1818, 0.0
        %v1920 = vmax.f32 %v1822, 0.0
        %v1921 = vmax.f32 %v1824, 0.0
        %v1922 = vmax.f32 %v1826, 0.0
        %v1923 = vmax.f32 %v1828, 0.0
        %v1924 = vmax.f32 %v1832, 0.0
        %v1925 = vmax.f32 %v1834, 0.0
        %v1926 = vmax.f32 %v1836, 0.0
        %v1927 = vmax.f32 %v1838, 0.0
        %v1928 = vmax.f32 %v1842, 0.0
        %v1929 = vmax.f32 %v1844, 0.0
        %v1930 = vmax.f32 %v1846, 0.0
        %v1931 = vmax.f32 %v1848, 0.0
        %v1932 = vmax.f32 %v1852, 0.0
        %v1933 = vmax.f32 %v1854, 0.0
        %v1934 = vmax.f32 %v1856, 0.0
        %v1935 = vmax.f32 %v1858, 0.0
        %v1936 = vmax.f32 %v1862, 0.0
        %v1937 = vmax.f32 %v1864, 0.0
        %v1938 = vmax.f32 %v1866, 0.0
        %v1939 = vmax.f32 %v1868, 0.0
        %v1940 = vmax.f32 %v1872, 0.0
        %v1941 = vmax.f32 %v1874, 0.0
        %v1942 = vmax.f32 %v1876, 0.0
        %v1943 = vmax.f32 %v1878, 0.0
        %v1944 = vpack.c.bf16 %v1882, %v1880
        %v1945 = vpack.c.bf16 %v1883, %v1881
        %v1946 = vpack.c.bf16 %v1886, %v1884
        %v1947 = vpack.c.bf16 %v1887, %v1885
        %v1948 = vpack.c.bf16 %v1890, %v1888
        %v1949 = vpack.c.bf16 %v1891, %v1889
        %v1950 = vpack.c.bf16 %v1894, %v1892
        %v1951 = vpack.c.bf16 %v1895, %v1893
        %v1952 = vpack.c.bf16 %v1898, %v1896
        %v1953 = vpack.c.bf16 %v1899, %v1897
        %v1954 = vpack.c.bf16 %v1902, %v1900
        %v1955 = vpack.c.bf16 %v1903, %v1901
        %v1956 = vpack.c.bf16 %v1906, %v1904
        %v1957 = vpack.c.bf16 %v1907, %v1905
        %v1958 = vpack.c.bf16 %v1910, %v1908
        %v1959 = vpack.c.bf16 %v1911, %v1909
        %v1960 = vpack.c.bf16 %v1914, %v1912
        %v1961 = vpack.c.bf16 %v1915, %v1913
        %v1962 = vpack.c.bf16 %v1918, %v1916
        %v1963 = vpack.c.bf16 %v1919, %v1917
        %v1964 = vpack.c.bf16 %v1922, %v1920
        %v1965 = vpack.c.bf16 %v1923, %v1921
        %v1966 = vpack.c.bf16 %v1926, %v1924
        %v1967 = vpack.c.bf16 %v1927, %v1925
        %v1968 = vpack.c.bf16 %v1930, %v1928
        %v1969 = vpack.c.bf16 %v1931, %v1929
        %v1970 = vpack.c.bf16 %v1934, %v1932
        %v1971 = vpack.c.bf16 %v1935, %v1933
        %v1972 = vpack.c.bf16 %v1938, %v1936
        %v1973 = vpack.c.bf16 %v1939, %v1937
        %v1974 = vpack.c.bf16 %v1942, %v1940
        %v1975 = vpack.c.bf16 %v1943, %v1941
        %v2008 = vunpack.c.l.b16 %v1944
        %v2009 = vunpack.c.l.b16 %v1945
        %v2010 = vunpack.c.h.b16 %v1944
        %v2011 = vunpack.c.h.b16 %v1945
        %v2012 = vunpack.c.l.b16 %v1946
        %v2013 = vunpack.c.l.b16 %v1947
        %v2014 = vunpack.c.h.b16 %v1946
        %v2015 = vunpack.c.h.b16 %v1947
        %v2016 = vunpack.c.l.b16 %v1948
        %v2017 = vunpack.c.l.b16 %v1949
        %v2018 = vunpack.c.h.b16 %v1948
        %v2019 = vunpack.c.h.b16 %v1949
        %v2020 = vunpack.c.l.b16 %v1950
        %v2021 = vunpack.c.l.b16 %v1951
        %v2022 = vunpack.c.h.b16 %v1950
        %v2023 = vunpack.c.h.b16 %v1951
        %v2024 = vunpack.c.l.b16 %v1952
        %v2025 = vunpack.c.l.b16 %v1953
        %v2026 = vunpack.c.h.b16 %v1952
        %v2027 = vunpack.c.h.b16 %v1953
        %v2028 = vunpack.c.l.b16 %v1954
        %v2029 = vunpack.c.l.b16 %v1955
        %v2030 = vunpack.c.h.b16 %v1954
        %v2031 = vunpack.c.h.b16 %v1955
        %v2032 = vunpack.c.l.b16 %v1956
        %v2033 = vunpack.c.l.b16 %v1957
        %v2034 = vunpack.c.h.b16 %v1956
        %v2035 = vunpack.c.h.b16 %v1957
        %v2036 = vunpack.c.l.b16 %v1958
        %v2037 = vunpack.c.l.b16 %v1959
        %v2038 = vunpack.c.h.b16 %v1958
        %v2039 = vunpack.c.h.b16 %v1959
        %v2040 = vunpack.c.l.b16 %v1960
        %v2041 = vunpack.c.l.b16 %v1961
        %v2042 = vunpack.c.h.b16 %v1960
        %v2043 = vunpack.c.h.b16 %v1961
        %v2044 = vunpack.c.l.b16 %v1962
        %v2045 = vunpack.c.l.b16 %v1963
        %v2046 = vunpack.c.h.b16 %v1962
        %v2047 = vunpack.c.h.b16 %v1963
        %v2048 = vunpack.c.l.b16 %v1964
        %v2049 = vunpack.c.l.b16 %v1965
        %v2050 = vunpack.c.h.b16 %v1964
        %v2051 = vunpack.c.h.b16 %v1965
        %v2052 = vunpack.c.l.b16 %v1966
        %v2053 = vunpack.c.l.b16 %v1967
        %v2054 = vunpack.c.h.b16 %v1966
        %v2055 = vunpack.c.h.b16 %v1967
        %v2056 = vunpack.c.l.b16 %v1968
        %v2057 = vunpack.c.l.b16 %v1969
        %v2058 = vunpack.c.h.b16 %v1968
        %v2059 = vunpack.c.h.b16 %v1969
        %v2060 = vunpack.c.l.b16 %v1970
        %v2061 = vunpack.c.l.b16 %v1971
        %v2062 = vunpack.c.h.b16 %v1970
        %v2063 = vunpack.c.h.b16 %v1971
        %v2064 = vunpack.c.l.b16 %v1972
        %v2065 = vunpack.c.l.b16 %v1973
        %v2066 = vunpack.c.h.b16 %v1972
        %v2067 = vunpack.c.h.b16 %v1973
        %v2068 = vunpack.c.l.b16 %v1974
        %v2069 = vunpack.c.l.b16 %v1975
        %v2070 = vunpack.c.h.b16 %v1974
        %v2071 = vunpack.c.h.b16 %v1975
        %v2072 = vpack.c.b16 %v2009, %v2008
        %v2073 = vpack.c.b16 %v2011, %v2010
        %v2074 = vpack.c.b16 %v2013, %v2012
        %v2075 = vpack.c.b16 %v2015, %v2014
        %v2076 = vpack.c.b16 %v2017, %v2016
        %v2077 = vpack.c.b16 %v2019, %v2018
        %v2078 = vpack.c.b16 %v2021, %v2020
        %v2079 = vpack.c.b16 %v2023, %v2022
        %v2080 = vpack.c.b16 %v2025, %v2024
        %v2081 = vpack.c.b16 %v2027, %v2026
        %v2082 = vpack.c.b16 %v2029, %v2028
        %v2083 = vpack.c.b16 %v2031, %v2030
        %v2084 = vpack.c.b16 %v2033, %v2032
        %v2085 = vpack.c.b16 %v2035, %v2034
        %v2086 = vpack.c.b16 %v2037, %v2036
        %v2087 = vpack.c.b16 %v2039, %v2038
        %v2088 = vpack.c.b16 %v2041, %v2040
        %v2089 = vpack.c.b16 %v2043, %v2042
        %v2090 = vpack.c.b16 %v2045, %v2044
        %v2091 = vpack.c.b16 %v2047, %v2046
        %v2092 = vpack.c.b16 %v2049, %v2048
        %v2093 = vpack.c.b16 %v2051, %v2050
        %v2094 = vpack.c.b16 %v2053, %v2052
        %v2095 = vpack.c.b16 %v2055, %v2054
        %v2096 = vpack.c.b16 %v2057, %v2056
        %v2097 = vpack.c.b16 %v2059, %v2058
        %v2098 = vpack.c.b16 %v2061, %v2060
        %v2099 = vpack.c.b16 %v2063, %v2062
        %v2100 = vpack.c.b16 %v2065, %v2064
        %v2101 = vpack.c.b16 %v2067, %v2066
        %v2102 = vpack.c.b16 %v2069, %v2068
        %v2103 = vpack.c.b16 %v2071, %v2070
        %2136 = vst [vmem:[#allocation2 + $0x10] sm:$0xff] %v2072
        %2137 = vst [vmem:[#allocation2 + $0x30] sm:$0xff] %v2073
        %2138 = vst [vmem:[#allocation2 + $0x50] sm:$0xff] %v2074
        %2139 = vst [vmem:[#allocation2 + $0x70] sm:$0xff] %v2075
        %2140 = vst [vmem:[#allocation2 + $0x90] sm:$0xff] %v2076
        %2141 = vst [vmem:[#allocation2 + $0xb0] sm:$0xff] %v2077
        %2142 = vst [vmem:[#allocation2 + $0xd0] sm:$0xff] %v2078
        %2143 = vst [vmem:[#allocation2 + $0xf0] sm:$0xff] %v2079
        %2144 = vst [vmem:[#allocation2 + $0x110] sm:$0xff] %v2080
        %2145 = vst [vmem:[#allocation2 + $0x130] sm:$0xff] %v2081
        %2146 = vst [vmem:[#allocation2 + $0x150] sm:$0xff] %v2082
        %2147 = vst [vmem:[#allocation2 + $0x170] sm:$0xff] %v2083
        %2148 = vst [vmem:[#allocation2 + $0x190] sm:$0xff] %v2084
        %2149 = vst [vmem:[#allocation2 + $0x1b0] sm:$0xff] %v2085
        %2150 = vst [vmem:[#allocation2 + $0x1d0] sm:$0xff] %v2086
        %2151 = vst [vmem:[#allocation2 + $0x1f0] sm:$0xff] %v2087
        %2152 = vst [vmem:[#allocation2 + $0x210] sm:$0xff] %v2088
        %2153 = vst [vmem:[#allocation2 + $0x230] sm:$0xff] %v2089
        %2154 = vst [vmem:[#allocation2 + $0x250] sm:$0xff] %v2090
        %2155 = vst [vmem:[#allocation2 + $0x270] sm:$0xff] %v2091
        %2156 = vst [vmem:[#allocation2 + $0x290] sm:$0xff] %v2092
        %2157 = vst [vmem:[#allocation2 + $0x2b0] sm:$0xff] %v2093
        %2158 = vst [vmem:[#allocation2 + $0x2d0] sm:$0xff] %v2094
        %2159 = vst [vmem:[#allocation2 + $0x2f0] sm:$0xff] %v2095
        %2160 = vst [vmem:[#allocation2 + $0x310] sm:$0xff] %v2096
        %2161 = vst [vmem:[#allocation2 + $0x330] sm:$0xff] %v2097
        %2162 = vst [vmem:[#allocation2 + $0x350] sm:$0xff] %v2098
        %2163 = vst [vmem:[#allocation2 + $0x370] sm:$0xff] %v2099
        %2164 = vst [vmem:[#allocation2 + $0x390] sm:$0xff] %v2100
        %2165 = vst [vmem:[#allocation2 + $0x3b0] sm:$0xff] %v2101
        %2166 = vst [vmem:[#allocation2 + $0x3d0] sm:$0xff] %v2102
        %2167 = vst [vmem:[#allocation2 + $0x3f0] sm:$0xff] %v2103
        %v2168 = vld [vmem:[#allocation7 + $0x18] sm:$0xff]
        %v2169 = vld [vmem:[#allocation7 + $0x38] sm:$0xff]
        %v2170 = vld [vmem:[#allocation7 + $0x58] sm:$0xff]
        %v2171 = vld [vmem:[#allocation7 + $0x78] sm:$0xff]
        %v2172 = vld [vmem:[#allocation7 + $0x98] sm:$0xff]
        %v2173 = vld [vmem:[#allocation7 + $0xb8] sm:$0xff]
        %v2174 = vld [vmem:[#allocation7 + $0xd8] sm:$0xff]
        %v2175 = vld [vmem:[#allocation7 + $0xf8] sm:$0xff]
        %v2176 = vld [vmem:[#allocation7 + $0x118] sm:$0xff]
        %v2177 = vld [vmem:[#allocation7 + $0x138] sm:$0xff]
        %v2178 = vld [vmem:[#allocation7 + $0x158] sm:$0xff]
        %v2179 = vld [vmem:[#allocation7 + $0x178] sm:$0xff]
        %v2180 = vld [vmem:[#allocation7 + $0x198] sm:$0xff]
        %v2181 = vld [vmem:[#allocation7 + $0x1b8] sm:$0xff]
        %v2182 = vld [vmem:[#allocation7 + $0x1d8] sm:$0xff]
        %v2183 = vld [vmem:[#allocation7 + $0x1f8] sm:$0xff]
        %v2184 = vld [vmem:[#allocation9 + $0x6] sm:$0x3]
        %v2186 = vlaneseq
        %v2187 = vshrl.u32 %v2186, 7
        %v2188 = vsub.s32 0, %v2187
        %v2189 = vrot.slane %v2184, %v2188
        %v2190 = vlaneseq
        %v2191 = vshrl.u32 %v2190, 7
        %v2192 = vsub.s32 1, %v2191
        %v2193 = vrot.slane %v2184, %v2192
        %v2212 = vunpack.c.l.b16 %v2168
        %v2213 = vunpack.c.h.b16 %v2168
        %v2214 = vunpack.c.l.b16 %v2169
        %v2215 = vunpack.c.h.b16 %v2169
        %v2216 = vunpack.c.l.b16 %v2170
        %v2217 = vunpack.c.h.b16 %v2170
        %v2218 = vunpack.c.l.b16 %v2171
        %v2219 = vunpack.c.h.b16 %v2171
        %v2220 = vunpack.c.l.b16 %v2172
        %v2221 = vunpack.c.h.b16 %v2172
        %v2222 = vunpack.c.l.b16 %v2173
        %v2223 = vunpack.c.h.b16 %v2173
        %v2224 = vunpack.c.l.b16 %v2174
        %v2225 = vunpack.c.h.b16 %v2174
        %v2226 = vunpack.c.l.b16 %v2175
        %v2227 = vunpack.c.h.b16 %v2175
        %v2228 = vunpack.c.l.b16 %v2176
        %v2229 = vunpack.c.h.b16 %v2176
        %v2230 = vunpack.c.l.b16 %v2177
        %v2231 = vunpack.c.h.b16 %v2177
        %v2232 = vunpack.c.l.b16 %v2178
        %v2233 = vunpack.c.h.b16 %v2178
        %v2234 = vunpack.c.l.b16 %v2179
        %v2235 = vunpack.c.h.b16 %v2179
        %v2236 = vunpack.c.l.b16 %v2180
        %v2237 = vunpack.c.h.b16 %v2180
        %v2238 = vunpack.c.l.b16 %v2181
        %v2239 = vunpack.c.h.b16 %v2181
        %v2240 = vunpack.c.l.b16 %v2182
        %v2241 = vunpack.c.h.b16 %v2182
        %v2242 = vunpack.c.l.b16 %v2183
        %v2243 = vunpack.c.h.b16 %v2183
        %v2244 = vpack.c.b16 %v2214, %v2212
        %v2245 = vpack.c.b16 %v2215, %v2213
        %v2246 = vpack.c.b16 %v2218, %v2216
        %v2247 = vpack.c.b16 %v2219, %v2217
        %v2248 = vpack.c.b16 %v2222, %v2220
        %v2249 = vpack.c.b16 %v2223, %v2221
        %v2250 = vpack.c.b16 %v2226, %v2224
        %v2251 = vpack.c.b16 %v2227, %v2225
        %v2252 = vpack.c.b16 %v2230, %v2228
        %v2253 = vpack.c.b16 %v2231, %v2229
        %v2254 = vpack.c.b16 %v2234, %v2232
        %v2255 = vpack.c.b16 %v2235, %v2233
        %v2256 = vpack.c.b16 %v2238, %v2236
        %v2257 = vpack.c.b16 %v2239, %v2237
        %v2258 = vpack.c.b16 %v2242, %v2240
        %v2259 = vpack.c.b16 %v2243, %v2241
        %2276 = vmatprep.subr.bf16.mxu0 %v2259
        %2277 = vmatpush1.bf16.msra.mxu0 %v2258
        %2278 = vmatprep.subr.bf16.mxu0 %v2257
        %2279 = vmatpush1.bf16.msra.mxu0 %v2256
        %2280 = vmatprep.subr.bf16.mxu0 %v2255
        %2281 = vmatpush1.bf16.msra.mxu0 %v2254
        %2282 = vmatprep.subr.bf16.mxu0 %v2253
        %2283 = vmatpush1.bf16.msra.mxu0 %v2252
        %2284 = vmatprep.subr.bf16.mxu0 %v2251
        %2285 = vmatpush1.bf16.msra.mxu0 %v2250
        %2286 = vmatprep.subr.bf16.mxu0 %v2249
        %2287 = vmatpush1.bf16.msra.mxu0 %v2248
        %2288 = vmatprep.subr.bf16.mxu0 %v2247
        %2289 = vmatpush1.bf16.msra.mxu0 %v2246
        %2290 = vmatprep.subr.bf16.mxu0 %v2245
        %2291 = vmatpush1.bf16.msra.mxu0 %v2244
        %2292 = vmatprep.subr.bf16.mxu0 0
        %2293 = vmatpush2.bf16.msra.mxu0 0
        %2294 = vmatprep.subr.bf16.mxu0 0
        %2295 = vmatpush2.bf16.msra.mxu0 0
        %2296 = vmatprep.subr.bf16.mxu0 0
        %2297 = vmatpush2.bf16.msra.mxu0 0
        %2298 = vmatprep.subr.bf16.mxu0 0
        %2299 = vmatpush2.bf16.msra.mxu0 0
        %2300 = vmatprep.subr.bf16.mxu0 0
        %2301 = vmatpush2.bf16.msra.mxu0 0
        %2302 = vmatprep.subr.bf16.mxu0 0
        %2303 = vmatpush2.bf16.msra.mxu0 0
        %2304 = vmatprep.subr.bf16.mxu0 0
        %2305 = vmatpush2.bf16.msra.mxu0 0
        %2306 = vmatprep.subr.bf16.mxu0 0
        %2307 = vmatpush2.bf16.msra.mxu0 0
        %2308 = vmatprep.mubr.bf16.mxu0 0
        %2309 = vmatmul.mubr.bf16.gmra.mxu0 %v385
        %v2310 = vpop.f32.mrf.mxu0
        %v2311 = vadd.f32 %v2189, %v2310
        %v2312 = vpop.f32.mrf.mxu0
        %v2313 = vadd.f32 %v2193, %v2312
        %v2314 = vpop.f32.mrf.mxu0
        %v2315 = vadd.f32 %v2189, %v2314
        %v2316 = vpop.f32.mrf.mxu0
        %v2317 = vadd.f32 %v2193, %v2316
        %2318 = vmatprep.mubr.bf16.mxu0 0
        %2319 = vmatmul.mubr.bf16.gmra.mxu0 %v386
        %v2320 = vpop.f32.mrf.mxu0
        %v2321 = vadd.f32 %v2189, %v2320
        %v2322 = vpop.f32.mrf.mxu0
        %v2323 = vadd.f32 %v2193, %v2322
        %v2324 = vpop.f32.mrf.mxu0
        %v2325 = vadd.f32 %v2189, %v2324
        %v2326 = vpop.f32.mrf.mxu0
        %v2327 = vadd.f32 %v2193, %v2326
        %2328 = vmatprep.mubr.bf16.mxu0 0
        %2329 = vmatmul.mubr.bf16.gmra.mxu0 %v387
        %v2330 = vpop.f32.mrf.mxu0
        %v2331 = vadd.f32 %v2189, %v2330
        %v2332 = vpop.f32.mrf.mxu0
        %v2333 = vadd.f32 %v2193, %v2332
        %v2334 = vpop.f32.mrf.mxu0
        %v2335 = vadd.f32 %v2189, %v2334
        %v2336 = vpop.f32.mrf.mxu0
        %v2337 = vadd.f32 %v2193, %v2336
        %2338 = vmatprep.mubr.bf16.mxu0 0
        %2339 = vmatmul.mubr.bf16.gmra.mxu0 %v388
        %v2340 = vpop.f32.mrf.mxu0
        %v2341 = vadd.f32 %v2189, %v2340
        %v2342 = vpop.f32.mrf.mxu0
        %v2343 = vadd.f32 %v2193, %v2342
        %v2344 = vpop.f32.mrf.mxu0
        %v2345 = vadd.f32 %v2189, %v2344
        %v2346 = vpop.f32.mrf.mxu0
        %v2347 = vadd.f32 %v2193, %v2346
        %2348 = vmatprep.mubr.bf16.mxu0 0
        %2349 = vmatmul.mubr.bf16.gmra.mxu0 %v389
        %v2350 = vpop.f32.mrf.mxu0
        %v2351 = vadd.f32 %v2189, %v2350
        %v2352 = vpop.f32.mrf.mxu0
        %v2353 = vadd.f32 %v2193, %v2352
        %v2354 = vpop.f32.mrf.mxu0
        %v2355 = vadd.f32 %v2189, %v2354
        %v2356 = vpop.f32.mrf.mxu0
        %v2357 = vadd.f32 %v2193, %v2356
        %2358 = vmatprep.mubr.bf16.mxu0 0
        %2359 = vmatmul.mubr.bf16.gmra.mxu0 %v390
        %v2360 = vpop.f32.mrf.mxu0
        %v2361 = vadd.f32 %v2189, %v2360
        %v2362 = vpop.f32.mrf.mxu0
        %v2363 = vadd.f32 %v2193, %v2362
        %v2364 = vpop.f32.mrf.mxu0
        %v2365 = vadd.f32 %v2189, %v2364
        %v2366 = vpop.f32.mrf.mxu0
        %v2367 = vadd.f32 %v2193, %v2366
        %2368 = vmatprep.mubr.bf16.mxu0 0
        %2369 = vmatmul.mubr.bf16.gmra.mxu0 %v391
        %v2370 = vpop.f32.mrf.mxu0
        %v2371 = vadd.f32 %v2189, %v2370
        %v2372 = vpop.f32.mrf.mxu0
        %v2373 = vadd.f32 %v2193, %v2372
        %v2374 = vpop.f32.mrf.mxu0
        %v2375 = vadd.f32 %v2189, %v2374
        %v2376 = vpop.f32.mrf.mxu0
        %v2377 = vadd.f32 %v2193, %v2376
        %2378 = vmatprep.mubr.bf16.mxu0 0
        %2379 = vmatmul.mubr.bf16.gmra.mxu0 %v392
        %v2380 = vpop.f32.mrf.mxu0
        %v2381 = vadd.f32 %v2189, %v2380
        %v2382 = vpop.f32.mrf.mxu0
        %v2383 = vadd.f32 %v2193, %v2382
        %v2384 = vpop.f32.mrf.mxu0
        %v2385 = vadd.f32 %v2189, %v2384
        %v2386 = vpop.f32.mrf.mxu0
        %v2387 = vadd.f32 %v2193, %v2386
        %2388 = vmatprep.mubr.bf16.mxu0 0
        %2389 = vmatmul.mubr.bf16.gmra.mxu0 %v393
        %v2390 = vpop.f32.mrf.mxu0
        %v2391 = vadd.f32 %v2189, %v2390
        %v2392 = vpop.f32.mrf.mxu0
        %v2393 = vadd.f32 %v2193, %v2392
        %v2394 = vpop.f32.mrf.mxu0
        %v2395 = vadd.f32 %v2189, %v2394
        %v2396 = vpop.f32.mrf.mxu0
        %v2397 = vadd.f32 %v2193, %v2396
        %2398 = vmatprep.mubr.bf16.mxu0 0
        %2399 = vmatmul.mubr.bf16.gmra.mxu0 %v394
        %v2400 = vpop.f32.mrf.mxu0
        %v2401 = vadd.f32 %v2189, %v2400
        %v2402 = vpop.f32.mrf.mxu0
        %v2403 = vadd.f32 %v2193, %v2402
        %v2404 = vpop.f32.mrf.mxu0
        %v2405 = vadd.f32 %v2189, %v2404
        %v2406 = vpop.f32.mrf.mxu0
        %v2407 = vadd.f32 %v2193, %v2406
        %2408 = vmatprep.mubr.bf16.mxu0 0
        %2409 = vmatmul.mubr.bf16.gmra.mxu0 %v395
        %v2410 = vpop.f32.mrf.mxu0
        %v2411 = vadd.f32 %v2189, %v2410
        %v2412 = vpop.f32.mrf.mxu0
        %v2413 = vadd.f32 %v2193, %v2412
        %v2414 = vpop.f32.mrf.mxu0
        %v2415 = vadd.f32 %v2189, %v2414
        %v2416 = vpop.f32.mrf.mxu0
        %v2417 = vadd.f32 %v2193, %v2416
        %2418 = vmatprep.mubr.bf16.mxu0 0
        %2419 = vmatmul.mubr.bf16.gmra.mxu0 %v396
        %v2420 = vpop.f32.mrf.mxu0
        %v2421 = vadd.f32 %v2189, %v2420
        %v2422 = vpop.f32.mrf.mxu0
        %v2423 = vadd.f32 %v2193, %v2422
        %v2424 = vpop.f32.mrf.mxu0
        %v2425 = vadd.f32 %v2189, %v2424
        %v2426 = vpop.f32.mrf.mxu0
        %v2427 = vadd.f32 %v2193, %v2426
        %2428 = vmatprep.mubr.bf16.mxu0 0
        %2429 = vmatmul.mubr.bf16.gmra.mxu0 %v397
        %v2430 = vpop.f32.mrf.mxu0
        %v2431 = vadd.f32 %v2189, %v2430
        %v2432 = vpop.f32.mrf.mxu0
        %v2433 = vadd.f32 %v2193, %v2432
        %v2434 = vpop.f32.mrf.mxu0
        %v2435 = vadd.f32 %v2189, %v2434
        %v2436 = vpop.f32.mrf.mxu0
        %v2437 = vadd.f32 %v2193, %v2436
        %2438 = vmatprep.mubr.bf16.mxu0 0
        %2439 = vmatmul.mubr.bf16.gmra.mxu0 %v398
        %v2440 = vpop.f32.mrf.mxu0
        %v2441 = vadd.f32 %v2189, %v2440
        %v2442 = vpop.f32.mrf.mxu0
        %v2443 = vadd.f32 %v2193, %v2442
        %v2444 = vpop.f32.mrf.mxu0
        %v2445 = vadd.f32 %v2189, %v2444
        %v2446 = vpop.f32.mrf.mxu0
        %v2447 = vadd.f32 %v2193, %v2446
        %2448 = vmatprep.mubr.bf16.mxu0 0
        %2449 = vmatmul.mubr.bf16.gmra.mxu0 %v399
        %v2450 = vpop.f32.mrf.mxu0
        %v2451 = vadd.f32 %v2189, %v2450
        %v2452 = vpop.f32.mrf.mxu0
        %v2453 = vadd.f32 %v2193, %v2452
        %v2454 = vpop.f32.mrf.mxu0
        %v2455 = vadd.f32 %v2189, %v2454
        %v2456 = vpop.f32.mrf.mxu0
        %v2457 = vadd.f32 %v2193, %v2456
        %2458 = vmatprep.mubr.bf16.mxu0 0
        %2459 = vmatmul.mubr.bf16.gmra.mxu0 %v400
        %v2460 = vpop.f32.mrf.mxu0
        %v2461 = vadd.f32 %v2189, %v2460
        %v2462 = vpop.f32.mrf.mxu0
        %v2463 = vadd.f32 %v2193, %v2462
        %v2464 = vpop.f32.mrf.mxu0
        %v2465 = vadd.f32 %v2189, %v2464
        %v2466 = vpop.f32.mrf.mxu0
        %v2467 = vadd.f32 %v2193, %v2466
        %2468 = vdwg.mxu0
        %v2469 = vmax.f32 %v2311, 0.0
        %v2470 = vmax.f32 %v2313, 0.0
        %v2471 = vmax.f32 %v2315, 0.0
        %v2472 = vmax.f32 %v2317, 0.0
        %v2473 = vmax.f32 %v2321, 0.0
        %v2474 = vmax.f32 %v2323, 0.0
        %v2475 = vmax.f32 %v2325, 0.0
        %v2476 = vmax.f32 %v2327, 0.0
        %v2477 = vmax.f32 %v2331, 0.0
        %v2478 = vmax.f32 %v2333, 0.0
        %v2479 = vmax.f32 %v2335, 0.0
        %v2480 = vmax.f32 %v2337, 0.0
        %v2481 = vmax.f32 %v2341, 0.0
        %v2482 = vmax.f32 %v2343, 0.0
        %v2483 = vmax.f32 %v2345, 0.0
        %v2484 = vmax.f32 %v2347, 0.0
        %v2485 = vmax.f32 %v2351, 0.0
        %v2486 = vmax.f32 %v2353, 0.0
        %v2487 = vmax.f32 %v2355, 0.0
        %v2488 = vmax.f32 %v2357, 0.0
        %v2489 = vmax.f32 %v2361, 0.0
        %v2490 = vmax.f32 %v2363, 0.0
        %v2491 = vmax.f32 %v2365, 0.0
        %v2492 = vmax.f32 %v2367, 0.0
        %v2493 = vmax.f32 %v2371, 0.0
        %v2494 = vmax.f32 %v2373, 0.0
        %v2495 = vmax.f32 %v2375, 0.0
        %v2496 = vmax.f32 %v2377, 0.0
        %v2497 = vmax.f32 %v2381, 0.0
        %v2498 = vmax.f32 %v2383, 0.0
        %v2499 = vmax.f32 %v2385, 0.0
        %v2500 = vmax.f32 %v2387, 0.0
        %v2501 = vmax.f32 %v2391, 0.0
        %v2502 = vmax.f32 %v2393, 0.0
        %v2503 = vmax.f32 %v2395, 0.0
        %v2504 = vmax.f32 %v2397, 0.0
        %v2505 = vmax.f32 %v2401, 0.0
        %v2506 = vmax.f32 %v2403, 0.0
        %v2507 = vmax.f32 %v2405, 0.0
        %v2508 = vmax.f32 %v2407, 0.0
        %v2509 = vmax.f32 %v2411, 0.0
        %v2510 = vmax.f32 %v2413, 0.0
        %v2511 = vmax.f32 %v2415, 0.0
        %v2512 = vmax.f32 %v2417, 0.0
        %v2513 = vmax.f32 %v2421, 0.0
        %v2514 = vmax.f32 %v2423, 0.0
        %v2515 = vmax.f32 %v2425, 0.0
        %v2516 = vmax.f32 %v2427, 0.0
        %v2517 = vmax.f32 %v2431, 0.0
        %v2518 = vmax.f32 %v2433, 0.0
        %v2519 = vmax.f32 %v2435, 0.0
        %v2520 = vmax.f32 %v2437, 0.0
        %v2521 = vmax.f32 %v2441, 0.0
        %v2522 = vmax.f32 %v2443, 0.0
        %v2523 = vmax.f32 %v2445, 0.0
        %v2524 = vmax.f32 %v2447, 0.0
        %v2525 = vmax.f32 %v2451, 0.0
        %v2526 = vmax.f32 %v2453, 0.0
        %v2527 = vmax.f32 %v2455, 0.0
        %v2528 = vmax.f32 %v2457, 0.0
        %v2529 = vmax.f32 %v2461, 0.0
        %v2530 = vmax.f32 %v2463, 0.0
        %v2531 = vmax.f32 %v2465, 0.0
        %v2532 = vmax.f32 %v2467, 0.0
        %v2533 = vpack.c.bf16 %v2471, %v2469
        %v2534 = vpack.c.bf16 %v2472, %v2470
        %v2535 = vpack.c.bf16 %v2475, %v2473
        %v2536 = vpack.c.bf16 %v2476, %v2474
        %v2537 = vpack.c.bf16 %v2479, %v2477
        %v2538 = vpack.c.bf16 %v2480, %v2478
        %v2539 = vpack.c.bf16 %v2483, %v2481
        %v2540 = vpack.c.bf16 %v2484, %v2482
        %v2541 = vpack.c.bf16 %v2487, %v2485
        %v2542 = vpack.c.bf16 %v2488, %v2486
        %v2543 = vpack.c.bf16 %v2491, %v2489
        %v2544 = vpack.c.bf16 %v2492, %v2490
        %v2545 = vpack.c.bf16 %v2495, %v2493
        %v2546 = vpack.c.bf16 %v2496, %v2494
        %v2547 = vpack.c.bf16 %v2499, %v2497
        %v2548 = vpack.c.bf16 %v2500, %v2498
        %v2549 = vpack.c.bf16 %v2503, %v2501
        %v2550 = vpack.c.bf16 %v2504, %v2502
        %v2551 = vpack.c.bf16 %v2507, %v2505
        %v2552 = vpack.c.bf16 %v2508, %v2506
        %v2553 = vpack.c.bf16 %v2511, %v2509
        %v2554 = vpack.c.bf16 %v2512, %v2510
        %v2555 = vpack.c.bf16 %v2515, %v2513
        %v2556 = vpack.c.bf16 %v2516, %v2514
        %v2557 = vpack.c.bf16 %v2519, %v2517
        %v2558 = vpack.c.bf16 %v2520, %v2518
        %v2559 = vpack.c.bf16 %v2523, %v2521
        %v2560 = vpack.c.bf16 %v2524, %v2522
        %v2561 = vpack.c.bf16 %v2527, %v2525
        %v2562 = vpack.c.bf16 %v2528, %v2526
        %v2563 = vpack.c.bf16 %v2531, %v2529
        %v2564 = vpack.c.bf16 %v2532, %v2530
        %v2597 = vunpack.c.l.b16 %v2533
        %v2598 = vunpack.c.l.b16 %v2534
        %v2599 = vunpack.c.h.b16 %v2533
        %v2600 = vunpack.c.h.b16 %v2534
        %v2601 = vunpack.c.l.b16 %v2535
        %v2602 = vunpack.c.l.b16 %v2536
        %v2603 = vunpack.c.h.b16 %v2535
        %v2604 = vunpack.c.h.b16 %v2536
        %v2605 = vunpack.c.l.b16 %v2537
        %v2606 = vunpack.c.l.b16 %v2538
        %v2607 = vunpack.c.h.b16 %v2537
        %v2608 = vunpack.c.h.b16 %v2538
        %v2609 = vunpack.c.l.b16 %v2539
        %v2610 = vunpack.c.l.b16 %v2540
        %v2611 = vunpack.c.h.b16 %v2539
        %v2612 = vunpack.c.h.b16 %v2540
        %v2613 = vunpack.c.l.b16 %v2541
        %v2614 = vunpack.c.l.b16 %v2542
        %v2615 = vunpack.c.h.b16 %v2541
        %v2616 = vunpack.c.h.b16 %v2542
        %v2617 = vunpack.c.l.b16 %v2543
        %v2618 = vunpack.c.l.b16 %v2544
        %v2619 = vunpack.c.h.b16 %v2543
        %v2620 = vunpack.c.h.b16 %v2544
        %v2621 = vunpack.c.l.b16 %v2545
        %v2622 = vunpack.c.l.b16 %v2546
        %v2623 = vunpack.c.h.b16 %v2545
        %v2624 = vunpack.c.h.b16 %v2546
        %v2625 = vunpack.c.l.b16 %v2547
        %v2626 = vunpack.c.l.b16 %v2548
        %v2627 = vunpack.c.h.b16 %v2547
        %v2628 = vunpack.c.h.b16 %v2548
        %v2629 = vunpack.c.l.b16 %v2549
        %v2630 = vunpack.c.l.b16 %v2550
        %v2631 = vunpack.c.h.b16 %v2549
        %v2632 = vunpack.c.h.b16 %v2550
        %v2633 = vunpack.c.l.b16 %v2551
        %v2634 = vunpack.c.l.b16 %v2552
        %v2635 = vunpack.c.h.b16 %v2551
        %v2636 = vunpack.c.h.b16 %v2552
        %v2637 = vunpack.c.l.b16 %v2553
        %v2638 = vunpack.c.l.b16 %v2554
        %v2639 = vunpack.c.h.b16 %v2553
        %v2640 = vunpack.c.h.b16 %v2554
        %v2641 = vunpack.c.l.b16 %v2555
        %v2642 = vunpack.c.l.b16 %v2556
        %v2643 = vunpack.c.h.b16 %v2555
        %v2644 = vunpack.c.h.b16 %v2556
        %v2645 = vunpack.c.l.b16 %v2557
        %v2646 = vunpack.c.l.b16 %v2558
        %v2647 = vunpack.c.h.b16 %v2557
        %v2648 = vunpack.c.h.b16 %v2558
        %v2649 = vunpack.c.l.b16 %v2559
        %v2650 = vunpack.c.l.b16 %v2560
        %v2651 = vunpack.c.h.b16 %v2559
        %v2652 = vunpack.c.h.b16 %v2560
        %v2653 = vunpack.c.l.b16 %v2561
        %v2654 = vunpack.c.l.b16 %v2562
        %v2655 = vunpack.c.h.b16 %v2561
        %v2656 = vunpack.c.h.b16 %v2562
        %v2657 = vunpack.c.l.b16 %v2563
        %v2658 = vunpack.c.l.b16 %v2564
        %v2659 = vunpack.c.h.b16 %v2563
        %v2660 = vunpack.c.h.b16 %v2564
        %v2661 = vpack.c.b16 %v2598, %v2597
        %v2662 = vpack.c.b16 %v2600, %v2599
        %v2663 = vpack.c.b16 %v2602, %v2601
        %v2664 = vpack.c.b16 %v2604, %v2603
        %v2665 = vpack.c.b16 %v2606, %v2605
        %v2666 = vpack.c.b16 %v2608, %v2607
        %v2667 = vpack.c.b16 %v2610, %v2609
        %v2668 = vpack.c.b16 %v2612, %v2611
        %v2669 = vpack.c.b16 %v2614, %v2613
        %v2670 = vpack.c.b16 %v2616, %v2615
        %v2671 = vpack.c.b16 %v2618, %v2617
        %v2672 = vpack.c.b16 %v2620, %v2619
        %v2673 = vpack.c.b16 %v2622, %v2621
        %v2674 = vpack.c.b16 %v2624, %v2623
        %v2675 = vpack.c.b16 %v2626, %v2625
        %v2676 = vpack.c.b16 %v2628, %v2627
        %v2677 = vpack.c.b16 %v2630, %v2629
        %v2678 = vpack.c.b16 %v2632, %v2631
        %v2679 = vpack.c.b16 %v2634, %v2633
        %v2680 = vpack.c.b16 %v2636, %v2635
        %v2681 = vpack.c.b16 %v2638, %v2637
        %v2682 = vpack.c.b16 %v2640, %v2639
        %v2683 = vpack.c.b16 %v2642, %v2641
        %v2684 = vpack.c.b16 %v2644, %v2643
        %v2685 = vpack.c.b16 %v2646, %v2645
        %v2686 = vpack.c.b16 %v2648, %v2647
        %v2687 = vpack.c.b16 %v2650, %v2649
        %v2688 = vpack.c.b16 %v2652, %v2651
        %v2689 = vpack.c.b16 %v2654, %v2653
        %v2690 = vpack.c.b16 %v2656, %v2655
        %v2691 = vpack.c.b16 %v2658, %v2657
        %v2692 = vpack.c.b16 %v2660, %v2659
        %2725 = vst [vmem:[#allocation2 + $0x18] sm:$0xff] %v2661
        %2726 = vst [vmem:[#allocation2 + $0x38] sm:$0xff] %v2662
        %2727 = vst [vmem:[#allocation2 + $0x58] sm:$0xff] %v2663
        %2728 = vst [vmem:[#allocation2 + $0x78] sm:$0xff] %v2664
        %2729 = vst [vmem:[#allocation2 + $0x98] sm:$0xff] %v2665
        %2730 = vst [vmem:[#allocation2 + $0xb8] sm:$0xff] %v2666
        %2731 = vst [vmem:[#allocation2 + $0xd8] sm:$0xff] %v2667
        %2732 = vst [vmem:[#allocation2 + $0xf8] sm:$0xff] %v2668
        %2733 = vst [vmem:[#allocation2 + $0x118] sm:$0xff] %v2669
        %2734 = vst [vmem:[#allocation2 + $0x138] sm:$0xff] %v2670
        %2735 = vst [vmem:[#allocation2 + $0x158] sm:$0xff] %v2671
        %2736 = vst [vmem:[#allocation2 + $0x178] sm:$0xff] %v2672
        %2737 = vst [vmem:[#allocation2 + $0x198] sm:$0xff] %v2673
        %2738 = vst [vmem:[#allocation2 + $0x1b8] sm:$0xff] %v2674
        %2739 = vst [vmem:[#allocation2 + $0x1d8] sm:$0xff] %v2675
        %2740 = vst [vmem:[#allocation2 + $0x1f8] sm:$0xff] %v2676
        %2741 = vst [vmem:[#allocation2 + $0x218] sm:$0xff] %v2677
        %2742 = vst [vmem:[#allocation2 + $0x238] sm:$0xff] %v2678
        %2743 = vst [vmem:[#allocation2 + $0x258] sm:$0xff] %v2679
        %2744 = vst [vmem:[#allocation2 + $0x278] sm:$0xff] %v2680
        %2745 = vst [vmem:[#allocation2 + $0x298] sm:$0xff] %v2681
        %2746 = vst [vmem:[#allocation2 + $0x2b8] sm:$0xff] %v2682
        %2747 = vst [vmem:[#allocation2 + $0x2d8] sm:$0xff] %v2683
        %2748 = vst [vmem:[#allocation2 + $0x2f8] sm:$0xff] %v2684
        %2749 = vst [vmem:[#allocation2 + $0x318] sm:$0xff] %v2685
        %2750 = vst [vmem:[#allocation2 + $0x338] sm:$0xff] %v2686
        %2751 = vst [vmem:[#allocation2 + $0x358] sm:$0xff] %v2687
        %2752 = vst [vmem:[#allocation2 + $0x378] sm:$0xff] %v2688
        %2753 = vst [vmem:[#allocation2 + $0x398] sm:$0xff] %v2689
        %2754 = vst [vmem:[#allocation2 + $0x3b8] sm:$0xff] %v2690
        %2755 = vst [vmem:[#allocation2 + $0x3d8] sm:$0xff] %v2691
        %2756 = vst [vmem:[#allocation2 + $0x3f8] sm:$0xff] %v2692
        %v2757 = vld [vmem:[#allocation2] sm:$0xff]
        %v2758 = vld [vmem:[#allocation2 + $0x8] sm:$0xff]
        %v2759 = vld [vmem:[#allocation2 + $0x10] sm:$0xff]
        %v2760 = vld [vmem:[#allocation2 + $0x18] sm:$0xff]
        %v2761 = vld [vmem:[#allocation2 + $0x20] sm:$0xff]
        %v2762 = vld [vmem:[#allocation2 + $0x28] sm:$0xff]
        %v2763 = vld [vmem:[#allocation2 + $0x30] sm:$0xff]
        %v2764 = vld [vmem:[#allocation2 + $0x38] sm:$0xff]
        %v2765 = vld [vmem:[#allocation2 + $0x40] sm:$0xff]
        %v2766 = vld [vmem:[#allocation2 + $0x48] sm:$0xff]
        %v2767 = vld [vmem:[#allocation2 + $0x50] sm:$0xff]
        %v2768 = vld [vmem:[#allocation2 + $0x58] sm:$0xff]
        %v2769 = vld [vmem:[#allocation2 + $0x60] sm:$0xff]
        %v2770 = vld [vmem:[#allocation2 + $0x68] sm:$0xff]
        %v2771 = vld [vmem:[#allocation2 + $0x70] sm:$0xff]
        %v2772 = vld [vmem:[#allocation2 + $0x78] sm:$0xff]
        %v2773 = vld [vmem:[#allocation2 + $0x80] sm:$0xff]
        %v2774 = vld [vmem:[#allocation2 + $0x88] sm:$0xff]
        %v2775 = vld [vmem:[#allocation2 + $0x90] sm:$0xff]
        %v2776 = vld [vmem:[#allocation2 + $0x98] sm:$0xff]
        %v2777 = vld [vmem:[#allocation2 + $0xa0] sm:$0xff]
        %v2778 = vld [vmem:[#allocation2 + $0xa8] sm:$0xff]
        %v2779 = vld [vmem:[#allocation2 + $0xb0] sm:$0xff]
        %v2780 = vld [vmem:[#allocation2 + $0xb8] sm:$0xff]
        %v2781 = vld [vmem:[#allocation2 + $0xc0] sm:$0xff]
        %v2782 = vld [vmem:[#allocation2 + $0xc8] sm:$0xff]
        %v2783 = vld [vmem:[#allocation2 + $0xd0] sm:$0xff]
        %v2784 = vld [vmem:[#allocation2 + $0xd8] sm:$0xff]
        %v2785 = vld [vmem:[#allocation2 + $0xe0] sm:$0xff]
        %v2786 = vld [vmem:[#allocation2 + $0xe8] sm:$0xff]
        %v2787 = vld [vmem:[#allocation2 + $0xf0] sm:$0xff]
        %v2788 = vld [vmem:[#allocation2 + $0xf8] sm:$0xff]
        %v2789 = vld [vmem:[#allocation2 + $0x100] sm:$0xff]
        %v2790 = vld [vmem:[#allocation2 + $0x108] sm:$0xff]
        %v2791 = vld [vmem:[#allocation2 + $0x110] sm:$0xff]
        %v2792 = vld [vmem:[#allocation2 + $0x118] sm:$0xff]
        %v2793 = vld [vmem:[#allocation2 + $0x120] sm:$0xff]
        %v2794 = vld [vmem:[#allocation2 + $0x128] sm:$0xff]
        %v2795 = vld [vmem:[#allocation2 + $0x130] sm:$0xff]
        %v2796 = vld [vmem:[#allocation2 + $0x138] sm:$0xff]
        %v2797 = vld [vmem:[#allocation2 + $0x140] sm:$0xff]
        %v2798 = vld [vmem:[#allocation2 + $0x148] sm:$0xff]
        %v2799 = vld [vmem:[#allocation2 + $0x150] sm:$0xff]
        %v2800 = vld [vmem:[#allocation2 + $0x158] sm:$0xff]
        %v2801 = vld [vmem:[#allocation2 + $0x160] sm:$0xff]
        %v2802 = vld [vmem:[#allocation2 + $0x168] sm:$0xff]
        %v2803 = vld [vmem:[#allocation2 + $0x170] sm:$0xff]
        %v2804 = vld [vmem:[#allocation2 + $0x178] sm:$0xff]
        %v2805 = vld [vmem:[#allocation2 + $0x180] sm:$0xff]
        %v2806 = vld [vmem:[#allocation2 + $0x188] sm:$0xff]
        %v2807 = vld [vmem:[#allocation2 + $0x190] sm:$0xff]
        %v2808 = vld [vmem:[#allocation2 + $0x198] sm:$0xff]
        %v2809 = vld [vmem:[#allocation2 + $0x1a0] sm:$0xff]
        %v2810 = vld [vmem:[#allocation2 + $0x1a8] sm:$0xff]
        %v2811 = vld [vmem:[#allocation2 + $0x1b0] sm:$0xff]
        %v2812 = vld [vmem:[#allocation2 + $0x1b8] sm:$0xff]
        %v2813 = vld [vmem:[#allocation2 + $0x1c0] sm:$0xff]
        %v2814 = vld [vmem:[#allocation2 + $0x1c8] sm:$0xff]
        %v2815 = vld [vmem:[#allocation2 + $0x1d0] sm:$0xff]
        %v2816 = vld [vmem:[#allocation2 + $0x1d8] sm:$0xff]
        %v2817 = vld [vmem:[#allocation2 + $0x1e0] sm:$0xff]
        %v2818 = vld [vmem:[#allocation2 + $0x1e8] sm:$0xff]
        %v2819 = vld [vmem:[#allocation2 + $0x1f0] sm:$0xff]
        %v2820 = vld [vmem:[#allocation2 + $0x1f8] sm:$0xff]
        %v2821 = vld [vmem:[#allocation2 + $0x200] sm:$0xff]
        %v2822 = vld [vmem:[#allocation2 + $0x208] sm:$0xff]
        %v2823 = vld [vmem:[#allocation2 + $0x210] sm:$0xff]
        %v2824 = vld [vmem:[#allocation2 + $0x218] sm:$0xff]
        %v2825 = vld [vmem:[#allocation2 + $0x220] sm:$0xff]
        %v2826 = vld [vmem:[#allocation2 + $0x228] sm:$0xff]
        %v2827 = vld [vmem:[#allocation2 + $0x230] sm:$0xff]
        %v2828 = vld [vmem:[#allocation2 + $0x238] sm:$0xff]
        %v2829 = vld [vmem:[#allocation2 + $0x240] sm:$0xff]
        %v2830 = vld [vmem:[#allocation2 + $0x248] sm:$0xff]
        %v2831 = vld [vmem:[#allocation2 + $0x250] sm:$0xff]
        %v2832 = vld [vmem:[#allocation2 + $0x258] sm:$0xff]
        %v2833 = vld [vmem:[#allocation2 + $0x260] sm:$0xff]
        %v2834 = vld [vmem:[#allocation2 + $0x268] sm:$0xff]
        %v2835 = vld [vmem:[#allocation2 + $0x270] sm:$0xff]
        %v2836 = vld [vmem:[#allocation2 + $0x278] sm:$0xff]
        %v2837 = vld [vmem:[#allocation2 + $0x280] sm:$0xff]
        %v2838 = vld [vmem:[#allocation2 + $0x288] sm:$0xff]
        %v2839 = vld [vmem:[#allocation2 + $0x290] sm:$0xff]
        %v2840 = vld [vmem:[#allocation2 + $0x298] sm:$0xff]
        %v2841 = vld [vmem:[#allocation2 + $0x2a0] sm:$0xff]
        %v2842 = vld [vmem:[#allocation2 + $0x2a8] sm:$0xff]
        %v2843 = vld [vmem:[#allocation2 + $0x2b0] sm:$0xff]
        %v2844 = vld [vmem:[#allocation2 + $0x2b8] sm:$0xff]
        %v2845 = vld [vmem:[#allocation2 + $0x2c0] sm:$0xff]
        %v2846 = vld [vmem:[#allocation2 + $0x2c8] sm:$0xff]
        %v2847 = vld [vmem:[#allocation2 + $0x2d0] sm:$0xff]
        %v2848 = vld [vmem:[#allocation2 + $0x2d8] sm:$0xff]
        %v2849 = vld [vmem:[#allocation2 + $0x2e0] sm:$0xff]
        %v2850 = vld [vmem:[#allocation2 + $0x2e8] sm:$0xff]
        %v2851 = vld [vmem:[#allocation2 + $0x2f0] sm:$0xff]
        %v2852 = vld [vmem:[#allocation2 + $0x2f8] sm:$0xff]
        %v2853 = vld [vmem:[#allocation2 + $0x300] sm:$0xff]
        %v2854 = vld [vmem:[#allocation2 + $0x308] sm:$0xff]
        %v2855 = vld [vmem:[#allocation2 + $0x310] sm:$0xff]
        %v2856 = vld [vmem:[#allocation2 + $0x318] sm:$0xff]
        %v2857 = vld [vmem:[#allocation2 + $0x320] sm:$0xff]
        %v2858 = vld [vmem:[#allocation2 + $0x328] sm:$0xff]
        %v2859 = vld [vmem:[#allocation2 + $0x330] sm:$0xff]
        %v2860 = vld [vmem:[#allocation2 + $0x338] sm:$0xff]
        %v2861 = vld [vmem:[#allocation2 + $0x340] sm:$0xff]
        %v2862 = vld [vmem:[#allocation2 + $0x348] sm:$0xff]
        %v2863 = vld [vmem:[#allocation2 + $0x350] sm:$0xff]
        %v2864 = vld [vmem:[#allocation2 + $0x358] sm:$0xff]
        %v2865 = vld [vmem:[#allocation2 + $0x360] sm:$0xff]
        %v2866 = vld [vmem:[#allocation2 + $0x368] sm:$0xff]
        %v2867 = vld [vmem:[#allocation2 + $0x370] sm:$0xff]
        %v2868 = vld [vmem:[#allocation2 + $0x378] sm:$0xff]
        %v2869 = vld [vmem:[#allocation2 + $0x380] sm:$0xff]
        %v2870 = vld [vmem:[#allocation2 + $0x388] sm:$0xff]
        %v2871 = vld [vmem:[#allocation2 + $0x390] sm:$0xff]
        %v2872 = vld [vmem:[#allocation2 + $0x398] sm:$0xff]
        %v2873 = vld [vmem:[#allocation2 + $0x3a0] sm:$0xff]
        %v2874 = vld [vmem:[#allocation2 + $0x3a8] sm:$0xff]
        %v2875 = vld [vmem:[#allocation2 + $0x3b0] sm:$0xff]
        %v2876 = vld [vmem:[#allocation2 + $0x3b8] sm:$0xff]
        %v2877 = vld [vmem:[#allocation2 + $0x3c0] sm:$0xff]
        %v2878 = vld [vmem:[#allocation2 + $0x3c8] sm:$0xff]
        %v2879 = vld [vmem:[#allocation2 + $0x3d0] sm:$0xff]
        %v2880 = vld [vmem:[#allocation2 + $0x3d8] sm:$0xff]
        %v2881 = vld [vmem:[#allocation2 + $0x3e0] sm:$0xff]
        %v2882 = vld [vmem:[#allocation2 + $0x3e8] sm:$0xff]
        %v2883 = vld [vmem:[#allocation2 + $0x3f0] sm:$0xff]
        %v2884 = vld [vmem:[#allocation2 + $0x3f8] sm:$0xff]
        %v2885 = vld [vmem:[#allocation10] sm:$0xf]
        %v2886 = vld [vmem:[#allocation10 + $0x4] sm:$0xf]
        %v2887 = vld [vmem:[#allocation10 + $0x8] sm:$0xf]
        %v2888 = vld [vmem:[#allocation10 + $0xc] sm:$0xf]
        %v2889 = vld [vmem:[#allocation10 + $0x10] sm:$0xf]
        %v2890 = vld [vmem:[#allocation10 + $0x14] sm:$0xf]
        %v2891 = vld [vmem:[#allocation10 + $0x18] sm:$0xf]
        %v2892 = vld [vmem:[#allocation10 + $0x1c] sm:$0xf]
        %v2893 = vld [vmem:[#allocation10 + $0x20] sm:$0xf]
        %v2894 = vld [vmem:[#allocation10 + $0x24] sm:$0xf]
        %v2895 = vld [vmem:[#allocation10 + $0x28] sm:$0xf]
        %v2896 = vld [vmem:[#allocation10 + $0x2c] sm:$0xf]
        %v2897 = vld [vmem:[#allocation10 + $0x30] sm:$0xf]
        %v2898 = vld [vmem:[#allocation10 + $0x34] sm:$0xf]
        %v2899 = vld [vmem:[#allocation10 + $0x38] sm:$0xf]
        %v2900 = vld [vmem:[#allocation10 + $0x3c] sm:$0xf]
        %v2901 = vld [vmem:[#allocation10 + $0x40] sm:$0xf]
        %v2902 = vld [vmem:[#allocation10 + $0x44] sm:$0xf]
        %v2903 = vld [vmem:[#allocation10 + $0x48] sm:$0xf]
        %v2904 = vld [vmem:[#allocation10 + $0x4c] sm:$0xf]
        %v2905 = vld [vmem:[#allocation10 + $0x50] sm:$0xf]
        %v2906 = vld [vmem:[#allocation10 + $0x54] sm:$0xf]
        %v2907 = vld [vmem:[#allocation10 + $0x58] sm:$0xf]
        %v2908 = vld [vmem:[#allocation10 + $0x5c] sm:$0xf]
        %v2909 = vld [vmem:[#allocation10 + $0x60] sm:$0xf]
        %v2910 = vld [vmem:[#allocation10 + $0x64] sm:$0xf]
        %v2911 = vld [vmem:[#allocation10 + $0x68] sm:$0xf]
        %v2912 = vld [vmem:[#allocation10 + $0x6c] sm:$0xf]
        %v2913 = vld [vmem:[#allocation10 + $0x70] sm:$0xf]
        %v2914 = vld [vmem:[#allocation10 + $0x74] sm:$0xf]
        %v2915 = vld [vmem:[#allocation10 + $0x78] sm:$0xf]
        %v2916 = vld [vmem:[#allocation10 + $0x7c] sm:$0xf]
        %v2917 = vld [vmem:[#allocation10 + $0x80] sm:$0xf]
        %v2918 = vld [vmem:[#allocation10 + $0x84] sm:$0xf]
        %v2919 = vld [vmem:[#allocation10 + $0x88] sm:$0xf]
        %v2920 = vld [vmem:[#allocation10 + $0x8c] sm:$0xf]
        %v2921 = vld [vmem:[#allocation10 + $0x90] sm:$0xf]
        %v2922 = vld [vmem:[#allocation10 + $0x94] sm:$0xf]
        %v2923 = vld [vmem:[#allocation10 + $0x98] sm:$0xf]
        %v2924 = vld [vmem:[#allocation10 + $0x9c] sm:$0xf]
        %v2925 = vld [vmem:[#allocation10 + $0xa0] sm:$0xf]
        %v2926 = vld [vmem:[#allocation10 + $0xa4] sm:$0xf]
        %v2927 = vld [vmem:[#allocation10 + $0xa8] sm:$0xf]
        %v2928 = vld [vmem:[#allocation10 + $0xac] sm:$0xf]
        %v2929 = vld [vmem:[#allocation10 + $0xb0] sm:$0xf]
        %v2930 = vld [vmem:[#allocation10 + $0xb4] sm:$0xf]
        %v2931 = vld [vmem:[#allocation10 + $0xb8] sm:$0xf]
        %v2932 = vld [vmem:[#allocation10 + $0xbc] sm:$0xf]
        %v2933 = vld [vmem:[#allocation10 + $0xc0] sm:$0xf]
        %v2934 = vld [vmem:[#allocation10 + $0xc4] sm:$0xf]
        %v2935 = vld [vmem:[#allocation10 + $0xc8] sm:$0xf]
        %v2936 = vld [vmem:[#allocation10 + $0xcc] sm:$0xf]
        %v2937 = vld [vmem:[#allocation10 + $0xd0] sm:$0xf]
        %v2938 = vld [vmem:[#allocation10 + $0xd4] sm:$0xf]
        %v2939 = vld [vmem:[#allocation10 + $0xd8] sm:$0xf]
        %v2940 = vld [vmem:[#allocation10 + $0xdc] sm:$0xf]
        %v2941 = vld [vmem:[#allocation10 + $0xe0] sm:$0xf]
        %v2942 = vld [vmem:[#allocation10 + $0xe4] sm:$0xf]
        %v2943 = vld [vmem:[#allocation10 + $0xe8] sm:$0xf]
        %v2944 = vld [vmem:[#allocation10 + $0xec] sm:$0xf]
        %v2945 = vld [vmem:[#allocation10 + $0xf0] sm:$0xf]
        %v2946 = vld [vmem:[#allocation10 + $0xf4] sm:$0xf]
        %v2947 = vld [vmem:[#allocation10 + $0xf8] sm:$0xf]
        %v2948 = vld [vmem:[#allocation10 + $0xfc] sm:$0xf]
        %v2949 = vld [vmem:[#allocation10 + $0x100] sm:$0xf]
        %v2950 = vld [vmem:[#allocation10 + $0x104] sm:$0xf]
        %v2951 = vld [vmem:[#allocation10 + $0x108] sm:$0xf]
        %v2952 = vld [vmem:[#allocation10 + $0x10c] sm:$0xf]
        %v2953 = vld [vmem:[#allocation10 + $0x110] sm:$0xf]
        %v2954 = vld [vmem:[#allocation10 + $0x114] sm:$0xf]
        %v2955 = vld [vmem:[#allocation10 + $0x118] sm:$0xf]
        %v2956 = vld [vmem:[#allocation10 + $0x11c] sm:$0xf]
        %v2957 = vld [vmem:[#allocation10 + $0x120] sm:$0xf]
        %v2958 = vld [vmem:[#allocation10 + $0x124] sm:$0xf]
        %v2959 = vld [vmem:[#allocation10 + $0x128] sm:$0xf]
        %v2960 = vld [vmem:[#allocation10 + $0x12c] sm:$0xf]
        %v2961 = vld [vmem:[#allocation10 + $0x130] sm:$0xf]
        %v2962 = vld [vmem:[#allocation10 + $0x134] sm:$0xf]
        %v2963 = vld [vmem:[#allocation10 + $0x138] sm:$0xf]
        %v2964 = vld [vmem:[#allocation10 + $0x13c] sm:$0xf]
        %v2965 = vld [vmem:[#allocation10 + $0x140] sm:$0xf]
        %v2966 = vld [vmem:[#allocation10 + $0x144] sm:$0xf]
        %v2967 = vld [vmem:[#allocation10 + $0x148] sm:$0xf]
        %v2968 = vld [vmem:[#allocation10 + $0x14c] sm:$0xf]
        %v2969 = vld [vmem:[#allocation10 + $0x150] sm:$0xf]
        %v2970 = vld [vmem:[#allocation10 + $0x154] sm:$0xf]
        %v2971 = vld [vmem:[#allocation10 + $0x158] sm:$0xf]
        %v2972 = vld [vmem:[#allocation10 + $0x15c] sm:$0xf]
        %v2973 = vld [vmem:[#allocation10 + $0x160] sm:$0xf]
        %v2974 = vld [vmem:[#allocation10 + $0x164] sm:$0xf]
        %v2975 = vld [vmem:[#allocation10 + $0x168] sm:$0xf]
        %v2976 = vld [vmem:[#allocation10 + $0x16c] sm:$0xf]
        %v2977 = vld [vmem:[#allocation10 + $0x170] sm:$0xf]
        %v2978 = vld [vmem:[#allocation10 + $0x174] sm:$0xf]
        %v2979 = vld [vmem:[#allocation10 + $0x178] sm:$0xf]
        %v2980 = vld [vmem:[#allocation10 + $0x17c] sm:$0xf]
        %v2981 = vld [vmem:[#allocation10 + $0x180] sm:$0xf]
        %v2982 = vld [vmem:[#allocation10 + $0x184] sm:$0xf]
        %v2983 = vld [vmem:[#allocation10 + $0x188] sm:$0xf]
        %v2984 = vld [vmem:[#allocation10 + $0x18c] sm:$0xf]
        %v2985 = vld [vmem:[#allocation10 + $0x190] sm:$0xf]
        %v2986 = vld [vmem:[#allocation10 + $0x194] sm:$0xf]
        %v2987 = vld [vmem:[#allocation10 + $0x198] sm:$0xf]
        %v2988 = vld [vmem:[#allocation10 + $0x19c] sm:$0xf]
        %v2989 = vld [vmem:[#allocation10 + $0x1a0] sm:$0xf]
        %v2990 = vld [vmem:[#allocation10 + $0x1a4] sm:$0xf]
        %v2991 = vld [vmem:[#allocation10 + $0x1a8] sm:$0xf]
        %v2992 = vld [vmem:[#allocation10 + $0x1ac] sm:$0xf]
        %v2993 = vld [vmem:[#allocation10 + $0x1b0] sm:$0xf]
        %v2994 = vld [vmem:[#allocation10 + $0x1b4] sm:$0xf]
        %v2995 = vld [vmem:[#allocation10 + $0x1b8] sm:$0xf]
        %v2996 = vld [vmem:[#allocation10 + $0x1bc] sm:$0xf]
        %v2997 = vld [vmem:[#allocation10 + $0x1c0] sm:$0xf]
        %v2998 = vld [vmem:[#allocation10 + $0x1c4] sm:$0xf]
        %v2999 = vld [vmem:[#allocation10 + $0x1c8] sm:$0xf]
        %v3000 = vld [vmem:[#allocation10 + $0x1cc] sm:$0xf]
        %v3001 = vld [vmem:[#allocation10 + $0x1d0] sm:$0xf]
        %v3002 = vld [vmem:[#allocation10 + $0x1d4] sm:$0xf]
        %v3003 = vld [vmem:[#allocation10 + $0x1d8] sm:$0xf]
        %v3004 = vld [vmem:[#allocation10 + $0x1dc] sm:$0xf]
        %v3005 = vld [vmem:[#allocation10 + $0x1e0] sm:$0xf]
        %v3006 = vld [vmem:[#allocation10 + $0x1e4] sm:$0xf]
        %v3007 = vld [vmem:[#allocation10 + $0x1e8] sm:$0xf]
        %v3008 = vld [vmem:[#allocation10 + $0x1ec] sm:$0xf]
        %v3009 = vld [vmem:[#allocation10 + $0x1f0] sm:$0xf]
        %v3010 = vld [vmem:[#allocation10 + $0x1f4] sm:$0xf]
        %v3011 = vld [vmem:[#allocation10 + $0x1f8] sm:$0xf]
        %v3012 = vld [vmem:[#allocation10 + $0x1fc] sm:$0xf]
        %v3013 = vld [vmem:[%s4] sm:$0x1]
        %v3015 = vlaneseq
        %v3016 = vshrl.u32 %v3015, 7
        %v3017 = vsub.s32 0, %v3016
        %v3018 = vrot.slane %v3013, %v3017
        %v3148 = vunpack.c.l.b16 %v2757
        %v3149 = vunpack.c.h.b16 %v2757
        %v3150 = vunpack.c.l.b16 %v2758
        %v3151 = vunpack.c.h.b16 %v2758
        %v3152 = vunpack.c.l.b16 %v2759
        %v3153 = vunpack.c.h.b16 %v2759
        %v3154 = vunpack.c.l.b16 %v2760
        %v3155 = vunpack.c.h.b16 %v2760
        %v3156 = vunpack.c.l.b16 %v2761
        %v3157 = vunpack.c.h.b16 %v2761
        %v3158 = vunpack.c.l.b16 %v2762
        %v3159 = vunpack.c.h.b16 %v2762
        %v3160 = vunpack.c.l.b16 %v2763
        %v3161 = vunpack.c.h.b16 %v2763
        %v3162 = vunpack.c.l.b16 %v2764
        %v3163 = vunpack.c.h.b16 %v2764
        %v3164 = vunpack.c.l.b16 %v2765
        %v3165 = vunpack.c.h.b16 %v2765
        %v3166 = vunpack.c.l.b16 %v2766
        %v3167 = vunpack.c.h.b16 %v2766
        %v3168 = vunpack.c.l.b16 %v2767
        %v3169 = vunpack.c.h.b16 %v2767
        %v3170 = vunpack.c.l.b16 %v2768
        %v3171 = vunpack.c.h.b16 %v2768
        %v3172 = vunpack.c.l.b16 %v2769
        %v3173 = vunpack.c.h.b16 %v2769
        %v3174 = vunpack.c.l.b16 %v2770
        %v3175 = vunpack.c.h.b16 %v2770
        %v3176 = vunpack.c.l.b16 %v2771
        %v3177 = vunpack.c.h.b16 %v2771
        %v3178 = vunpack.c.l.b16 %v2772
        %v3179 = vunpack.c.h.b16 %v2772
        %v3180 = vunpack.c.l.b16 %v2773
        %v3181 = vunpack.c.h.b16 %v2773
        %v3182 = vunpack.c.l.b16 %v2774
        %v3183 = vunpack.c.h.b16 %v2774
        %v3184 = vunpack.c.l.b16 %v2775
        %v3185 = vunpack.c.h.b16 %v2775
        %v3186 = vunpack.c.l.b16 %v2776
        %v3187 = vunpack.c.h.b16 %v2776
        %v3188 = vunpack.c.l.b16 %v2777
        %v3189 = vunpack.c.h.b16 %v2777
        %v3190 = vunpack.c.l.b16 %v2778
        %v3191 = vunpack.c.h.b16 %v2778
        %v3192 = vunpack.c.l.b16 %v2779
        %v3193 = vunpack.c.h.b16 %v2779
        %v3194 = vunpack.c.l.b16 %v2780
        %v3195 = vunpack.c.h.b16 %v2780
        %v3196 = vunpack.c.l.b16 %v2781
        %v3197 = vunpack.c.h.b16 %v2781
        %v3198 = vunpack.c.l.b16 %v2782
        %v3199 = vunpack.c.h.b16 %v2782
        %v3200 = vunpack.c.l.b16 %v2783
        %v3201 = vunpack.c.h.b16 %v2783
        %v3202 = vunpack.c.l.b16 %v2784
        %v3203 = vunpack.c.h.b16 %v2784
        %v3204 = vunpack.c.l.b16 %v2785
        %v3205 = vunpack.c.h.b16 %v2785
        %v3206 = vunpack.c.l.b16 %v2786
        %v3207 = vunpack.c.h.b16 %v2786
        %v3208 = vunpack.c.l.b16 %v2787
        %v3209 = vunpack.c.h.b16 %v2787
        %v3210 = vunpack.c.l.b16 %v2788
        %v3211 = vunpack.c.h.b16 %v2788
        %v3212 = vunpack.c.l.b16 %v2789
        %v3213 = vunpack.c.h.b16 %v2789
        %v3214 = vunpack.c.l.b16 %v2790
        %v3215 = vunpack.c.h.b16 %v2790
        %v3216 = vunpack.c.l.b16 %v2791
        %v3217 = vunpack.c.h.b16 %v2791
        %v3218 = vunpack.c.l.b16 %v2792
        %v3219 = vunpack.c.h.b16 %v2792
        %v3220 = vunpack.c.l.b16 %v2793
        %v3221 = vunpack.c.h.b16 %v2793
        %v3222 = vunpack.c.l.b16 %v2794
        %v3223 = vunpack.c.h.b16 %v2794
        %v3224 = vunpack.c.l.b16 %v2795
        %v3225 = vunpack.c.h.b16 %v2795
        %v3226 = vunpack.c.l.b16 %v2796
        %v3227 = vunpack.c.h.b16 %v2796
        %v3228 = vunpack.c.l.b16 %v2797
        %v3229 = vunpack.c.h.b16 %v2797
        %v3230 = vunpack.c.l.b16 %v2798
        %v3231 = vunpack.c.h.b16 %v2798
        %v3232 = vunpack.c.l.b16 %v2799
        %v3233 = vunpack.c.h.b16 %v2799
        %v3234 = vunpack.c.l.b16 %v2800
        %v3235 = vunpack.c.h.b16 %v2800
        %v3236 = vunpack.c.l.b16 %v2801
        %v3237 = vunpack.c.h.b16 %v2801
        %v3238 = vunpack.c.l.b16 %v2802
        %v3239 = vunpack.c.h.b16 %v2802
        %v3240 = vunpack.c.l.b16 %v2803
        %v3241 = vunpack.c.h.b16 %v2803
        %v3242 = vunpack.c.l.b16 %v2804
        %v3243 = vunpack.c.h.b16 %v2804
        %v3244 = vunpack.c.l.b16 %v2805
        %v3245 = vunpack.c.h.b16 %v2805
        %v3246 = vunpack.c.l.b16 %v2806
        %v3247 = vunpack.c.h.b16 %v2806
        %v3248 = vunpack.c.l.b16 %v2807
        %v3249 = vunpack.c.h.b16 %v2807
        %v3250 = vunpack.c.l.b16 %v2808
        %v3251 = vunpack.c.h.b16 %v2808
        %v3252 = vunpack.c.l.b16 %v2809
        %v3253 = vunpack.c.h.b16 %v2809
        %v3254 = vunpack.c.l.b16 %v2810
        %v3255 = vunpack.c.h.b16 %v2810
        %v3256 = vunpack.c.l.b16 %v2811
        %v3257 = vunpack.c.h.b16 %v2811
        %v3258 = vunpack.c.l.b16 %v2812
        %v3259 = vunpack.c.h.b16 %v2812
        %v3260 = vunpack.c.l.b16 %v2813
        %v3261 = vunpack.c.h.b16 %v2813
        %v3262 = vunpack.c.l.b16 %v2814
        %v3263 = vunpack.c.h.b16 %v2814
        %v3264 = vunpack.c.l.b16 %v2815
        %v3265 = vunpack.c.h.b16 %v2815
        %v3266 = vunpack.c.l.b16 %v2816
        %v3267 = vunpack.c.h.b16 %v2816
        %v3268 = vunpack.c.l.b16 %v2817
        %v3269 = vunpack.c.h.b16 %v2817
        %v3270 = vunpack.c.l.b16 %v2818
        %v3271 = vunpack.c.h.b16 %v2818
        %v3272 = vunpack.c.l.b16 %v2819
        %v3273 = vunpack.c.h.b16 %v2819
        %v3274 = vunpack.c.l.b16 %v2820
        %v3275 = vunpack.c.h.b16 %v2820
        %v3276 = vunpack.c.l.b16 %v2821
        %v3277 = vunpack.c.h.b16 %v2821
        %v3278 = vunpack.c.l.b16 %v2822
        %v3279 = vunpack.c.h.b16 %v2822
        %v3280 = vunpack.c.l.b16 %v2823
        %v3281 = vunpack.c.h.b16 %v2823
        %v3282 = vunpack.c.l.b16 %v2824
        %v3283 = vunpack.c.h.b16 %v2824
        %v3284 = vunpack.c.l.b16 %v2825
        %v3285 = vunpack.c.h.b16 %v2825
        %v3286 = vunpack.c.l.b16 %v2826
        %v3287 = vunpack.c.h.b16 %v2826
        %v3288 = vunpack.c.l.b16 %v2827
        %v3289 = vunpack.c.h.b16 %v2827
        %v3290 = vunpack.c.l.b16 %v2828
        %v3291 = vunpack.c.h.b16 %v2828
        %v3292 = vunpack.c.l.b16 %v2829
        %v3293 = vunpack.c.h.b16 %v2829
        %v3294 = vunpack.c.l.b16 %v2830
        %v3295 = vunpack.c.h.b16 %v2830
        %v3296 = vunpack.c.l.b16 %v2831
        %v3297 = vunpack.c.h.b16 %v2831
        %v3298 = vunpack.c.l.b16 %v2832
        %v3299 = vunpack.c.h.b16 %v2832
        %v3300 = vunpack.c.l.b16 %v2833
        %v3301 = vunpack.c.h.b16 %v2833
        %v3302 = vunpack.c.l.b16 %v2834
        %v3303 = vunpack.c.h.b16 %v2834
        %v3304 = vunpack.c.l.b16 %v2835
        %v3305 = vunpack.c.h.b16 %v2835
        %v3306 = vunpack.c.l.b16 %v2836
        %v3307 = vunpack.c.h.b16 %v2836
        %v3308 = vunpack.c.l.b16 %v2837
        %v3309 = vunpack.c.h.b16 %v2837
        %v3310 = vunpack.c.l.b16 %v2838
        %v3311 = vunpack.c.h.b16 %v2838
        %v3312 = vunpack.c.l.b16 %v2839
        %v3313 = vunpack.c.h.b16 %v2839
        %v3314 = vunpack.c.l.b16 %v2840
        %v3315 = vunpack.c.h.b16 %v2840
        %v3316 = vunpack.c.l.b16 %v2841
        %v3317 = vunpack.c.h.b16 %v2841
        %v3318 = vunpack.c.l.b16 %v2842
        %v3319 = vunpack.c.h.b16 %v2842
        %v3320 = vunpack.c.l.b16 %v2843
        %v3321 = vunpack.c.h.b16 %v2843
        %v3322 = vunpack.c.l.b16 %v2844
        %v3323 = vunpack.c.h.b16 %v2844
        %v3324 = vunpack.c.l.b16 %v2845
        %v3325 = vunpack.c.h.b16 %v2845
        %v3326 = vunpack.c.l.b16 %v2846
        %v3327 = vunpack.c.h.b16 %v2846
        %v3328 = vunpack.c.l.b16 %v2847
        %v3329 = vunpack.c.h.b16 %v2847
        %v3330 = vunpack.c.l.b16 %v2848
        %v3331 = vunpack.c.h.b16 %v2848
        %v3332 = vunpack.c.l.b16 %v2849
        %v3333 = vunpack.c.h.b16 %v2849
        %v3334 = vunpack.c.l.b16 %v2850
        %v3335 = vunpack.c.h.b16 %v2850
        %v3336 = vunpack.c.l.b16 %v2851
        %v3337 = vunpack.c.h.b16 %v2851
        %v3338 = vunpack.c.l.b16 %v2852
        %v3339 = vunpack.c.h.b16 %v2852
        %v3340 = vunpack.c.l.b16 %v2853
        %v3341 = vunpack.c.h.b16 %v2853
        %v3342 = vunpack.c.l.b16 %v2854
        %v3343 = vunpack.c.h.b16 %v2854
        %v3344 = vunpack.c.l.b16 %v2855
        %v3345 = vunpack.c.h.b16 %v2855
        %v3346 = vunpack.c.l.b16 %v2856
        %v3347 = vunpack.c.h.b16 %v2856
        %v3348 = vunpack.c.l.b16 %v2857
        %v3349 = vunpack.c.h.b16 %v2857
        %v3350 = vunpack.c.l.b16 %v2858
        %v3351 = vunpack.c.h.b16 %v2858
        %v3352 = vunpack.c.l.b16 %v2859
        %v3353 = vunpack.c.h.b16 %v2859
        %v3354 = vunpack.c.l.b16 %v2860
        %v3355 = vunpack.c.h.b16 %v2860
        %v3356 = vunpack.c.l.b16 %v2861
        %v3357 = vunpack.c.h.b16 %v2861
        %v3358 = vunpack.c.l.b16 %v2862
        %v3359 = vunpack.c.h.b16 %v2862
        %v3360 = vunpack.c.l.b16 %v2863
        %v3361 = vunpack.c.h.b16 %v2863
        %v3362 = vunpack.c.l.b16 %v2864
        %v3363 = vunpack.c.h.b16 %v2864
        %v3364 = vunpack.c.l.b16 %v2865
        %v3365 = vunpack.c.h.b16 %v2865
        %v3366 = vunpack.c.l.b16 %v2866
        %v3367 = vunpack.c.h.b16 %v2866
        %v3368 = vunpack.c.l.b16 %v2867
        %v3369 = vunpack.c.h.b16 %v2867
        %v3370 = vunpack.c.l.b16 %v2868
        %v3371 = vunpack.c.h.b16 %v2868
        %v3372 = vunpack.c.l.b16 %v2869
        %v3373 = vunpack.c.h.b16 %v2869
        %v3374 = vunpack.c.l.b16 %v2870
        %v3375 = vunpack.c.h.b16 %v2870
        %v3376 = vunpack.c.l.b16 %v2871
        %v3377 = vunpack.c.h.b16 %v2871
        %v3378 = vunpack.c.l.b16 %v2872
        %v3379 = vunpack.c.h.b16 %v2872
        %v3380 = vunpack.c.l.b16 %v2873
        %v3381 = vunpack.c.h.b16 %v2873
        %v3382 = vunpack.c.l.b16 %v2874
        %v3383 = vunpack.c.h.b16 %v2874
        %v3384 = vunpack.c.l.b16 %v2875
        %v3385 = vunpack.c.h.b16 %v2875
        %v3386 = vunpack.c.l.b16 %v2876
        %v3387 = vunpack.c.h.b16 %v2876
        %v3388 = vunpack.c.l.b16 %v2877
        %v3389 = vunpack.c.h.b16 %v2877
        %v3390 = vunpack.c.l.b16 %v2878
        %v3391 = vunpack.c.h.b16 %v2878
        %v3392 = vunpack.c.l.b16 %v2879
        %v3393 = vunpack.c.h.b16 %v2879
        %v3394 = vunpack.c.l.b16 %v2880
        %v3395 = vunpack.c.h.b16 %v2880
        %v3396 = vunpack.c.l.b16 %v2881
        %v3397 = vunpack.c.h.b16 %v2881
        %v3398 = vunpack.c.l.b16 %v2882
        %v3399 = vunpack.c.h.b16 %v2882
        %v3400 = vunpack.c.l.b16 %v2883
        %v3401 = vunpack.c.h.b16 %v2883
        %v3402 = vunpack.c.l.b16 %v2884
        %v3403 = vunpack.c.h.b16 %v2884
        %v3404 = vpack.c.b16 %v3156, %v3148
        %v3405 = vpack.c.b16 %v3157, %v3149
        %v3406 = vpack.c.b16 %v3158, %v3150
        %v3407 = vpack.c.b16 %v3159, %v3151
        %v3408 = vpack.c.b16 %v3160, %v3152
        %v3409 = vpack.c.b16 %v3161, %v3153
        %v3410 = vpack.c.b16 %v3162, %v3154
        %v3411 = vpack.c.b16 %v3163, %v3155
        %v3412 = vpack.c.b16 %v3172, %v3164
        %v3413 = vpack.c.b16 %v3173, %v3165
        %v3414 = vpack.c.b16 %v3174, %v3166
        %v3415 = vpack.c.b16 %v3175, %v3167
        %v3416 = vpack.c.b16 %v3176, %v3168
        %v3417 = vpack.c.b16 %v3177, %v3169
        %v3418 = vpack.c.b16 %v3178, %v3170
        %v3419 = vpack.c.b16 %v3179, %v3171
        %v3420 = vpack.c.b16 %v3188, %v3180
        %v3421 = vpack.c.b16 %v3189, %v3181
        %v3422 = vpack.c.b16 %v3190, %v3182
        %v3423 = vpack.c.b16 %v3191, %v3183
        %v3424 = vpack.c.b16 %v3192, %v3184
        %v3425 = vpack.c.b16 %v3193, %v3185
        %v3426 = vpack.c.b16 %v3194, %v3186
        %v3427 = vpack.c.b16 %v3195, %v3187
        %v3428 = vpack.c.b16 %v3204, %v3196
        %v3429 = vpack.c.b16 %v3205, %v3197
        %v3430 = vpack.c.b16 %v3206, %v3198
        %v3431 = vpack.c.b16 %v3207, %v3199
        %v3432 = vpack.c.b16 %v3208, %v3200
        %v3433 = vpack.c.b16 %v3209, %v3201
        %v3434 = vpack.c.b16 %v3210, %v3202
        %v3435 = vpack.c.b16 %v3211, %v3203
        %v3436 = vpack.c.b16 %v3220, %v3212
        %v3437 = vpack.c.b16 %v3221, %v3213
        %v3438 = vpack.c.b16 %v3222, %v3214
        %v3439 = vpack.c.b16 %v3223, %v3215
        %v3440 = vpack.c.b16 %v3224, %v3216
        %v3441 = vpack.c.b16 %v3225, %v3217
        %v3442 = vpack.c.b16 %v3226, %v3218
        %v3443 = vpack.c.b16 %v3227, %v3219
        %v3444 = vpack.c.b16 %v3236, %v3228
        %v3445 = vpack.c.b16 %v3237, %v3229
        %v3446 = vpack.c.b16 %v3238, %v3230
        %v3447 = vpack.c.b16 %v3239, %v3231
        %v3448 = vpack.c.b16 %v3240, %v3232
        %v3449 = vpack.c.b16 %v3241, %v3233
        %v3450 = vpack.c.b16 %v3242, %v3234
        %v3451 = vpack.c.b16 %v3243, %v3235
        %v3452 = vpack.c.b16 %v3252, %v3244
        %v3453 = vpack.c.b16 %v3253, %v3245
        %v3454 = vpack.c.b16 %v3254, %v3246
        %v3455 = vpack.c.b16 %v3255, %v3247
        %v3456 = vpack.c.b16 %v3256, %v3248
        %v3457 = vpack.c.b16 %v3257, %v3249
        %v3458 = vpack.c.b16 %v3258, %v3250
        %v3459 = vpack.c.b16 %v3259, %v3251
        %v3460 = vpack.c.b16 %v3268, %v3260
        %v3461 = vpack.c.b16 %v3269, %v3261
        %v3462 = vpack.c.b16 %v3270, %v3262
        %v3463 = vpack.c.b16 %v3271, %v3263
        %v3464 = vpack.c.b16 %v3272, %v3264
        %v3465 = vpack.c.b16 %v3273, %v3265
        %v3466 = vpack.c.b16 %v3274, %v3266
        %v3467 = vpack.c.b16 %v3275, %v3267
        %v3468 = vpack.c.b16 %v3284, %v3276
        %v3469 = vpack.c.b16 %v3285, %v3277
        %v3470 = vpack.c.b16 %v3286, %v3278
        %v3471 = vpack.c.b16 %v3287, %v3279
        %v3472 = vpack.c.b16 %v3288, %v3280
        %v3473 = vpack.c.b16 %v3289, %v3281
        %v3474 = vpack.c.b16 %v3290, %v3282
        %v3475 = vpack.c.b16 %v3291, %v3283
        %v3476 = vpack.c.b16 %v3300, %v3292
        %v3477 = vpack.c.b16 %v3301, %v3293
        %v3478 = vpack.c.b16 %v3302, %v3294
        %v3479 = vpack.c.b16 %v3303, %v3295
        %v3480 = vpack.c.b16 %v3304, %v3296
        %v3481 = vpack.c.b16 %v3305, %v3297
        %v3482 = vpack.c.b16 %v3306, %v3298
        %v3483 = vpack.c.b16 %v3307, %v3299
        %v3484 = vpack.c.b16 %v3316, %v3308
        %v3485 = vpack.c.b16 %v3317, %v3309
        %v3486 = vpack.c.b16 %v3318, %v3310
        %v3487 = vpack.c.b16 %v3319, %v3311
        %v3488 = vpack.c.b16 %v3320, %v3312
        %v3489 = vpack.c.b16 %v3321, %v3313
        %v3490 = vpack.c.b16 %v3322, %v3314
        %v3491 = vpack.c.b16 %v3323, %v3315
        %v3492 = vpack.c.b16 %v3332, %v3324
        %v3493 = vpack.c.b16 %v3333, %v3325
        %v3494 = vpack.c.b16 %v3334, %v3326
        %v3495 = vpack.c.b16 %v3335, %v3327
        %v3496 = vpack.c.b16 %v3336, %v3328
        %v3497 = vpack.c.b16 %v3337, %v3329
        %v3498 = vpack.c.b16 %v3338, %v3330
        %v3499 = vpack.c.b16 %v3339, %v3331
        %v3500 = vpack.c.b16 %v3348, %v3340
        %v3501 = vpack.c.b16 %v3349, %v3341
        %v3502 = vpack.c.b16 %v3350, %v3342
        %v3503 = vpack.c.b16 %v3351, %v3343
        %v3504 = vpack.c.b16 %v3352, %v3344
        %v3505 = vpack.c.b16 %v3353, %v3345
        %v3506 = vpack.c.b16 %v3354, %v3346
        %v3507 = vpack.c.b16 %v3355, %v3347
        %v3508 = vpack.c.b16 %v3364, %v3356
        %v3509 = vpack.c.b16 %v3365, %v3357
        %v3510 = vpack.c.b16 %v3366, %v3358
        %v3511 = vpack.c.b16 %v3367, %v3359
        %v3512 = vpack.c.b16 %v3368, %v3360
        %v3513 = vpack.c.b16 %v3369, %v3361
        %v3514 = vpack.c.b16 %v3370, %v3362
        %v3515 = vpack.c.b16 %v3371, %v3363
        %v3516 = vpack.c.b16 %v3380, %v3372
        %v3517 = vpack.c.b16 %v3381, %v3373
        %v3518 = vpack.c.b16 %v3382, %v3374
        %v3519 = vpack.c.b16 %v3383, %v3375
        %v3520 = vpack.c.b16 %v3384, %v3376
        %v3521 = vpack.c.b16 %v3385, %v3377
        %v3522 = vpack.c.b16 %v3386, %v3378
        %v3523 = vpack.c.b16 %v3387, %v3379
        %v3524 = vpack.c.b16 %v3396, %v3388
        %v3525 = vpack.c.b16 %v3397, %v3389
        %v3526 = vpack.c.b16 %v3398, %v3390
        %v3527 = vpack.c.b16 %v3399, %v3391
        %v3528 = vpack.c.b16 %v3400, %v3392
        %v3529 = vpack.c.b16 %v3401, %v3393
        %v3530 = vpack.c.b16 %v3402, %v3394
        %v3531 = vpack.c.b16 %v3403, %v3395
        %v3788 = vunpack.c.l.b16 %v2885
        %v3789 = vunpack.c.l.b16 %v2886
        %v3790 = vunpack.c.l.b16 %v2887
        %v3791 = vunpack.c.l.b16 %v2888
        %v3792 = vunpack.c.l.b16 %v2889
        %v3793 = vunpack.c.l.b16 %v2890
        %v3794 = vunpack.c.l.b16 %v2891
        %v3795 = vunpack.c.l.b16 %v2892
        %v3796 = vunpack.c.l.b16 %v2893
        %v3797 = vunpack.c.l.b16 %v2894
        %v3798 = vunpack.c.l.b16 %v2895
        %v3799 = vunpack.c.l.b16 %v2896
        %v3800 = vunpack.c.l.b16 %v2897
        %v3801 = vunpack.c.l.b16 %v2898
        %v3802 = vunpack.c.l.b16 %v2899
        %v3803 = vunpack.c.l.b16 %v2900
        %v3804 = vunpack.c.l.b16 %v2901
        %v3805 = vunpack.c.l.b16 %v2902
        %v3806 = vunpack.c.l.b16 %v2903
        %v3807 = vunpack.c.l.b16 %v2904
        %v3808 = vunpack.c.l.b16 %v2905
        %v3809 = vunpack.c.l.b16 %v2906
        %v3810 = vunpack.c.l.b16 %v2907
        %v3811 = vunpack.c.l.b16 %v2908
        %v3812 = vunpack.c.l.b16 %v2909
        %v3813 = vunpack.c.l.b16 %v2910
        %v3814 = vunpack.c.l.b16 %v2911
        %v3815 = vunpack.c.l.b16 %v2912
        %v3816 = vunpack.c.l.b16 %v2913
        %v3817 = vunpack.c.l.b16 %v2914
        %v3818 = vunpack.c.l.b16 %v2915
        %v3819 = vunpack.c.l.b16 %v2916
        %v3820 = vunpack.c.l.b16 %v2917
        %v3821 = vunpack.c.l.b16 %v2918
        %v3822 = vunpack.c.l.b16 %v2919
        %v3823 = vunpack.c.l.b16 %v2920
        %v3824 = vunpack.c.l.b16 %v2921
        %v3825 = vunpack.c.l.b16 %v2922
        %v3826 = vunpack.c.l.b16 %v2923
        %v3827 = vunpack.c.l.b16 %v2924
        %v3828 = vunpack.c.l.b16 %v2925
        %v3829 = vunpack.c.l.b16 %v2926
        %v3830 = vunpack.c.l.b16 %v2927
        %v3831 = vunpack.c.l.b16 %v2928
        %v3832 = vunpack.c.l.b16 %v2929
        %v3833 = vunpack.c.l.b16 %v2930
        %v3834 = vunpack.c.l.b16 %v2931
        %v3835 = vunpack.c.l.b16 %v2932
        %v3836 = vunpack.c.l.b16 %v2933
        %v3837 = vunpack.c.l.b16 %v2934
        %v3838 = vunpack.c.l.b16 %v2935
        %v3839 = vunpack.c.l.b16 %v2936
        %v3840 = vunpack.c.l.b16 %v2937
        %v3841 = vunpack.c.l.b16 %v2938
        %v3842 = vunpack.c.l.b16 %v2939
        %v3843 = vunpack.c.l.b16 %v2940
        %v3844 = vunpack.c.l.b16 %v2941
        %v3845 = vunpack.c.l.b16 %v2942
        %v3846 = vunpack.c.l.b16 %v2943
        %v3847 = vunpack.c.l.b16 %v2944
        %v3848 = vunpack.c.l.b16 %v2945
        %v3849 = vunpack.c.l.b16 %v2946
        %v3850 = vunpack.c.l.b16 %v2947
        %v3851 = vunpack.c.l.b16 %v2948
        %v3852 = vunpack.c.l.b16 %v2949
        %v3853 = vunpack.c.l.b16 %v2950
        %v3854 = vunpack.c.l.b16 %v2951
        %v3855 = vunpack.c.l.b16 %v2952
        %v3856 = vunpack.c.l.b16 %v2953
        %v3857 = vunpack.c.l.b16 %v2954
        %v3858 = vunpack.c.l.b16 %v2955
        %v3859 = vunpack.c.l.b16 %v2956
        %v3860 = vunpack.c.l.b16 %v2957
        %v3861 = vunpack.c.l.b16 %v2958
        %v3862 = vunpack.c.l.b16 %v2959
        %v3863 = vunpack.c.l.b16 %v2960
        %v3864 = vunpack.c.l.b16 %v2961
        %v3865 = vunpack.c.l.b16 %v2962
        %v3866 = vunpack.c.l.b16 %v2963
        %v3867 = vunpack.c.l.b16 %v2964
        %v3868 = vunpack.c.l.b16 %v2965
        %v3869 = vunpack.c.l.b16 %v2966
        %v3870 = vunpack.c.l.b16 %v2967
        %v3871 = vunpack.c.l.b16 %v2968
        %v3872 = vunpack.c.l.b16 %v2969
        %v3873 = vunpack.c.l.b16 %v2970
        %v3874 = vunpack.c.l.b16 %v2971
        %v3875 = vunpack.c.l.b16 %v2972
        %v3876 = vunpack.c.l.b16 %v2973
        %v3877 = vunpack.c.l.b16 %v2974
        %v3878 = vunpack.c.l.b16 %v2975
        %v3879 = vunpack.c.l.b16 %v2976
        %v3880 = vunpack.c.l.b16 %v2977
        %v3881 = vunpack.c.l.b16 %v2978
        %v3882 = vunpack.c.l.b16 %v2979
        %v3883 = vunpack.c.l.b16 %v2980
        %v3884 = vunpack.c.l.b16 %v2981
        %v3885 = vunpack.c.l.b16 %v2982
        %v3886 = vunpack.c.l.b16 %v2983
        %v3887 = vunpack.c.l.b16 %v2984
        %v3888 = vunpack.c.l.b16 %v2985
        %v3889 = vunpack.c.l.b16 %v2986
        %v3890 = vunpack.c.l.b16 %v2987
        %v3891 = vunpack.c.l.b16 %v2988
        %v3892 = vunpack.c.l.b16 %v2989
        %v3893 = vunpack.c.l.b16 %v2990
        %v3894 = vunpack.c.l.b16 %v2991
        %v3895 = vunpack.c.l.b16 %v2992
        %v3896 = vunpack.c.l.b16 %v2993
        %v3897 = vunpack.c.l.b16 %v2994
        %v3898 = vunpack.c.l.b16 %v2995
        %v3899 = vunpack.c.l.b16 %v2996
        %v3900 = vunpack.c.l.b16 %v2997
        %v3901 = vunpack.c.l.b16 %v2998
        %v3902 = vunpack.c.l.b16 %v2999
        %v3903 = vunpack.c.l.b16 %v3000
        %v3904 = vunpack.c.l.b16 %v3001
        %v3905 = vunpack.c.l.b16 %v3002
        %v3906 = vunpack.c.l.b16 %v3003
        %v3907 = vunpack.c.l.b16 %v3004
        %v3908 = vunpack.c.l.b16 %v3005
        %v3909 = vunpack.c.l.b16 %v3006
        %v3910 = vunpack.c.l.b16 %v3007
        %v3911 = vunpack.c.l.b16 %v3008
        %v3912 = vunpack.c.l.b16 %v3009
        %v3913 = vunpack.c.l.b16 %v3010
        %v3914 = vunpack.c.l.b16 %v3011
        %v3915 = vunpack.c.l.b16 %v3012
        %v3916 = vpack.c.b16 %v3789, %v3788
        %v3917 = vpack.c.b16 %v3791, %v3790
        %v3918 = vpack.c.b16 %v3793, %v3792
        %v3919 = vpack.c.b16 %v3795, %v3794
        %v3920 = vpack.c.b16 %v3797, %v3796
        %v3921 = vpack.c.b16 %v3799, %v3798
        %v3922 = vpack.c.b16 %v3801, %v3800
        %v3923 = vpack.c.b16 %v3803, %v3802
        %v3924 = vpack.c.b16 %v3805, %v3804
        %v3925 = vpack.c.b16 %v3807, %v3806
        %v3926 = vpack.c.b16 %v3809, %v3808
        %v3927 = vpack.c.b16 %v3811, %v3810
        %v3928 = vpack.c.b16 %v3813, %v3812
        %v3929 = vpack.c.b16 %v3815, %v3814
        %v3930 = vpack.c.b16 %v3817, %v3816
        %v3931 = vpack.c.b16 %v3819, %v3818
        %v3932 = vpack.c.b16 %v3821, %v3820
        %v3933 = vpack.c.b16 %v3823, %v3822
        %v3934 = vpack.c.b16 %v3825, %v3824
        %v3935 = vpack.c.b16 %v3827, %v3826
        %v3936 = vpack.c.b16 %v3829, %v3828
        %v3937 = vpack.c.b16 %v3831, %v3830
        %v3938 = vpack.c.b16 %v3833, %v3832
        %v3939 = vpack.c.b16 %v3835, %v3834
        %v3940 = vpack.c.b16 %v3837, %v3836
        %v3941 = vpack.c.b16 %v3839, %v3838
        %v3942 = vpack.c.b16 %v3841, %v3840
        %v3943 = vpack.c.b16 %v3843, %v3842
        %v3944 = vpack.c.b16 %v3845, %v3844
        %v3945 = vpack.c.b16 %v3847, %v3846
        %v3946 = vpack.c.b16 %v3849, %v3848
        %v3947 = vpack.c.b16 %v3851, %v3850
        %v3948 = vpack.c.b16 %v3853, %v3852
        %v3949 = vpack.c.b16 %v3855, %v3854
        %v3950 = vpack.c.b16 %v3857, %v3856
        %v3951 = vpack.c.b16 %v3859, %v3858
        %v3952 = vpack.c.b16 %v3861, %v3860
        %v3953 = vpack.c.b16 %v3863, %v3862
        %v3954 = vpack.c.b16 %v3865, %v3864
        %v3955 = vpack.c.b16 %v3867, %v3866
        %v3956 = vpack.c.b16 %v3869, %v3868
        %v3957 = vpack.c.b16 %v3871, %v3870
        %v3958 = vpack.c.b16 %v3873, %v3872
        %v3959 = vpack.c.b16 %v3875, %v3874
        %v3960 = vpack.c.b16 %v3877, %v3876
        %v3961 = vpack.c.b16 %v3879, %v3878
        %v3962 = vpack.c.b16 %v3881, %v3880
        %v3963 = vpack.c.b16 %v3883, %v3882
        %v3964 = vpack.c.b16 %v3885, %v3884
        %v3965 = vpack.c.b16 %v3887, %v3886
        %v3966 = vpack.c.b16 %v3889, %v3888
        %v3967 = vpack.c.b16 %v3891, %v3890
        %v3968 = vpack.c.b16 %v3893, %v3892
        %v3969 = vpack.c.b16 %v3895, %v3894
        %v3970 = vpack.c.b16 %v3897, %v3896
        %v3971 = vpack.c.b16 %v3899, %v3898
        %v3972 = vpack.c.b16 %v3901, %v3900
        %v3973 = vpack.c.b16 %v3903, %v3902
        %v3974 = vpack.c.b16 %v3905, %v3904
        %v3975 = vpack.c.b16 %v3907, %v3906
        %v3976 = vpack.c.b16 %v3909, %v3908
        %v3977 = vpack.c.b16 %v3911, %v3910
        %v3978 = vpack.c.b16 %v3913, %v3912
        %v3979 = vpack.c.b16 %v3915, %v3914
        %4044 = vmatprep.subr.bf16.mxu0 0
        %4045 = vmatpush1.bf16.msra.mxu0 %v3923
        %4046 = vmatprep.subr.bf16.mxu0 0
        %4047 = vmatpush1.bf16.msra.mxu0 %v3922
        %4048 = vmatprep.subr.bf16.mxu0 0
        %4049 = vmatpush1.bf16.msra.mxu0 %v3921
        %4050 = vmatprep.subr.bf16.mxu0 0
        %4051 = vmatpush1.bf16.msra.mxu0 %v3920
        %4052 = vmatprep.subr.bf16.mxu0 0
        %4053 = vmatpush1.bf16.msra.mxu0 %v3919
        %4054 = vmatprep.subr.bf16.mxu0 0
        %4055 = vmatpush1.bf16.msra.mxu0 %v3918
        %4056 = vmatprep.subr.bf16.mxu0 0
        %4057 = vmatpush1.bf16.msra.mxu0 %v3917
        %4058 = vmatprep.subr.bf16.mxu0 0
        %4059 = vmatpush1.bf16.msra.mxu0 %v3916
        %4060 = vmatprep.subr.bf16.mxu0 0
        %4061 = vmatpush2.bf16.msra.mxu0 %v3931
        %4062 = vmatprep.subr.bf16.mxu0 0
        %4063 = vmatpush2.bf16.msra.mxu0 %v3930
        %4064 = vmatprep.subr.bf16.mxu0 0
        %4065 = vmatpush2.bf16.msra.mxu0 %v3929
        %4066 = vmatprep.subr.bf16.mxu0 0
        %4067 = vmatpush2.bf16.msra.mxu0 %v3928
        %4068 = vmatprep.subr.bf16.mxu0 0
        %4069 = vmatpush2.bf16.msra.mxu0 %v3927
        %4070 = vmatprep.subr.bf16.mxu0 0
        %4071 = vmatpush2.bf16.msra.mxu0 %v3926
        %4072 = vmatprep.subr.bf16.mxu0 0
        %4073 = vmatpush2.bf16.msra.mxu0 %v3925
        %4074 = vmatprep.subr.bf16.mxu0 0
        %4075 = vmatpush2.bf16.msra.mxu0 %v3924
        %4076 = vmatprep.mubr.bf16.mxu0 %v3405
        %4077 = vmatmul.mubr.bf16.gmra.mxu0 %v3404
        %v4078 = vpop.f32.mrf.mxu0
        %v4079 = vadd.f32 %v3018, %v4078
        %v4080 = vpop.f32.mrf.mxu0
        %v4081 = vpop.f32.mrf.mxu0
        %v4082 = vadd.f32 %v3018, %v4081
        %v4083 = vpop.f32.mrf.mxu0
        %4084 = vmatprep.mubr.bf16.mxu0 %v3413
        %4085 = vmatmul.mubr.bf16.gmra.mxu0 %v3412
        %v4086 = vpop.f32.mrf.mxu0
        %v4087 = vadd.f32 %v3018, %v4086
        %v4088 = vpop.f32.mrf.mxu0
        %v4089 = vpop.f32.mrf.mxu0
        %v4090 = vadd.f32 %v3018, %v4089
        %v4091 = vpop.f32.mrf.mxu0
        %4092 = vmatprep.mubr.bf16.mxu0 %v3421
        %4093 = vmatmul.mubr.bf16.gmra.mxu0 %v3420
        %v4094 = vpop.f32.mrf.mxu0
        %v4095 = vadd.f32 %v3018, %v4094
        %v4096 = vpop.f32.mrf.mxu0
        %v4097 = vpop.f32.mrf.mxu0
        %v4098 = vadd.f32 %v3018, %v4097
        %v4099 = vpop.f32.mrf.mxu0
        %4100 = vmatprep.mubr.bf16.mxu0 %v3429
        %4101 = vmatmul.mubr.bf16.gmra.mxu0 %v3428
        %v4102 = vpop.f32.mrf.mxu0
        %v4103 = vadd.f32 %v3018, %v4102
        %v4104 = vpop.f32.mrf.mxu0
        %v4105 = vpop.f32.mrf.mxu0
        %v4106 = vadd.f32 %v3018, %v4105
        %v4107 = vpop.f32.mrf.mxu0
        %4108 = vmatprep.mubr.bf16.mxu0 %v3437
        %4109 = vmatmul.mubr.bf16.gmra.mxu0 %v3436
        %v4110 = vpop.f32.mrf.mxu0
        %v4111 = vadd.f32 %v3018, %v4110
        %v4112 = vpop.f32.mrf.mxu0
        %v4113 = vpop.f32.mrf.mxu0
        %v4114 = vadd.f32 %v3018, %v4113
        %v4115 = vpop.f32.mrf.mxu0
        %4116 = vmatprep.mubr.bf16.mxu0 %v3445
        %4117 = vmatmul.mubr.bf16.gmra.mxu0 %v3444
        %v4118 = vpop.f32.mrf.mxu0
        %v4119 = vadd.f32 %v3018, %v4118
        %v4120 = vpop.f32.mrf.mxu0
        %v4121 = vpop.f32.mrf.mxu0
        %v4122 = vadd.f32 %v3018, %v4121
        %v4123 = vpop.f32.mrf.mxu0
        %4124 = vmatprep.mubr.bf16.mxu0 %v3453
        %4125 = vmatmul.mubr.bf16.gmra.mxu0 %v3452
        %v4126 = vpop.f32.mrf.mxu0
        %v4127 = vadd.f32 %v3018, %v4126
        %v4128 = vpop.f32.mrf.mxu0
        %v4129 = vpop.f32.mrf.mxu0
        %v4130 = vadd.f32 %v3018, %v4129
        %v4131 = vpop.f32.mrf.mxu0
        %4132 = vmatprep.mubr.bf16.mxu0 %v3461
        %4133 = vmatmul.mubr.bf16.gmra.mxu0 %v3460
        %v4134 = vpop.f32.mrf.mxu0
        %v4135 = vadd.f32 %v3018, %v4134
        %v4136 = vpop.f32.mrf.mxu0
        %v4137 = vpop.f32.mrf.mxu0
        %v4138 = vadd.f32 %v3018, %v4137
        %v4139 = vpop.f32.mrf.mxu0
        %4140 = vmatprep.mubr.bf16.mxu0 %v3469
        %4141 = vmatmul.mubr.bf16.gmra.mxu0 %v3468
        %v4142 = vpop.f32.mrf.mxu0
        %v4143 = vadd.f32 %v3018, %v4142
        %v4144 = vpop.f32.mrf.mxu0
        %v4145 = vpop.f32.mrf.mxu0
        %v4146 = vadd.f32 %v3018, %v4145
        %v4147 = vpop.f32.mrf.mxu0
        %4148 = vmatprep.mubr.bf16.mxu0 %v3477
        %4149 = vmatmul.mubr.bf16.gmra.mxu0 %v3476
        %v4150 = vpop.f32.mrf.mxu0
        %v4151 = vadd.f32 %v3018, %v4150
        %v4152 = vpop.f32.mrf.mxu0
        %v4153 = vpop.f32.mrf.mxu0
        %v4154 = vadd.f32 %v3018, %v4153
        %v4155 = vpop.f32.mrf.mxu0
        %4156 = vmatprep.mubr.bf16.mxu0 %v3485
        %4157 = vmatmul.mubr.bf16.gmra.mxu0 %v3484
        %v4158 = vpop.f32.mrf.mxu0
        %v4159 = vadd.f32 %v3018, %v4158
        %v4160 = vpop.f32.mrf.mxu0
        %v4161 = vpop.f32.mrf.mxu0
        %v4162 = vadd.f32 %v3018, %v4161
        %v4163 = vpop.f32.mrf.mxu0
        %4164 = vmatprep.mubr.bf16.mxu0 %v3493
        %4165 = vmatmul.mubr.bf16.gmra.mxu0 %v3492
        %v4166 = vpop.f32.mrf.mxu0
        %v4167 = vadd.f32 %v3018, %v4166
        %v4168 = vpop.f32.mrf.mxu0
        %v4169 = vpop.f32.mrf.mxu0
        %v4170 = vadd.f32 %v3018, %v4169
        %v4171 = vpop.f32.mrf.mxu0
        %4172 = vmatprep.mubr.bf16.mxu0 %v3501
        %4173 = vmatmul.mubr.bf16.gmra.mxu0 %v3500
        %v4174 = vpop.f32.mrf.mxu0
        %v4175 = vadd.f32 %v3018, %v4174
        %v4176 = vpop.f32.mrf.mxu0
        %v4177 = vpop.f32.mrf.mxu0
        %v4178 = vadd.f32 %v3018, %v4177
        %v4179 = vpop.f32.mrf.mxu0
        %4180 = vmatprep.mubr.bf16.mxu0 %v3509
        %4181 = vmatmul.mubr.bf16.gmra.mxu0 %v3508
        %v4182 = vpop.f32.mrf.mxu0
        %v4183 = vadd.f32 %v3018, %v4182
        %v4184 = vpop.f32.mrf.mxu0
        %v4185 = vpop.f32.mrf.mxu0
        %v4186 = vadd.f32 %v3018, %v4185
        %v4187 = vpop.f32.mrf.mxu0
        %4188 = vmatprep.mubr.bf16.mxu0 %v3517
        %4189 = vmatmul.mubr.bf16.gmra.mxu0 %v3516
        %v4190 = vpop.f32.mrf.mxu0
        %v4191 = vadd.f32 %v3018, %v4190
        %v4192 = vpop.f32.mrf.mxu0
        %v4193 = vpop.f32.mrf.mxu0
        %v4194 = vadd.f32 %v3018, %v4193
        %v4195 = vpop.f32.mrf.mxu0
        %4196 = vmatprep.mubr.bf16.mxu0 %v3525
        %4197 = vmatmul.mubr.bf16.gmra.mxu0 %v3524
        %v4198 = vpop.f32.mrf.mxu0
        %v4199 = vadd.f32 %v3018, %v4198
        %v4200 = vpop.f32.mrf.mxu0
        %v4201 = vpop.f32.mrf.mxu0
        %v4202 = vadd.f32 %v3018, %v4201
        %v4203 = vpop.f32.mrf.mxu0
        %4204 = vdwg.mxu0
        %4205 = vmatprep.subr.bf16.mxu0 0
        %4206 = vmatpush1.bf16.msra.mxu0 %v3939
        %4207 = vmatprep.subr.bf16.mxu0 0
        %4208 = vmatpush1.bf16.msra.mxu0 %v3938
        %4209 = vmatprep.subr.bf16.mxu0 0
        %4210 = vmatpush1.bf16.msra.mxu0 %v3937
        %4211 = vmatprep.subr.bf16.mxu0 0
        %4212 = vmatpush1.bf16.msra.mxu0 %v3936
        %4213 = vmatprep.subr.bf16.mxu0 0
        %4214 = vmatpush1.bf16.msra.mxu0 %v3935
        %4215 = vmatprep.subr.bf16.mxu0 0
        %4216 = vmatpush1.bf16.msra.mxu0 %v3934
        %4217 = vmatprep.subr.bf16.mxu0 0
        %4218 = vmatpush1.bf16.msra.mxu0 %v3933
        %4219 = vmatprep.subr.bf16.mxu0 0
        %4220 = vmatpush1.bf16.msra.mxu0 %v3932
        %4221 = vmatprep.subr.bf16.mxu0 0
        %4222 = vmatpush2.bf16.msra.mxu0 %v3947
        %4223 = vmatprep.subr.bf16.mxu0 0
        %4224 = vmatpush2.bf16.msra.mxu0 %v3946
        %4225 = vmatprep.subr.bf16.mxu0 0
        %4226 = vmatpush2.bf16.msra.mxu0 %v3945
        %4227 = vmatprep.subr.bf16.mxu0 0
        %4228 = vmatpush2.bf16.msra.mxu0 %v3944
        %4229 = vmatprep.subr.bf16.mxu0 0
        %4230 = vmatpush2.bf16.msra.mxu0 %v3943
        %4231 = vmatprep.subr.bf16.mxu0 0
        %4232 = vmatpush2.bf16.msra.mxu0 %v3942
        %4233 = vmatprep.subr.bf16.mxu0 0
        %4234 = vmatpush2.bf16.msra.mxu0 %v3941
        %4235 = vmatprep.subr.bf16.mxu0 0
        %4236 = vmatpush2.bf16.msra.mxu0 %v3940
        %4237 = vmatprep.mubr.bf16.mxu0 %v3407
        %4238 = vmatmul.mubr.bf16.gmra.mxu0 %v3406
        %v4239 = vpop.f32.mrf.mxu0
        %v4240 = vadd.f32 %v4079, %v4239
        %v4241 = vpop.f32.mrf.mxu0
        %v4242 = vpop.f32.mrf.mxu0
        %v4243 = vadd.f32 %v4082, %v4242
        %v4244 = vpop.f32.mrf.mxu0
        %4245 = vmatprep.mubr.bf16.mxu0 %v3415
        %4246 = vmatmul.mubr.bf16.gmra.mxu0 %v3414
        %v4247 = vpop.f32.mrf.mxu0
        %v4248 = vadd.f32 %v4087, %v4247
        %v4249 = vpop.f32.mrf.mxu0
        %v4250 = vpop.f32.mrf.mxu0
        %v4251 = vadd.f32 %v4090, %v4250
        %v4252 = vpop.f32.mrf.mxu0
        %4253 = vmatprep.mubr.bf16.mxu0 %v3423
        %4254 = vmatmul.mubr.bf16.gmra.mxu0 %v3422
        %v4255 = vpop.f32.mrf.mxu0
        %v4256 = vadd.f32 %v4095, %v4255
        %v4257 = vpop.f32.mrf.mxu0
        %v4258 = vpop.f32.mrf.mxu0
        %v4259 = vadd.f32 %v4098, %v4258
        %v4260 = vpop.f32.mrf.mxu0
        %4261 = vmatprep.mubr.bf16.mxu0 %v3431
        %4262 = vmatmul.mubr.bf16.gmra.mxu0 %v3430
        %v4263 = vpop.f32.mrf.mxu0
        %v4264 = vadd.f32 %v4103, %v4263
        %v4265 = vpop.f32.mrf.mxu0
        %v4266 = vpop.f32.mrf.mxu0
        %v4267 = vadd.f32 %v4106, %v4266
        %v4268 = vpop.f32.mrf.mxu0
        %4269 = vmatprep.mubr.bf16.mxu0 %v3439
        %4270 = vmatmul.mubr.bf16.gmra.mxu0 %v3438
        %v4271 = vpop.f32.mrf.mxu0
        %v4272 = vadd.f32 %v4111, %v4271
        %v4273 = vpop.f32.mrf.mxu0
        %v4274 = vpop.f32.mrf.mxu0
        %v4275 = vadd.f32 %v4114, %v4274
        %v4276 = vpop.f32.mrf.mxu0
        %4277 = vmatprep.mubr.bf16.mxu0 %v3447
        %4278 = vmatmul.mubr.bf16.gmra.mxu0 %v3446
        %v4279 = vpop.f32.mrf.mxu0
        %v4280 = vadd.f32 %v4119, %v4279
        %v4281 = vpop.f32.mrf.mxu0
        %v4282 = vpop.f32.mrf.mxu0
        %v4283 = vadd.f32 %v4122, %v4282
        %v4284 = vpop.f32.mrf.mxu0
        %4285 = vmatprep.mubr.bf16.mxu0 %v3455
        %4286 = vmatmul.mubr.bf16.gmra.mxu0 %v3454
        %v4287 = vpop.f32.mrf.mxu0
        %v4288 = vadd.f32 %v4127, %v4287
        %v4289 = vpop.f32.mrf.mxu0
        %v4290 = vpop.f32.mrf.mxu0
        %v4291 = vadd.f32 %v4130, %v4290
        %v4292 = vpop.f32.mrf.mxu0
        %4293 = vmatprep.mubr.bf16.mxu0 %v3463
        %4294 = vmatmul.mubr.bf16.gmra.mxu0 %v3462
        %v4295 = vpop.f32.mrf.mxu0
        %v4296 = vadd.f32 %v4135, %v4295
        %v4297 = vpop.f32.mrf.mxu0
        %v4298 = vpop.f32.mrf.mxu0
        %v4299 = vadd.f32 %v4138, %v4298
        %v4300 = vpop.f32.mrf.mxu0
        %4301 = vmatprep.mubr.bf16.mxu0 %v3471
        %4302 = vmatmul.mubr.bf16.gmra.mxu0 %v3470
        %v4303 = vpop.f32.mrf.mxu0
        %v4304 = vadd.f32 %v4143, %v4303
        %v4305 = vpop.f32.mrf.mxu0
        %v4306 = vpop.f32.mrf.mxu0
        %v4307 = vadd.f32 %v4146, %v4306
        %v4308 = vpop.f32.mrf.mxu0
        %4309 = vmatprep.mubr.bf16.mxu0 %v3479
        %4310 = vmatmul.mubr.bf16.gmra.mxu0 %v3478
        %v4311 = vpop.f32.mrf.mxu0
        %v4312 = vadd.f32 %v4151, %v4311
        %v4313 = vpop.f32.mrf.mxu0
        %v4314 = vpop.f32.mrf.mxu0
        %v4315 = vadd.f32 %v4154, %v4314
        %v4316 = vpop.f32.mrf.mxu0
        %4317 = vmatprep.mubr.bf16.mxu0 %v3487
        %4318 = vmatmul.mubr.bf16.gmra.mxu0 %v3486
        %v4319 = vpop.f32.mrf.mxu0
        %v4320 = vadd.f32 %v4159, %v4319
        %v4321 = vpop.f32.mrf.mxu0
        %v4322 = vpop.f32.mrf.mxu0
        %v4323 = vadd.f32 %v4162, %v4322
        %v4324 = vpop.f32.mrf.mxu0
        %4325 = vmatprep.mubr.bf16.mxu0 %v3495
        %4326 = vmatmul.mubr.bf16.gmra.mxu0 %v3494
        %v4327 = vpop.f32.mrf.mxu0
        %v4328 = vadd.f32 %v4167, %v4327
        %v4329 = vpop.f32.mrf.mxu0
        %v4330 = vpop.f32.mrf.mxu0
        %v4331 = vadd.f32 %v4170, %v4330
        %v4332 = vpop.f32.mrf.mxu0
        %4333 = vmatprep.mubr.bf16.mxu0 %v3503
        %4334 = vmatmul.mubr.bf16.gmra.mxu0 %v3502
        %v4335 = vpop.f32.mrf.mxu0
        %v4336 = vadd.f32 %v4175, %v4335
        %v4337 = vpop.f32.mrf.mxu0
        %v4338 = vpop.f32.mrf.mxu0
        %v4339 = vadd.f32 %v4178, %v4338
        %v4340 = vpop.f32.mrf.mxu0
        %4341 = vmatprep.mubr.bf16.mxu0 %v3511
        %4342 = vmatmul.mubr.bf16.gmra.mxu0 %v3510
        %v4343 = vpop.f32.mrf.mxu0
        %v4344 = vadd.f32 %v4183, %v4343
        %v4345 = vpop.f32.mrf.mxu0
        %v4346 = vpop.f32.mrf.mxu0
        %v4347 = vadd.f32 %v4186, %v4346
        %v4348 = vpop.f32.mrf.mxu0
        %4349 = vmatprep.mubr.bf16.mxu0 %v3519
        %4350 = vmatmul.mubr.bf16.gmra.mxu0 %v3518
        %v4351 = vpop.f32.mrf.mxu0
        %v4352 = vadd.f32 %v4191, %v4351
        %v4353 = vpop.f32.mrf.mxu0
        %v4354 = vpop.f32.mrf.mxu0
        %v4355 = vadd.f32 %v4194, %v4354
        %v4356 = vpop.f32.mrf.mxu0
        %4357 = vmatprep.mubr.bf16.mxu0 %v3527
        %4358 = vmatmul.mubr.bf16.gmra.mxu0 %v3526
        %v4359 = vpop.f32.mrf.mxu0
        %v4360 = vadd.f32 %v4199, %v4359
        %v4361 = vpop.f32.mrf.mxu0
        %v4362 = vpop.f32.mrf.mxu0
        %v4363 = vadd.f32 %v4202, %v4362
        %v4364 = vpop.f32.mrf.mxu0
        %4365 = vdwg.mxu0
        %4366 = vmatprep.subr.bf16.mxu0 0
        %4367 = vmatpush1.bf16.msra.mxu0 %v3955
        %4368 = vmatprep.subr.bf16.mxu0 0
        %4369 = vmatpush1.bf16.msra.mxu0 %v3954
        %4370 = vmatprep.subr.bf16.mxu0 0
        %4371 = vmatpush1.bf16.msra.mxu0 %v3953
        %4372 = vmatprep.subr.bf16.mxu0 0
        %4373 = vmatpush1.bf16.msra.mxu0 %v3952
        %4374 = vmatprep.subr.bf16.mxu0 0
        %4375 = vmatpush1.bf16.msra.mxu0 %v3951
        %4376 = vmatprep.subr.bf16.mxu0 0
        %4377 = vmatpush1.bf16.msra.mxu0 %v3950
        %4378 = vmatprep.subr.bf16.mxu0 0
        %4379 = vmatpush1.bf16.msra.mxu0 %v3949
        %4380 = vmatprep.subr.bf16.mxu0 0
        %4381 = vmatpush1.bf16.msra.mxu0 %v3948
        %4382 = vmatprep.subr.bf16.mxu0 0
        %4383 = vmatpush2.bf16.msra.mxu0 %v3963
        %4384 = vmatprep.subr.bf16.mxu0 0
        %4385 = vmatpush2.bf16.msra.mxu0 %v3962
        %4386 = vmatprep.subr.bf16.mxu0 0
        %4387 = vmatpush2.bf16.msra.mxu0 %v3961
        %4388 = vmatprep.subr.bf16.mxu0 0
        %4389 = vmatpush2.bf16.msra.mxu0 %v3960
        %4390 = vmatprep.subr.bf16.mxu0 0
        %4391 = vmatpush2.bf16.msra.mxu0 %v3959
        %4392 = vmatprep.subr.bf16.mxu0 0
        %4393 = vmatpush2.bf16.msra.mxu0 %v3958
        %4394 = vmatprep.subr.bf16.mxu0 0
        %4395 = vmatpush2.bf16.msra.mxu0 %v3957
        %4396 = vmatprep.subr.bf16.mxu0 0
        %4397 = vmatpush2.bf16.msra.mxu0 %v3956
        %4398 = vmatprep.mubr.bf16.mxu0 %v3409
        %4399 = vmatmul.mubr.bf16.gmra.mxu0 %v3408
        %v4400 = vpop.f32.mrf.mxu0
        %v4401 = vadd.f32 %v4240, %v4400
        %v4402 = vpop.f32.mrf.mxu0
        %v4403 = vpop.f32.mrf.mxu0
        %v4404 = vadd.f32 %v4243, %v4403
        %v4405 = vpop.f32.mrf.mxu0
        %4406 = vmatprep.mubr.bf16.mxu0 %v3417
        %4407 = vmatmul.mubr.bf16.gmra.mxu0 %v3416
        %v4408 = vpop.f32.mrf.mxu0
        %v4409 = vadd.f32 %v4248, %v4408
        %v4410 = vpop.f32.mrf.mxu0
        %v4411 = vpop.f32.mrf.mxu0
        %v4412 = vadd.f32 %v4251, %v4411
        %v4413 = vpop.f32.mrf.mxu0
        %4414 = vmatprep.mubr.bf16.mxu0 %v3425
        %4415 = vmatmul.mubr.bf16.gmra.mxu0 %v3424
        %v4416 = vpop.f32.mrf.mxu0
        %v4417 = vadd.f32 %v4256, %v4416
        %v4418 = vpop.f32.mrf.mxu0
        %v4419 = vpop.f32.mrf.mxu0
        %v4420 = vadd.f32 %v4259, %v4419
        %v4421 = vpop.f32.mrf.mxu0
        %4422 = vmatprep.mubr.bf16.mxu0 %v3433
        %4423 = vmatmul.mubr.bf16.gmra.mxu0 %v3432
        %v4424 = vpop.f32.mrf.mxu0
        %v4425 = vadd.f32 %v4264, %v4424
        %v4426 = vpop.f32.mrf.mxu0
        %v4427 = vpop.f32.mrf.mxu0
        %v4428 = vadd.f32 %v4267, %v4427
        %v4429 = vpop.f32.mrf.mxu0
        %4430 = vmatprep.mubr.bf16.mxu0 %v3441
        %4431 = vmatmul.mubr.bf16.gmra.mxu0 %v3440
        %v4432 = vpop.f32.mrf.mxu0
        %v4433 = vadd.f32 %v4272, %v4432
        %v4434 = vpop.f32.mrf.mxu0
        %v4435 = vpop.f32.mrf.mxu0
        %v4436 = vadd.f32 %v4275, %v4435
        %v4437 = vpop.f32.mrf.mxu0
        %4438 = vmatprep.mubr.bf16.mxu0 %v3449
        %4439 = vmatmul.mubr.bf16.gmra.mxu0 %v3448
        %v4440 = vpop.f32.mrf.mxu0
        %v4441 = vadd.f32 %v4280, %v4440
        %v4442 = vpop.f32.mrf.mxu0
        %v4443 = vpop.f32.mrf.mxu0
        %v4444 = vadd.f32 %v4283, %v4443
        %v4445 = vpop.f32.mrf.mxu0
        %4446 = vmatprep.mubr.bf16.mxu0 %v3457
        %4447 = vmatmul.mubr.bf16.gmra.mxu0 %v3456
        %v4448 = vpop.f32.mrf.mxu0
        %v4449 = vadd.f32 %v4288, %v4448
        %v4450 = vpop.f32.mrf.mxu0
        %v4451 = vpop.f32.mrf.mxu0
        %v4452 = vadd.f32 %v4291, %v4451
        %v4453 = vpop.f32.mrf.mxu0
        %4454 = vmatprep.mubr.bf16.mxu0 %v3465
        %4455 = vmatmul.mubr.bf16.gmra.mxu0 %v3464
        %v4456 = vpop.f32.mrf.mxu0
        %v4457 = vadd.f32 %v4296, %v4456
        %v4458 = vpop.f32.mrf.mxu0
        %v4459 = vpop.f32.mrf.mxu0
        %v4460 = vadd.f32 %v4299, %v4459
        %v4461 = vpop.f32.mrf.mxu0
        %4462 = vmatprep.mubr.bf16.mxu0 %v3473
        %4463 = vmatmul.mubr.bf16.gmra.mxu0 %v3472
        %v4464 = vpop.f32.mrf.mxu0
        %v4465 = vadd.f32 %v4304, %v4464
        %v4466 = vpop.f32.mrf.mxu0
        %v4467 = vpop.f32.mrf.mxu0
        %v4468 = vadd.f32 %v4307, %v4467
        %v4469 = vpop.f32.mrf.mxu0
        %4470 = vmatprep.mubr.bf16.mxu0 %v3481
        %4471 = vmatmul.mubr.bf16.gmra.mxu0 %v3480
        %v4472 = vpop.f32.mrf.mxu0
        %v4473 = vadd.f32 %v4312, %v4472
        %v4474 = vpop.f32.mrf.mxu0
        %v4475 = vpop.f32.mrf.mxu0
        %v4476 = vadd.f32 %v4315, %v4475
        %v4477 = vpop.f32.mrf.mxu0
        %4478 = vmatprep.mubr.bf16.mxu0 %v3489
        %4479 = vmatmul.mubr.bf16.gmra.mxu0 %v3488
        %v4480 = vpop.f32.mrf.mxu0
        %v4481 = vadd.f32 %v4320, %v4480
        %v4482 = vpop.f32.mrf.mxu0
        %v4483 = vpop.f32.mrf.mxu0
        %v4484 = vadd.f32 %v4323, %v4483
        %v4485 = vpop.f32.mrf.mxu0
        %4486 = vmatprep.mubr.bf16.mxu0 %v3497
        %4487 = vmatmul.mubr.bf16.gmra.mxu0 %v3496
        %v4488 = vpop.f32.mrf.mxu0
        %v4489 = vadd.f32 %v4328, %v4488
        %v4490 = vpop.f32.mrf.mxu0
        %v4491 = vpop.f32.mrf.mxu0
        %v4492 = vadd.f32 %v4331, %v4491
        %v4493 = vpop.f32.mrf.mxu0
        %4494 = vmatprep.mubr.bf16.mxu0 %v3505
        %4495 = vmatmul.mubr.bf16.gmra.mxu0 %v3504
        %v4496 = vpop.f32.mrf.mxu0
        %v4497 = vadd.f32 %v4336, %v4496
        %v4498 = vpop.f32.mrf.mxu0
        %v4499 = vpop.f32.mrf.mxu0
        %v4500 = vadd.f32 %v4339, %v4499
        %v4501 = vpop.f32.mrf.mxu0
        %4502 = vmatprep.mubr.bf16.mxu0 %v3513
        %4503 = vmatmul.mubr.bf16.gmra.mxu0 %v3512
        %v4504 = vpop.f32.mrf.mxu0
        %v4505 = vadd.f32 %v4344, %v4504
        %v4506 = vpop.f32.mrf.mxu0
        %v4507 = vpop.f32.mrf.mxu0
        %v4508 = vadd.f32 %v4347, %v4507
        %v4509 = vpop.f32.mrf.mxu0
        %4510 = vmatprep.mubr.bf16.mxu0 %v3521
        %4511 = vmatmul.mubr.bf16.gmra.mxu0 %v3520
        %v4512 = vpop.f32.mrf.mxu0
        %v4513 = vadd.f32 %v4352, %v4512
        %v4514 = vpop.f32.mrf.mxu0
        %v4515 = vpop.f32.mrf.mxu0
        %v4516 = vadd.f32 %v4355, %v4515
        %v4517 = vpop.f32.mrf.mxu0
        %4518 = vmatprep.mubr.bf16.mxu0 %v3529
        %4519 = vmatmul.mubr.bf16.gmra.mxu0 %v3528
        %v4520 = vpop.f32.mrf.mxu0
        %v4521 = vadd.f32 %v4360, %v4520
        %v4522 = vpop.f32.mrf.mxu0
        %v4523 = vpop.f32.mrf.mxu0
        %v4524 = vadd.f32 %v4363, %v4523
        %v4525 = vpop.f32.mrf.mxu0
        %4526 = vdwg.mxu0
        %4527 = vmatprep.subr.bf16.mxu0 0
        %4528 = vmatpush1.bf16.msra.mxu0 %v3971
        %4529 = vmatprep.subr.bf16.mxu0 0
        %4530 = vmatpush1.bf16.msra.mxu0 %v3970
        %4531 = vmatprep.subr.bf16.mxu0 0
        %4532 = vmatpush1.bf16.msra.mxu0 %v3969
        %4533 = vmatprep.subr.bf16.mxu0 0
        %4534 = vmatpush1.bf16.msra.mxu0 %v3968
        %4535 = vmatprep.subr.bf16.mxu0 0
        %4536 = vmatpush1.bf16.msra.mxu0 %v3967
        %4537 = vmatprep.subr.bf16.mxu0 0
        %4538 = vmatpush1.bf16.msra.mxu0 %v3966
        %4539 = vmatprep.subr.bf16.mxu0 0
        %4540 = vmatpush1.bf16.msra.mxu0 %v3965
        %4541 = vmatprep.subr.bf16.mxu0 0
        %4542 = vmatpush1.bf16.msra.mxu0 %v3964
        %4543 = vmatprep.subr.bf16.mxu0 0
        %4544 = vmatpush2.bf16.msra.mxu0 %v3979
        %4545 = vmatprep.subr.bf16.mxu0 0
        %4546 = vmatpush2.bf16.msra.mxu0 %v3978
        %4547 = vmatprep.subr.bf16.mxu0 0
        %4548 = vmatpush2.bf16.msra.mxu0 %v3977
        %4549 = vmatprep.subr.bf16.mxu0 0
        %4550 = vmatpush2.bf16.msra.mxu0 %v3976
        %4551 = vmatprep.subr.bf16.mxu0 0
        %4552 = vmatpush2.bf16.msra.mxu0 %v3975
        %4553 = vmatprep.subr.bf16.mxu0 0
        %4554 = vmatpush2.bf16.msra.mxu0 %v3974
        %4555 = vmatprep.subr.bf16.mxu0 0
        %4556 = vmatpush2.bf16.msra.mxu0 %v3973
        %4557 = vmatprep.subr.bf16.mxu0 0
        %4558 = vmatpush2.bf16.msra.mxu0 %v3972
        %4559 = vmatprep.mubr.bf16.mxu0 %v3411
        %4560 = vmatmul.mubr.bf16.gmra.mxu0 %v3410
        %v4561 = vpop.f32.mrf.mxu0
        %v4562 = vadd.f32 %v4401, %v4561
        %v4563 = vpop.f32.mrf.mxu0
        %v4564 = vpop.f32.mrf.mxu0
        %v4565 = vadd.f32 %v4404, %v4564
        %v4566 = vpop.f32.mrf.mxu0
        %4567 = vmatprep.mubr.bf16.mxu0 %v3419
        %4568 = vmatmul.mubr.bf16.gmra.mxu0 %v3418
        %v4569 = vpop.f32.mrf.mxu0
        %v4570 = vadd.f32 %v4409, %v4569
        %v4571 = vpop.f32.mrf.mxu0
        %v4572 = vpop.f32.mrf.mxu0
        %v4573 = vadd.f32 %v4412, %v4572
        %v4574 = vpop.f32.mrf.mxu0
        %4575 = vmatprep.mubr.bf16.mxu0 %v3427
        %4576 = vmatmul.mubr.bf16.gmra.mxu0 %v3426
        %v4577 = vpop.f32.mrf.mxu0
        %v4578 = vadd.f32 %v4417, %v4577
        %v4579 = vpop.f32.mrf.mxu0
        %v4580 = vpop.f32.mrf.mxu0
        %v4581 = vadd.f32 %v4420, %v4580
        %v4582 = vpop.f32.mrf.mxu0
        %4583 = vmatprep.mubr.bf16.mxu0 %v3435
        %4584 = vmatmul.mubr.bf16.gmra.mxu0 %v3434
        %v4585 = vpop.f32.mrf.mxu0
        %v4586 = vadd.f32 %v4425, %v4585
        %v4587 = vpop.f32.mrf.mxu0
        %v4588 = vpop.f32.mrf.mxu0
        %v4589 = vadd.f32 %v4428, %v4588
        %v4590 = vpop.f32.mrf.mxu0
        %4591 = vmatprep.mubr.bf16.mxu0 %v3443
        %4592 = vmatmul.mubr.bf16.gmra.mxu0 %v3442
        %v4593 = vpop.f32.mrf.mxu0
        %v4594 = vadd.f32 %v4433, %v4593
        %v4595 = vpop.f32.mrf.mxu0
        %v4596 = vpop.f32.mrf.mxu0
        %v4597 = vadd.f32 %v4436, %v4596
        %v4598 = vpop.f32.mrf.mxu0
        %4599 = vmatprep.mubr.bf16.mxu0 %v3451
        %4600 = vmatmul.mubr.bf16.gmra.mxu0 %v3450
        %v4601 = vpop.f32.mrf.mxu0
        %v4602 = vadd.f32 %v4441, %v4601
        %v4603 = vpop.f32.mrf.mxu0
        %v4604 = vpop.f32.mrf.mxu0
        %v4605 = vadd.f32 %v4444, %v4604
        %v4606 = vpop.f32.mrf.mxu0
        %4607 = vmatprep.mubr.bf16.mxu0 %v3459
        %4608 = vmatmul.mubr.bf16.gmra.mxu0 %v3458
        %v4609 = vpop.f32.mrf.mxu0
        %v4610 = vadd.f32 %v4449, %v4609
        %v4611 = vpop.f32.mrf.mxu0
        %v4612 = vpop.f32.mrf.mxu0
        %v4613 = vadd.f32 %v4452, %v4612
        %v4614 = vpop.f32.mrf.mxu0
        %4615 = vmatprep.mubr.bf16.mxu0 %v3467
        %4616 = vmatmul.mubr.bf16.gmra.mxu0 %v3466
        %v4617 = vpop.f32.mrf.mxu0
        %v4618 = vadd.f32 %v4457, %v4617
        %v4619 = vpop.f32.mrf.mxu0
        %v4620 = vpop.f32.mrf.mxu0
        %v4621 = vadd.f32 %v4460, %v4620
        %v4622 = vpop.f32.mrf.mxu0
        %4623 = vmatprep.mubr.bf16.mxu0 %v3475
        %4624 = vmatmul.mubr.bf16.gmra.mxu0 %v3474
        %v4625 = vpop.f32.mrf.mxu0
        %v4626 = vadd.f32 %v4465, %v4625
        %v4627 = vpop.f32.mrf.mxu0
        %v4628 = vpop.f32.mrf.mxu0
        %v4629 = vadd.f32 %v4468, %v4628
        %v4630 = vpop.f32.mrf.mxu0
        %4631 = vmatprep.mubr.bf16.mxu0 %v3483
        %4632 = vmatmul.mubr.bf16.gmra.mxu0 %v3482
        %v4633 = vpop.f32.mrf.mxu0
        %v4634 = vadd.f32 %v4473, %v4633
        %v4635 = vpop.f32.mrf.mxu0
        %v4636 = vpop.f32.mrf.mxu0
        %v4637 = vadd.f32 %v4476, %v4636
        %v4638 = vpop.f32.mrf.mxu0
        %4639 = vmatprep.mubr.bf16.mxu0 %v3491
        %4640 = vmatmul.mubr.bf16.gmra.mxu0 %v3490
        %v4641 = vpop.f32.mrf.mxu0
        %v4642 = vadd.f32 %v4481, %v4641
        %v4643 = vpop.f32.mrf.mxu0
        %v4644 = vpop.f32.mrf.mxu0
        %v4645 = vadd.f32 %v4484, %v4644
        %v4646 = vpop.f32.mrf.mxu0
        %4647 = vmatprep.mubr.bf16.mxu0 %v3499
        %4648 = vmatmul.mubr.bf16.gmra.mxu0 %v3498
        %v4649 = vpop.f32.mrf.mxu0
        %v4650 = vadd.f32 %v4489, %v4649
        %v4651 = vpop.f32.mrf.mxu0
        %v4652 = vpop.f32.mrf.mxu0
        %v4653 = vadd.f32 %v4492, %v4652
        %v4654 = vpop.f32.mrf.mxu0
        %4655 = vmatprep.mubr.bf16.mxu0 %v3507
        %4656 = vmatmul.mubr.bf16.gmra.mxu0 %v3506
        %v4657 = vpop.f32.mrf.mxu0
        %v4658 = vadd.f32 %v4497, %v4657
        %v4659 = vpop.f32.mrf.mxu0
        %v4660 = vpop.f32.mrf.mxu0
        %v4661 = vadd.f32 %v4500, %v4660
        %v4662 = vpop.f32.mrf.mxu0
        %4663 = vmatprep.mubr.bf16.mxu0 %v3515
        %4664 = vmatmul.mubr.bf16.gmra.mxu0 %v3514
        %v4665 = vpop.f32.mrf.mxu0
        %v4666 = vadd.f32 %v4505, %v4665
        %v4667 = vpop.f32.mrf.mxu0
        %v4668 = vpop.f32.mrf.mxu0
        %v4669 = vadd.f32 %v4508, %v4668
        %v4670 = vpop.f32.mrf.mxu0
        %4671 = vmatprep.mubr.bf16.mxu0 %v3523
        %4672 = vmatmul.mubr.bf16.gmra.mxu0 %v3522
        %v4673 = vpop.f32.mrf.mxu0
        %v4674 = vadd.f32 %v4513, %v4673
        %v4675 = vpop.f32.mrf.mxu0
        %v4676 = vpop.f32.mrf.mxu0
        %v4677 = vadd.f32 %v4516, %v4676
        %v4678 = vpop.f32.mrf.mxu0
        %4679 = vmatprep.mubr.bf16.mxu0 %v3531
        %4680 = vmatmul.mubr.bf16.gmra.mxu0 %v3530
        %v4681 = vpop.f32.mrf.mxu0
        %v4682 = vadd.f32 %v4521, %v4681
        %v4683 = vpop.f32.mrf.mxu0
        %v4684 = vpop.f32.mrf.mxu0
        %v4685 = vadd.f32 %v4524, %v4684
        %v4686 = vpop.f32.mrf.mxu0
        %4687 = vdwg.mxu0
        %v4688 = vmax.f32 %v4562, 0.0
        %v4689 = vmax.f32 %v4565, 0.0
        %v4690 = vmax.f32 %v4570, 0.0
        %v4691 = vmax.f32 %v4573, 0.0
        %v4692 = vmax.f32 %v4578, 0.0
        %v4693 = vmax.f32 %v4581, 0.0
        %v4694 = vmax.f32 %v4586, 0.0
        %v4695 = vmax.f32 %v4589, 0.0
        %v4696 = vmax.f32 %v4594, 0.0
        %v4697 = vmax.f32 %v4597, 0.0
        %v4698 = vmax.f32 %v4602, 0.0
        %v4699 = vmax.f32 %v4605, 0.0
        %v4700 = vmax.f32 %v4610, 0.0
        %v4701 = vmax.f32 %v4613, 0.0
        %v4702 = vmax.f32 %v4618, 0.0
        %v4703 = vmax.f32 %v4621, 0.0
        %v4704 = vmax.f32 %v4626, 0.0
        %v4705 = vmax.f32 %v4629, 0.0
        %v4706 = vmax.f32 %v4634, 0.0
        %v4707 = vmax.f32 %v4637, 0.0
        %v4708 = vmax.f32 %v4642, 0.0
        %v4709 = vmax.f32 %v4645, 0.0
        %v4710 = vmax.f32 %v4650, 0.0
        %v4711 = vmax.f32 %v4653, 0.0
        %v4712 = vmax.f32 %v4658, 0.0
        %v4713 = vmax.f32 %v4661, 0.0
        %v4714 = vmax.f32 %v4666, 0.0
        %v4715 = vmax.f32 %v4669, 0.0
        %v4716 = vmax.f32 %v4674, 0.0
        %v4717 = vmax.f32 %v4677, 0.0
        %v4718 = vmax.f32 %v4682, 0.0
        %v4719 = vmax.f32 %v4685, 0.0
        %v4720 = vld [vmem:[%s5] sm:$0x1]
        %v4721 = vunpack.c.l.bf16 %v4720
        %s4722 = sld [smem:[#allocation3]]
        %v4723 = vstv %s4722
        %4724 = vmatprep.subr.mxu0 0.0
        %4725 = vmatpush1.xpose.msra.mxu0 %v4703
        %4726 = vmatprep.subr.mxu0 0.0
        %4727 = vmatpush1.xpose.msra.mxu0 %v4702
        %4728 = vmatprep.subr.mxu0 0.0
        %4729 = vmatpush1.xpose.msra.mxu0 %v4701
        %4730 = vmatprep.subr.mxu0 0.0
        %4731 = vmatpush1.xpose.msra.mxu0 %v4700
        %4732 = vmatprep.subr.mxu0 0.0
        %4733 = vmatpush1.xpose.msra.mxu0 %v4699
        %4734 = vmatprep.subr.mxu0 0.0
        %4735 = vmatpush1.xpose.msra.mxu0 %v4698
        %4736 = vmatprep.subr.mxu0 0.0
        %4737 = vmatpush1.xpose.msra.mxu0 %v4697
        %4738 = vmatprep.subr.mxu0 0.0
        %4739 = vmatpush1.xpose.msra.mxu0 %v4696
        %4740 = vmatprep.subr.mxu0 0.0
        %4741 = vmatpush1.xpose.msra.mxu0 %v4695
        %4742 = vmatprep.subr.mxu0 0.0
        %4743 = vmatpush1.xpose.msra.mxu0 %v4694
        %4744 = vmatprep.subr.mxu0 0.0
        %4745 = vmatpush1.xpose.msra.mxu0 %v4693
        %4746 = vmatprep.subr.mxu0 0.0
        %4747 = vmatpush1.xpose.msra.mxu0 %v4692
        %4748 = vmatprep.subr.mxu0 0.0
        %4749 = vmatpush1.xpose.msra.mxu0 %v4691
        %4750 = vmatprep.subr.mxu0 0.0
        %4751 = vmatpush1.xpose.msra.mxu0 %v4690
        %4752 = vmatprep.subr.mxu0 0.0
        %4753 = vmatpush1.xpose.msra.mxu0 %v4689
        %4754 = vmatprep.subr.mxu0 0.0
        %4755 = vmatpush1.xpose.msra.mxu0 %v4688
        %4756 = vmatprep.subr.mxu0 0.0
        %4757 = vmatpush2.xpose.msra.mxu0 %v4719
        %4758 = vmatprep.subr.mxu0 0.0
        %4759 = vmatpush2.xpose.msra.mxu0 %v4718
        %4760 = vmatprep.subr.mxu0 0.0
        %4761 = vmatpush2.xpose.msra.mxu0 %v4717
        %4762 = vmatprep.subr.mxu0 0.0
        %4763 = vmatpush2.xpose.msra.mxu0 %v4716
        %4764 = vmatprep.subr.mxu0 0.0
        %4765 = vmatpush2.xpose.msra.mxu0 %v4715
        %4766 = vmatprep.subr.mxu0 0.0
        %4767 = vmatpush2.xpose.msra.mxu0 %v4714
        %4768 = vmatprep.subr.mxu0 0.0
        %4769 = vmatpush2.xpose.msra.mxu0 %v4713
        %4770 = vmatprep.subr.mxu0 0.0
        %4771 = vmatpush2.xpose.msra.mxu0 %v4712
        %4772 = vmatprep.subr.mxu0 0.0
        %4773 = vmatpush2.xpose.msra.mxu0 %v4711
        %4774 = vmatprep.subr.mxu0 0.0
        %4775 = vmatpush2.xpose.msra.mxu0 %v4710
        %4776 = vmatprep.subr.mxu0 0.0
        %4777 = vmatpush2.xpose.msra.mxu0 %v4709
        %4778 = vmatprep.subr.mxu0 0.0
        %4779 = vmatpush2.xpose.msra.mxu0 %v4708
        %4780 = vmatprep.subr.mxu0 0.0
        %4781 = vmatpush2.xpose.msra.mxu0 %v4707
        %4782 = vmatprep.subr.mxu0 0.0
        %4783 = vmatpush2.xpose.msra.mxu0 %v4706
        %4784 = vmatprep.subr.mxu0 0.0
        %4785 = vmatpush2.xpose.msra.mxu0 %v4705
        %4786 = vmatprep.subr.mxu0 0.0
        %4787 = vmatpush2.xpose.msra.mxu0 %v4704
        %4788 = vmatprep.mubr.f32.mxu0 0.0
        %4789 = vmatmul.mubr.f32.gmra.mxu0 %v4721
        %v4790 = vpop.f32.mrf.mxu0
        %v4791 = vadd.f32 %v4723, %v4790
        %v4792 = vpop.f32.mrf.mxu0
        %v4793 = vadd.f32 %v4723, %v4792
        %4794 = vdwg.mxu0
        %v4797 = vcombine.low %v4791, %v4793
        %v4799 = vunpack.c.l.s4 1966171168
        %v4800 = vunpack.c.0.s8 %v4799
        %v4801 = vlaneseq
        %v4802 = vshrl.u32 %v4801, 7
        %v4803 = vsub.s32 %v4800, %v4802
        %v4804 = vrot.slane %v4797, %v4803
        %v4806 = vunpack.c.l.s4 1966171168
        %v4807 = vunpack.c.0.s8 %v4806
        %v4808 = vlaneseq
        %v4809 = vshrl.u32 %v4808, 7
        %v4810 = vsub.s32 %v4807, %v4809
        %v4811 = vrot.slane %v4804, %v4810
        %v4813 = vlaneseq
        %vm4814 = vcmp.ge.s32.totalorder %v4813, 0
        %vm4815 = vcmp.lt.s32.totalorder %v4813, 256
        %vm4816 = vmand %vm4814, %vm4815
        %4817 = vst.msk [vmem:[%s345] sm:$0x3] %vm4816, %v4811
        %s4818 = sand.u32 %s187, 1
        %s4819 = scalar_lea.sflag [#allocation6], %s4818
        %s4820 = sand.u32 %s187, 1
        %s4821 = smul.addr %s4820, 2
        %s4822 = scalar_lea.vmem [#allocation12], %s4821
        // Predicated region
        $region65: #{tpu_custom_call.1} parent=47 // pred_check
          %p4823 = pneg %p197
        $region66: #{tpu_custom_call.1} parent=47 // pred_check_branch
          %4825 = sbr.rel (%p4823) target = $region68
        $region67: #{tpu_custom_call.1} parent=47 // pred_region
          %s4826 = smul.u32 2, %s27
          %s4828 = ssub.s32 32, 32
          %4829 = vsyncadd %s4819, %s4828
          %s4830 = smul.addr %s4826, 16
          %s4831 = scalar_lea.hbm %s7, %s4830
          %s4833 = sshll.u32 %s4822, 4
          %s4834 = int_to_ptr.vmem [resolvable:$true] %s4833
          %4836 = dma.vmem_to_hbm [thread:$0]  %s4834, 32, %s4831, %s4819
        $region68: #{tpu_custom_call.1} parent=47 // pred_fallthru
          _
      $region48: #{tpu_custom_call.1} parent=5 // pred_fallthru
        _
      %p4837 = scmp.le.s32.totalorder 2, %s22
      // Predicated region
      $region69: #{tpu_custom_call.1} parent=5 // pred_check
        %p4838 = pneg %p4837
      $region70: #{tpu_custom_call.1} parent=5 // pred_check_branch
        %4840 = sbr.rel (%p4838) target = $region72
      $region71: #{tpu_custom_call.1} parent=5 // pred_region
        %s4841 = ssub.s32 %s22, 2
        // Predicated region
        $region73: #{tpu_custom_call.1} parent=71 // pred_check
          %p4842 = pneg %p203
        $region74: #{tpu_custom_call.1} parent=71 // pred_check_branch
          %4844 = sbr.rel (%p4842) target = $region76
        $region75: #{tpu_custom_call.1} parent=71 // pred_region
          %s4845 = sand.u32 %s188, 1
          %s4846 = scalar_lea.sflag [#allocation6], %s4845
          %s4847 = sand.u32 %s188, 1
          %s4848 = smul.addr %s4847, 2
          %s4849 = scalar_lea.vmem [#allocation12], %s4848
          %4850 = dma.done %s4846, 32
        $region76: #{tpu_custom_call.1} parent=71 // pred_fallthru
          _
      $region72: #{tpu_custom_call.1} parent=5 // pred_fallthru
        _
    $region6: #{tpu_custom_call.1} parent=1 // loop_footer
      %s26 = sadd.s32 1, %s22
    $region7: #{tpu_custom_call.1} parent=1 // loop_footer_branch
      %21 = sbr.rel target = $region3
    $region8: #{tpu_custom_call.1} parent=1 // loop_exit
      _
    %4851 = vsyncpa [#allocation5], 1
    %s4852 = scalar_lea.sflag [#allocation5], 1
    %4853 = vsyncpa %s4852, 1
    %4854 = vsyncpa [#allocation8], 1
    %4855 = vsyncpa [#allocation11], 1
    %4856 = vsyncpa [#allocation6], 1
    %s4857 = scalar_lea.sflag [#allocation6], 1
    %4858 = vsyncpa %s4857, 1

</llo_original>
